<compile_context>
chip_gen: v7x
topology: tpu7x:2x2x1
jax: 0.10.0
libtpu: 0.0.40
codegen_flags: <defaults>
</compile_context>

<pallas_src>
import functools

import jax
import jax.numpy as jnp
from jax.experimental import pallas as pl
from jax.experimental.pallas import tpu as pltpu

EPS = 1e-8  # matches nn.GroupNorm(..., eps=1e-8) in the look2hear TCN


# ----------------------------------------------------------------------------
# Fused kernel: one invocation = one batch element, all blocks unrolled.
# ----------------------------------------------------------------------------
def tcn_fused_kernel(a1_ref, a2_ref, oa_ref,            # SMEM PReLU alphas
                     x_ref,                              # (1, Cin, Lp) VMEM
                     gvec_ref,                           # (G_max, 4) global per-channel slab
                     bnw_ref,                            # (BN, Cin) matmul_dtype
                     cvec_ref,                           # (NB, C_max, 7+ksize) per-block slab
                     w1_ref,                             # (NB, H, BN) matmul_dtype
                     wrs_ref,                            # (NB, 2BN, H) matmul_dtype
                     ow_ref,                             # (OUT, BN) matmul_dtype
                     o_ref,                              # (1, OUT, Lp) f32
                     *, L, dilations, ksize, matmul_dtype):
    f32 = jnp.float32
    Cin, Lp = x_ref.shape[1], x_ref.shape[2]
    BN = bnw_ref.shape[0]
    H = w1_ref.shape[1]
    OUT = ow_ref.shape[0]

    lane = jax.lax.broadcasted_iota(jnp.int32, (1, Lp), 1)
    lane_mask = None if Lp == L else (lane < L).astype(f32)

    # ---- hoisted per-dilation depthwise-conv plan (shift + boundary mask) ----
    tap_plan = {}
    for d in sorted(set(dilations)):
        pad = ((ksize - 1) // 2) * d
        plan = []
        for k in range(ksize):
            off = k * d - pad                       # e.g. -d, 0, +d for ksize=3
            if off == 0:
                plan.append((k, 0, None))
            else:
                shift = (-off) % Lp                 # non-negative roll amount
                mask = (lane >= -off) if off < 0 else (lane < (L - off))
                plan.append((k, shift, mask))
        tap_plan[d] = plan

    def mm(w, v):
        # MXU matmul, f32 accumulation; weights already stored in matmul_dtype.
        if matmul_dtype != f32:
            v = v.astype(matmul_dtype)
        return jnp.dot(w, v, preferred_element_type=f32)

    def gnorm(h, gamma, beta, n):
        # GroupNorm(num_groups=1), one-pass masked stats, folded affine.
        hm = h if lane_mask is None else h * lane_mask
        s = jnp.sum(hm, keepdims=True)
        ss = jnp.sum(hm * hm, keepdims=True)
        mean = s * (1.0 / n)
        var = jnp.maximum(ss * (1.0 / n) - mean * mean, 0.0)
        scale = gamma * jax.lax.rsqrt(var + EPS)    # (C, 1)
        shift = beta - mean * scale                 # (C, 1)
        return h * scale + shift

    # ---- per-channel parameter slabs (lane-dense storage) ----
    # global slab columns: 0 ln_gamma, 1 ln_beta, 2 bn_b, 3 out_b
    gv = gvec_ref[...]
    ln_g = gv[0:Cin, 0:1]
    ln_b = gv[0:Cin, 1:2]
    bn_b = gv[0:BN, 2:3]
    out_b = gv[0:OUT, 3:4]

    # per-block slab columns
    COL_B1, COL_G1, COL_BE1 = 0, 1, 2
    COL_DW = 3                                      # ksize columns
    COL_DB = 3 + ksize
    COL_G2 = 4 + ksize
    COL_BE2 = 5 + ksize
    COL_BRS = 6 + ksize

    # ---- input GroupNorm(1, Cin) + 1x1 conv Cin -> BN ----
    x = x_ref[0]
    xn = gnorm(x, ln_g, ln_b, Cin * L)
    cur = mm(bnw_ref[...], xn) + bn_b

    # ---- DepthConv1d blocks (unrolled; dilations are static) ----
    skip_sum = None
    for j, d in enumerate(dilations):
        cv = cvec_ref[j]                            # (C_max, 7+ksize)
        b1 = cv[0:H, COL_B1:COL_B1 + 1]
        g1 = cv[0:H, COL_G1:COL_G1 + 1]
        be1 = cv[0:H, COL_BE1:COL_BE1 + 1]
        db = cv[0:H, COL_DB:COL_DB + 1]
        g2 = cv[0:H, COL_G2:COL_G2 + 1]
        be2 = cv[0:H, COL_BE2:COL_BE2 + 1]
        brs = cv[0:2 * BN, COL_BRS:COL_BRS + 1]

        h = mm(w1_ref[j], cur) + b1
        h = jnp.where(h >= 0, h, a1_ref[j] * h)                 # PReLU
        h = gnorm(h, g1, be1, H * L)

        # Depthwise dilated conv, zero padding = ((ksize-1)//2)*d ("same" len).
        acc = None
        for k, shift, mask in tap_plan[d]:
            wk = cv[0:H, COL_DW + k:COL_DW + k + 1]             # (H, 1) tap
            if mask is None:
                tap = h
            else:
                rolled = pltpu.roll(h, shift=shift, axis=1) if shift else h
                tap = jnp.where(mask, rolled, 0.0)
            term = wk * tap
            acc = term if acc is None else acc + term
        h = acc + db

        h = jnp.where(h >= 0, h, a2_ref[j] * h)                 # PReLU
        h = gnorm(h, g2, be2, H * L)

        rs = mm(wrs_ref[j], h) + brs                            # fused res||skip
        cur = cur + rs[:BN]
        skip_sum = rs[BN:] if skip_sum is None else skip_sum + rs[BN:]

    # ---- output head: PReLU + 1x1 conv BN -> output_dim ----
    y = jnp.where(skip_sum >= 0, skip_sum, oa_ref[0] * skip_sum)
    o_ref[0] = mm(ow_ref[...], y) + out_b


# ----------------------------------------------------------------------------
# Parameter repacking: lane-dense slabs + bf16 matmul weights
# ----------------------------------------------------------------------------
def pack_tcn_params(p, kernel, matmul_dtype):
    f32 = jnp.float32
    NB, H = p['w1'].shape[0], p['w1'].shape[1]
    BN, Cin = p['bn_w'].shape
    OUT = p['out_w'].shape[0]
    C_max = max(H, 2 * BN)
    G_max = max(Cin, BN, OUT)

    def padc(v, cm):
        v = jnp.asarray(v, f32).reshape(-1)
        return jnp.pad(v, (0, cm - v.shape[0]))

    block_slabs = []
    for j in range(NB):
        cols = [padc(p['b1'][j], C_max), padc(p['g1'][j], C_max),
                padc(p['be1'][j], C_max)]
        cols += [padc(p['dw'][j, k], C_max) for k in range(kernel)]
        cols += [padc(p['db'][j], C_max), padc(p['g2'][j], C_max),
                 padc(p['be2'][j], C_max), padc(p['brs'][j], C_max)]
        block_slabs.append(jnp.stack(cols, axis=1))             # (C_max, 7+ksize)
    cvec = jnp.stack(block_slabs, axis=0)                       # (NB, C_max, 7+ksize)

    gvec = jnp.stack([padc(p['ln_gamma'], G_max), padc(p['ln_beta'], G_max),
                      padc(p['bn_b'], G_max), padc(p['out_b'], G_max)],
                     axis=1)                                    # (G_max, 4)

    md = matmul_dtype
    return dict(gvec=gvec, cvec=cvec,
                bn_w=p['bn_w'].astype(md), w1=p['w1'].astype(md),
                wrs=p['wrs'].astype(md), out_w=p['out_w'].astype(md))


def _pick_vmem_limit(frac=0.8, default=64 * 1024 * 1024):
    # Per-generation VMEM budget: ~100 MiB on v5e/v6e (128 MiB), ~51 MiB on v7x.
    try:
        cap = getattr(pltpu.get_tpu_info(), "vmem_capacity_bytes", None)
        if cap:
            return min(int(cap * frac), 112 * 1024 * 1024)
    except Exception:
        pass
    return default


def _const_index_map(ndim):
    return lambda b: (0,) * ndim


# ----------------------------------------------------------------------------
# pallas_call wrapper
# ----------------------------------------------------------------------------
def tcn_wrapper_forward(x, params, kernel=3, matmul_dtype=jnp.bfloat16):
    """TCN_Wrapper.forward for module='TCN' (skip=True)."""
    p = params
    B, Cin, L = x.shape
    Lp = ((L + 127) // 128) * 128          # lane-dense last dim (mult. of 128)
    xp = x if Lp == L else jnp.pad(x, ((0, 0), (0, 0), (0, Lp - L)))

    packed = pack_tcn_params(p, kernel=kernel, matmul_dtype=matmul_dtype)
    weights = [packed['gvec'], packed['bn_w'], packed['cvec'],
               packed['w1'], packed['wrs'], packed['out_w']]
    OUT = packed['out_w'].shape[0]

    smem_spec = pl.BlockSpec(memory_space=pltpu.MemorySpace.SMEM)
    kern = functools.partial(
        tcn_fused_kernel, L=L,
        dilations=tuple(int(d) for d in p['dilations']),
        ksize=kernel, matmul_dtype=matmul_dtype)

    out = pl.pallas_call(
        kern,
        out_shape=jax.ShapeDtypeStruct((B, OUT, Lp), jnp.float32),
        grid=(B,),
        in_specs=[smem_spec, smem_spec, smem_spec,
                  pl.BlockSpec((1, Cin, Lp), lambda b: (b, 0, 0))]
                 + [pl.BlockSpec(w.shape, _const_index_map(w.ndim))
                    for w in weights],
        out_specs=pl.BlockSpec((1, OUT, Lp), lambda b: (b, 0, 0)),
        compiler_params=pltpu.CompilerParams(
            dimension_semantics=("parallel",),      # batch across cores (v7x)
            vmem_limit_bytes=_pick_vmem_limit()),
    )(p['a1'], p['a2'], p['out_a'], xp, *weights)

    return out if Lp == L else out[:, :, :L]


# ----------------------------------------------------------------------------
# Deterministic synthetic parameters (canonical / unpacked layouts)
# ----------------------------------------------------------------------------
def init_tcn_params(key, input_dim, output_dim, BN_dim, hidden_dim,
                    layer, stack, kernel=3, dilated=True):
    f32 = jnp.float32
    NB = stack * layer
    dilations = tuple((2 ** i) if dilated else 1
                      for _s in range(stack) for i in range(layer))
    keys = [key]

    def nxt():
        keys[0], sub = jax.random.split(keys[0])
        return sub

    w1, b1, dw, db, wrs, brs = [], [], [], [], [], []
    for _ in range(NB):
        w1.append(0.1 * jax.random.normal(nxt(), (hidden_dim, BN_dim), f32))
        b1.append(0.01 * jax.random.normal(nxt(), (hidden_dim, 1), f32))
        dw.append(0.1 * jax.random.normal(nxt(), (kernel, hidden_dim, 1), f32))
        db.append(0.01 * jax.random.normal(nxt(), (hidden_dim, 1), f32))
        wr = 0.1 * jax.random.normal(nxt(), (BN_dim, hidden_dim), f32)
        ws = 0.1 * jax.random.normal(nxt(), (BN_dim, hidden_dim), f32)
        wrs.append(jnp.concatenate([wr, ws], axis=0))     # fused res||skip
        br = 0.01 * jax.random.normal(nxt(), (BN_dim, 1), f32)
        bs = 0.01 * jax.random.normal(nxt(), (BN_dim, 1), f32)
        brs.append(jnp.concatenate([br, bs], axis=0))

    return {
        'dilations': dilations,
        'ln_gamma': jnp.ones((input_dim, 1), f32),
        'ln_beta': jnp.zeros((input_dim, 1), f32),
        'bn_w': 0.1 * jax.random.normal(nxt(), (BN_dim, input_dim), f32),
        'bn_b': 0.01 * jax.random.normal(nxt(), (BN_dim, 1), f32),
        'w1': jnp.stack(w1), 'b1': jnp.stack(b1),
        'a1': jnp.full((NB,), 0.25, f32),
        'g1': jnp.ones((NB, hidden_dim, 1), f32),
        'be1': jnp.zeros((NB, hidden_dim, 1), f32),
        'dw': jnp.stack(dw), 'db': jnp.stack(db),
        'a2': jnp.full((NB,), 0.25, f32),
        'g2': jnp.ones((NB, hidden_dim, 1), f32),
        'be2': jnp.zeros((NB, hidden_dim, 1), f32),
        'wrs': jnp.stack(wrs), 'brs': jnp.stack(brs),
        'out_a': jnp.full((1,), 0.25, f32),
        'out_w': 0.1 * jax.random.normal(nxt(), (output_dim, BN_dim), f32),
        'out_b': 0.01 * jax.random.normal(nxt(), (output_dim, 1), f32),
    }


# ----------------------------------------------------------------------------
# Pure-JAX reference (mirrors the PyTorch module, f32) for self-check
# ----------------------------------------------------------------------------
def tcn_reference(x, p, kernel=3):
    hi = jax.lax.Precision.HIGHEST

    def gn(h, g, b):
        m = jnp.mean(h, axis=(1, 2), keepdims=True)
        v = jnp.mean((h - m) ** 2, axis=(1, 2), keepdims=True)
        return (h - m) / jnp.sqrt(v + EPS) * g[None] + b[None]

    def conv1x1(w, b, h):
        return jnp.einsum('oc,bcl->bol', w, h, precision=hi) + b[None]

    BN = p['bn_w'].shape[0]
    L = x.shape[-1]
    cur = conv1x1(p['bn_w'], p['bn_b'], gn(x, p['ln_gamma'], p['ln_beta']))
    skip_sum = 0.0
    for j, d in enumerate(p['dilations']):
        h = conv1x1(p['w1'][j], p['b1'][j], cur)
        h = jnp.where(h >= 0, h, p['a1'][j] * h)
        h = gn(h, p['g1'][j], p['be1'][j])
        pad = ((kernel - 1) // 2) * d
        hpad = jnp.pad(h, ((0, 0), (0, 0), (pad, pad)))
        acc = 0.0
        for k in range(kernel):
            acc = acc + p['dw'][j, k][None] * hpad[:, :, k * d:k * d + L]
        h = acc + p['db'][j][None]
        h = jnp.where(h >= 0, h, p['a2'][j] * h)
        h = gn(h, p['g2'][j], p['be2'][j])
        rs = conv1x1(p['wrs'][j], p['brs'][j], h)
        cur = cur + rs[:, :BN]
        skip_sum = skip_sum + rs[:, BN:]
    y = jnp.where(skip_sum >= 0, skip_sum, p['out_a'][0] * skip_sum)
    return conv1x1(p['out_w'], p['out_b'], y)


# ----------------------------------------------------------------------------
if __name__ == "__main__":
    key = jax.random.PRNGKey(0)
    kp, kx = jax.random.split(key)

    # Small config consistent with TCN_Wrapper(input_dim, output_dim, hidden_dim,
    #                                          layer, stack, 'TCN', BN_dim, kernel)
    B, L = 2, 256                      # L multiple of 128 -> lane-dense stores
    input_dim, output_dim = 16, 16
    hidden_dim, BN_dim = 32, 32
    layer, stack, kernel = 2, 2, 3

    params = init_tcn_params(kp, input_dim, output_dim, BN_dim, hidden_dim,
                             layer, stack, kernel)
    x = jax.random.normal(kx, (B, input_dim, L), jnp.float32)

    # Default path: bf16 MXU operands, f32 accumulation / norm / residual math.
    y = tcn_wrapper_forward(x, params, kernel=kernel)
    y = jax.block_until_ready(y)

    assert y.shape == (B, output_dim, L), y.shape
    assert bool(jnp.all(jnp.isfinite(y)))

    # Self-check against a pure-JAX f32 reference of the PyTorch module.
    y_ref = tcn_reference(x, params, kernel=kernel)
    rel_err = float(jnp.max(jnp.abs(y - y_ref)) /
                    (jnp.max(jnp.abs(y_ref)) + 1e-6))
    assert rel_err < 2e-2, rel_err

    print("KERNEL_OK")
</pallas_src>

<mosaic_0001>
module attributes {stable_mosaic.version = 11 : i64} {
  func.func @tcn_fused_kernel(%arg0: i32, %arg1: memref<4xf32, #tpu.memory_space<smem>>, %arg2: memref<4xf32, #tpu.memory_space<smem>>, %arg3: memref<1xf32, #tpu.memory_space<smem>>, %arg4: memref<1x16x256xf32, #tpu.memory_space<vmem>>, %arg5: memref<32x4xf32, #tpu.memory_space<vmem>>, %arg6: memref<32x16xbf16, #tpu.memory_space<vmem>>, %arg7: memref<4x64x10xf32, #tpu.memory_space<vmem>>, %arg8: memref<4x32x32xbf16, #tpu.memory_space<vmem>>, %arg9: memref<4x64x32xbf16, #tpu.memory_space<vmem>>, %arg10: memref<16x32xbf16, #tpu.memory_space<vmem>>, %arg11: memref<1x16x256xf32, #tpu.memory_space<vmem>>) attributes {dimension_semantics = [#tpu.dimension_semantics<parallel>], iteration_bounds = array<i64: 2>, scalar_prefetch = 0 : i64, scratch_operands = 0 : i64, tpu.core_type = #tpu.core_type<tc>, window_params = [{transform_indices = @transform_0, window_bounds = array<i64: 4>}, {transform_indices = @transform_1, window_bounds = array<i64: 4>}, {transform_indices = @transform_2, window_bounds = array<i64: 1>}, {transform_indices = @transform_3, window_bounds = array<i64: 1, 16, 256>}, {pipeline_mode = #tpu.pipeline_mode<synchronous>, transform_indices = @transform_4, window_bounds = array<i64: 32, 4>}, {pipeline_mode = #tpu.pipeline_mode<synchronous>, transform_indices = @transform_5, window_bounds = array<i64: 32, 16>}, {pipeline_mode = #tpu.pipeline_mode<synchronous>, transform_indices = @transform_6, window_bounds = array<i64: 4, 64, 10>}, {pipeline_mode = #tpu.pipeline_mode<synchronous>, transform_indices = @transform_7, window_bounds = array<i64: 4, 32, 32>}, {pipeline_mode = #tpu.pipeline_mode<synchronous>, transform_indices = @transform_8, window_bounds = array<i64: 4, 64, 32>}, {pipeline_mode = #tpu.pipeline_mode<synchronous>, transform_indices = @transform_9, window_bounds = array<i64: 16, 32>}, {transform_indices = @transform_10, window_bounds = array<i64: 1, 16, 256>}]} {
    %0 = tpu.iota {dimensions = array<i32: 1>} : vector<1x256xi32>
    %c1_i32 = arith.constant 1 : i32
    %1 = vector.broadcast %c1_i32 : i32 to vector<1x256xi32>
    %2 = arith.cmpi sge, %0, %1 : vector<1x256xi32>
    %c255_i32 = arith.constant 255 : i32
    %3 = vector.broadcast %c255_i32 : i32 to vector<1x256xi32>
    %4 = arith.cmpi slt, %0, %3 : vector<1x256xi32>
    %c2_i32 = arith.constant 2 : i32
    %5 = vector.broadcast %c2_i32 : i32 to vector<1x256xi32>
    %6 = arith.cmpi sge, %0, %5 : vector<1x256xi32>
    %c254_i32 = arith.constant 254 : i32
    %7 = vector.broadcast %c254_i32 : i32 to vector<1x256xi32>
    %8 = arith.cmpi slt, %0, %7 : vector<1x256xi32>
    %c0 = arith.constant 0 : index
    %c0_0 = arith.constant 0 : index
    %9 = vector.load %arg5[%c0, %c0_0] : memref<32x4xf32, #tpu.memory_space<vmem>>, vector<32x4xf32>
    %10 = vector.extract_strided_slice %9 {offsets = [0, 0], sizes = [16, 1], strides = [1, 1]} : vector<32x4xf32> to vector<16x1xf32>
    %11 = vector.extract_strided_slice %9 {offsets = [0, 1], sizes = [16, 1], strides = [1, 1]} : vector<32x4xf32> to vector<16x1xf32>
    %12 = vector.extract_strided_slice %9 {offsets = [0, 2], sizes = [32, 1], strides = [1, 1]} : vector<32x4xf32> to vector<32x1xf32>
    %13 = vector.extract_strided_slice %9 {offsets = [0, 3], sizes = [16, 1], strides = [1, 1]} : vector<32x4xf32> to vector<16x1xf32>
    %c0_1 = arith.constant 0 : index
    %c0_2 = arith.constant 0 : index
    %c0_3 = arith.constant 0 : index
    %14 = vector.load %arg4[%c0_1, %c0_2, %c0_3] : memref<1x16x256xf32, #tpu.memory_space<vmem>>, vector<1x16x256xf32>
    %15 = vector.shape_cast %14 : vector<1x16x256xf32> to vector<16x256xf32>
    %16 = vector.shape_cast %15 : vector<16x256xf32> to vector<1x16x256xf32>
    %cst = arith.constant dense<0.000000e+00> : vector<1xf32>
    %17 = vector.multi_reduction <add>, %16, %cst [1, 2] : vector<1x16x256xf32> to vector<1xf32>
    %18 = vector.shape_cast %17 : vector<1xf32> to vector<1x1x1xf32>
    %19 = vector.extract %18[0, 0, 0] : f32 from vector<1x1x1xf32>
    %20 = vector.broadcast %19 : f32 to vector<1x1xf32>
    %21 = arith.mulf %15, %15 : vector<16x256xf32>
    %22 = vector.shape_cast %21 : vector<16x256xf32> to vector<1x16x256xf32>
    %cst_4 = arith.constant dense<0.000000e+00> : vector<1xf32>
    %23 = vector.multi_reduction <add>, %22, %cst_4 [1, 2] : vector<1x16x256xf32> to vector<1xf32>
    %24 = vector.shape_cast %23 : vector<1xf32> to vector<1x1x1xf32>
    %25 = vector.extract %24[0, 0, 0] : f32 from vector<1x1x1xf32>
    %26 = vector.broadcast %25 : f32 to vector<1x1xf32>
    %cst_5 = arith.constant 2.44140625E-4 : f32
    %27 = vector.broadcast %cst_5 : f32 to vector<1x1xf32>
    %28 = arith.mulf %20, %27 : vector<1x1xf32>
    %cst_6 = arith.constant 2.44140625E-4 : f32
    %29 = vector.broadcast %cst_6 : f32 to vector<1x1xf32>
    %30 = arith.mulf %26, %29 : vector<1x1xf32>
    %31 = arith.mulf %28, %28 : vector<1x1xf32>
    %32 = arith.subf %30, %31 : vector<1x1xf32>
    %cst_7 = arith.constant 0.000000e+00 : f32
    %33 = vector.broadcast %cst_7 : f32 to vector<1x1xf32>
    %34 = arith.maximumf %32, %33 : vector<1x1xf32>
    %cst_8 = arith.constant 9.99999993E-9 : f32
    %35 = vector.broadcast %cst_8 : f32 to vector<1x1xf32>
    %36 = arith.addf %34, %35 : vector<1x1xf32>
    %37 = math.rsqrt %36 : vector<1x1xf32>
    %38 = vector.broadcast %37 : vector<1x1xf32> to vector<16x1xf32>
    %39 = arith.mulf %10, %38 : vector<16x1xf32>
    %40 = vector.broadcast %28 : vector<1x1xf32> to vector<16x1xf32>
    %41 = arith.mulf %40, %39 : vector<16x1xf32>
    %42 = arith.subf %11, %41 : vector<16x1xf32>
    %43 = vector.broadcast %39 : vector<16x1xf32> to vector<16x256xf32>
    %44 = arith.mulf %15, %43 : vector<16x256xf32>
    %45 = vector.broadcast %42 : vector<16x1xf32> to vector<16x256xf32>
    %46 = arith.addf %44, %45 : vector<16x256xf32>
    %c0_9 = arith.constant 0 : index
    %c0_10 = arith.constant 0 : index
    %47 = vector.load %arg6[%c0_9, %c0_10] : memref<32x16xbf16, #tpu.memory_space<vmem>>, vector<32x16xbf16>
    %48 = arith.truncf %46 : vector<16x256xf32> to vector<16x256xbf16>
    %cst_11 = arith.constant dense<0.000000e+00> : vector<32x256xf32>
    %49 = tpu.matmul %47, %48, %cst_11 {dimension_numbers = #tpu.dot_dimension_numbers<[1], [0], [0], [1], [0, 0, 1, 1], [], []>} : vector<32x16xbf16>, vector<16x256xbf16>, vector<32x256xf32> -> vector<32x256xf32>
    %50 = vector.broadcast %12 : vector<32x1xf32> to vector<32x256xf32>
    %51 = arith.addf %49, %50 : vector<32x256xf32>
    %c0_12 = arith.constant 0 : index
    %c0_13 = arith.constant 0 : index
    %c0_14 = arith.constant 0 : index
    %52 = vector.load %arg7[%c0_12, %c0_13, %c0_14] : memref<4x64x10xf32, #tpu.memory_space<vmem>>, vector<1x64x10xf32>
    %53 = vector.shape_cast %52 : vector<1x64x10xf32> to vector<64x10xf32>
    %54 = vector.extract_strided_slice %53 {offsets = [0, 0], sizes = [32, 1], strides = [1, 1]} : vector<64x10xf32> to vector<32x1xf32>
    %55 = vector.extract_strided_slice %53 {offsets = [0, 1], sizes = [32, 1], strides = [1, 1]} : vector<64x10xf32> to vector<32x1xf32>
    %56 = vector.extract_strided_slice %53 {offsets = [0, 2], sizes = [32, 1], strides = [1, 1]} : vector<64x10xf32> to vector<32x1xf32>
    %57 = vector.extract_strided_slice %53 {offsets = [0, 6], sizes = [32, 1], strides = [1, 1]} : vector<64x10xf32> to vector<32x1xf32>
    %58 = vector.extract_strided_slice %53 {offsets = [0, 7], sizes = [32, 1], strides = [1, 1]} : vector<64x10xf32> to vector<32x1xf32>
    %59 = vector.extract_strided_slice %53 {offsets = [0, 8], sizes = [32, 1], strides = [1, 1]} : vector<64x10xf32> to vector<32x1xf32>
    %60 = vector.extract_strided_slice %53 {offsets = [0, 9], sizes = [64, 1], strides = [1, 1]} : vector<64x10xf32> to vector<64x1xf32>
    %c0_15 = arith.constant 0 : index
    %c0_16 = arith.constant 0 : index
    %c0_17 = arith.constant 0 : index
    %61 = vector.load %arg8[%c0_15, %c0_16, %c0_17] : memref<4x32x32xbf16, #tpu.memory_space<vmem>>, vector<1x32x32xbf16>
    %62 = vector.shape_cast %61 : vector<1x32x32xbf16> to vector<32x32xbf16>
    %63 = arith.truncf %51 : vector<32x256xf32> to vector<32x256xbf16>
    %cst_18 = arith.constant dense<0.000000e+00> : vector<32x256xf32>
    %64 = tpu.matmul %62, %63, %cst_18 {dimension_numbers = #tpu.dot_dimension_numbers<[1], [0], [0], [1], [0, 0, 1, 1], [], []>} : vector<32x32xbf16>, vector<32x256xbf16>, vector<32x256xf32> -> vector<32x256xf32>
    %65 = vector.broadcast %54 : vector<32x1xf32> to vector<32x256xf32>
    %66 = arith.addf %64, %65 : vector<32x256xf32>
    %cst_19 = arith.constant 0.000000e+00 : f32
    %67 = vector.broadcast %cst_19 : f32 to vector<32x256xf32>
    %68 = arith.cmpf oge, %66, %67 : vector<32x256xf32>
    %c0_20 = arith.constant 0 : index
    %69 = memref.load %arg1[%c0_20] : memref<4xf32, #tpu.memory_space<smem>>
    %70 = vector.broadcast %69 : f32 to vector<32x256xf32>
    %71 = arith.mulf %70, %66 : vector<32x256xf32>
    %72 = arith.select %68, %66, %71 : vector<32x256xi1>, vector<32x256xf32>
    %73 = vector.shape_cast %72 : vector<32x256xf32> to vector<1x32x256xf32>
    %cst_21 = arith.constant dense<0.000000e+00> : vector<1xf32>
    %74 = vector.multi_reduction <add>, %73, %cst_21 [1, 2] : vector<1x32x256xf32> to vector<1xf32>
    %75 = vector.shape_cast %74 : vector<1xf32> to vector<1x1x1xf32>
    %76 = vector.extract %75[0, 0, 0] : f32 from vector<1x1x1xf32>
    %77 = vector.broadcast %76 : f32 to vector<1x1xf32>
    %78 = arith.mulf %72, %72 : vector<32x256xf32>
    %79 = vector.shape_cast %78 : vector<32x256xf32> to vector<1x32x256xf32>
    %cst_22 = arith.constant dense<0.000000e+00> : vector<1xf32>
    %80 = vector.multi_reduction <add>, %79, %cst_22 [1, 2] : vector<1x32x256xf32> to vector<1xf32>
    %81 = vector.shape_cast %80 : vector<1xf32> to vector<1x1x1xf32>
    %82 = vector.extract %81[0, 0, 0] : f32 from vector<1x1x1xf32>
    %83 = vector.broadcast %82 : f32 to vector<1x1xf32>
    %cst_23 = arith.constant 1.22070313E-4 : f32
    %84 = vector.broadcast %cst_23 : f32 to vector<1x1xf32>
    %85 = arith.mulf %77, %84 : vector<1x1xf32>
    %cst_24 = arith.constant 1.22070313E-4 : f32
    %86 = vector.broadcast %cst_24 : f32 to vector<1x1xf32>
    %87 = arith.mulf %83, %86 : vector<1x1xf32>
    %88 = arith.mulf %85, %85 : vector<1x1xf32>
    %89 = arith.subf %87, %88 : vector<1x1xf32>
    %cst_25 = arith.constant 0.000000e+00 : f32
    %90 = vector.broadcast %cst_25 : f32 to vector<1x1xf32>
    %91 = arith.maximumf %89, %90 : vector<1x1xf32>
    %cst_26 = arith.constant 9.99999993E-9 : f32
    %92 = vector.broadcast %cst_26 : f32 to vector<1x1xf32>
    %93 = arith.addf %91, %92 : vector<1x1xf32>
    %94 = math.rsqrt %93 : vector<1x1xf32>
    %95 = vector.broadcast %94 : vector<1x1xf32> to vector<32x1xf32>
    %96 = arith.mulf %55, %95 : vector<32x1xf32>
    %97 = vector.broadcast %85 : vector<1x1xf32> to vector<32x1xf32>
    %98 = arith.mulf %97, %96 : vector<32x1xf32>
    %99 = arith.subf %56, %98 : vector<32x1xf32>
    %100 = vector.broadcast %96 : vector<32x1xf32> to vector<32x256xf32>
    %101 = arith.mulf %72, %100 : vector<32x256xf32>
    %102 = vector.broadcast %99 : vector<32x1xf32> to vector<32x256xf32>
    %103 = arith.addf %101, %102 : vector<32x256xf32>
    %104 = vector.extract_strided_slice %53 {offsets = [0, 3], sizes = [32, 1], strides = [1, 1]} : vector<64x10xf32> to vector<32x1xf32>
    %c1_i32_27 = arith.constant 1 : i32
    %105 = tpu.dynamic_rotate %103 by %c1_i32_27 dim 1 : vector<32x256xf32>, i32 -> vector<32x256xf32>
    %cst_28 = arith.constant 0.000000e+00 : f32
    %106 = vector.shape_cast %2 : vector<1x256xi1> to vector<1x256xi1>
    %107 = vector.broadcast %106 : vector<1x256xi1> to vector<32x256xi1>
    %108 = vector.broadcast %cst_28 : f32 to vector<32x256xf32>
    %109 = arith.select %107, %105, %108 : vector<32x256xi1>, vector<32x256xf32>
    %110 = vector.broadcast %104 : vector<32x1xf32> to vector<32x256xf32>
    %111 = arith.mulf %110, %109 : vector<32x256xf32>
    %112 = vector.extract_strided_slice %53 {offsets = [0, 4], sizes = [32, 1], strides = [1, 1]} : vector<64x10xf32> to vector<32x1xf32>
    %113 = vector.broadcast %112 : vector<32x1xf32> to vector<32x256xf32>
    %114 = arith.mulf %113, %103 : vector<32x256xf32>
    %115 = arith.addf %111, %114 : vector<32x256xf32>
    %116 = vector.extract_strided_slice %53 {offsets = [0, 5], sizes = [32, 1], strides = [1, 1]} : vector<64x10xf32> to vector<32x1xf32>
    %c255_i32_29 = arith.constant 255 : i32
    %117 = tpu.dynamic_rotate %103 by %c255_i32_29 dim 1 : vector<32x256xf32>, i32 -> vector<32x256xf32>
    %cst_30 = arith.constant 0.000000e+00 : f32
    %118 = vector.shape_cast %4 : vector<1x256xi1> to vector<1x256xi1>
    %119 = vector.broadcast %118 : vector<1x256xi1> to vector<32x256xi1>
    %120 = vector.broadcast %cst_30 : f32 to vector<32x256xf32>
    %121 = arith.select %119, %117, %120 : vector<32x256xi1>, vector<32x256xf32>
    %122 = vector.broadcast %116 : vector<32x1xf32> to vector<32x256xf32>
    %123 = arith.mulf %122, %121 : vector<32x256xf32>
    %124 = arith.addf %115, %123 : vector<32x256xf32>
    %125 = vector.broadcast %57 : vector<32x1xf32> to vector<32x256xf32>
    %126 = arith.addf %124, %125 : vector<32x256xf32>
    %cst_31 = arith.constant 0.000000e+00 : f32
    %127 = vector.broadcast %cst_31 : f32 to vector<32x256xf32>
    %128 = arith.cmpf oge, %126, %127 : vector<32x256xf32>
    %c0_32 = arith.constant 0 : index
    %129 = memref.load %arg2[%c0_32] : memref<4xf32, #tpu.memory_space<smem>>
    %130 = vector.broadcast %129 : f32 to vector<32x256xf32>
    %131 = arith.mulf %130, %126 : vector<32x256xf32>
    %132 = arith.select %128, %126, %131 : vector<32x256xi1>, vector<32x256xf32>
    %133 = vector.shape_cast %132 : vector<32x256xf32> to vector<1x32x256xf32>
    %cst_33 = arith.constant dense<0.000000e+00> : vector<1xf32>
    %134 = vector.multi_reduction <add>, %133, %cst_33 [1, 2] : vector<1x32x256xf32> to vector<1xf32>
    %135 = vector.shape_cast %134 : vector<1xf32> to vector<1x1x1xf32>
    %136 = vector.extract %135[0, 0, 0] : f32 from vector<1x1x1xf32>
    %137 = vector.broadcast %136 : f32 to vector<1x1xf32>
    %138 = arith.mulf %132, %132 : vector<32x256xf32>
    %139 = vector.shape_cast %138 : vector<32x256xf32> to vector<1x32x256xf32>
    %cst_34 = arith.constant dense<0.000000e+00> : vector<1xf32>
    %140 = vector.multi_reduction <add>, %139, %cst_34 [1, 2] : vector<1x32x256xf32> to vector<1xf32>
    %141 = vector.shape_cast %140 : vector<1xf32> to vector<1x1x1xf32>
    %142 = vector.extract %141[0, 0, 0] : f32 from vector<1x1x1xf32>
    %143 = vector.broadcast %142 : f32 to vector<1x1xf32>
    %cst_35 = arith.constant 1.22070313E-4 : f32
    %144 = vector.broadcast %cst_35 : f32 to vector<1x1xf32>
    %145 = arith.mulf %137, %144 : vector<1x1xf32>
    %cst_36 = arith.constant 1.22070313E-4 : f32
    %146 = vector.broadcast %cst_36 : f32 to vector<1x1xf32>
    %147 = arith.mulf %143, %146 : vector<1x1xf32>
    %148 = arith.mulf %145, %145 : vector<1x1xf32>
    %149 = arith.subf %147, %148 : vector<1x1xf32>
    %cst_37 = arith.constant 0.000000e+00 : f32
    %150 = vector.broadcast %cst_37 : f32 to vector<1x1xf32>
    %151 = arith.maximumf %149, %150 : vector<1x1xf32>
    %cst_38 = arith.constant 9.99999993E-9 : f32
    %152 = vector.broadcast %cst_38 : f32 to vector<1x1xf32>
    %153 = arith.addf %151, %152 : vector<1x1xf32>
    %154 = math.rsqrt %153 : vector<1x1xf32>
    %155 = vector.broadcast %154 : vector<1x1xf32> to vector<32x1xf32>
    %156 = arith.mulf %58, %155 : vector<32x1xf32>
    %157 = vector.broadcast %145 : vector<1x1xf32> to vector<32x1xf32>
    %158 = arith.mulf %157, %156 : vector<32x1xf32>
    %159 = arith.subf %59, %158 : vector<32x1xf32>
    %160 = vector.broadcast %156 : vector<32x1xf32> to vector<32x256xf32>
    %161 = arith.mulf %132, %160 : vector<32x256xf32>
    %162 = vector.broadcast %159 : vector<32x1xf32> to vector<32x256xf32>
    %163 = arith.addf %161, %162 : vector<32x256xf32>
    %c0_39 = arith.constant 0 : index
    %c0_40 = arith.constant 0 : index
    %c0_41 = arith.constant 0 : index
    %164 = vector.load %arg9[%c0_39, %c0_40, %c0_41] : memref<4x64x32xbf16, #tpu.memory_space<vmem>>, vector<1x64x32xbf16>
    %165 = vector.shape_cast %164 : vector<1x64x32xbf16> to vector<64x32xbf16>
    %166 = arith.truncf %163 : vector<32x256xf32> to vector<32x256xbf16>
    %cst_42 = arith.constant dense<0.000000e+00> : vector<64x256xf32>
    %167 = tpu.matmul %165, %166, %cst_42 {dimension_numbers = #tpu.dot_dimension_numbers<[1], [0], [0], [1], [0, 0, 1, 1], [], []>} : vector<64x32xbf16>, vector<32x256xbf16>, vector<64x256xf32> -> vector<64x256xf32>
    %168 = vector.broadcast %60 : vector<64x1xf32> to vector<64x256xf32>
    %169 = arith.addf %167, %168 : vector<64x256xf32>
    %170 = vector.extract_strided_slice %169 {offsets = [0, 0], sizes = [32, 256], strides = [1, 1]} : vector<64x256xf32> to vector<32x256xf32>
    %171 = arith.addf %51, %170 : vector<32x256xf32>
    %172 = vector.extract_strided_slice %169 {offsets = [32, 0], sizes = [32, 256], strides = [1, 1]} : vector<64x256xf32> to vector<32x256xf32>
    %c1 = arith.constant 1 : index
    %c0_43 = arith.constant 0 : index
    %c0_44 = arith.constant 0 : index
    %173 = vector.load %arg7[%c1, %c0_43, %c0_44] : memref<4x64x10xf32, #tpu.memory_space<vmem>>, vector<1x64x10xf32>
    %174 = vector.shape_cast %173 : vector<1x64x10xf32> to vector<64x10xf32>
    %175 = vector.extract_strided_slice %174 {offsets = [0, 0], sizes = [32, 1], strides = [1, 1]} : vector<64x10xf32> to vector<32x1xf32>
    %176 = vector.extract_strided_slice %174 {offsets = [0, 1], sizes = [32, 1], strides = [1, 1]} : vector<64x10xf32> to vector<32x1xf32>
    %177 = vector.extract_strided_slice %174 {offsets = [0, 2], sizes = [32, 1], strides = [1, 1]} : vector<64x10xf32> to vector<32x1xf32>
    %178 = vector.extract_strided_slice %174 {offsets = [0, 6], sizes = [32, 1], strides = [1, 1]} : vector<64x10xf32> to vector<32x1xf32>
    %179 = vector.extract_strided_slice %174 {offsets = [0, 7], sizes = [32, 1], strides = [1, 1]} : vector<64x10xf32> to vector<32x1xf32>
    %180 = vector.extract_strided_slice %174 {offsets = [0, 8], sizes = [32, 1], strides = [1, 1]} : vector<64x10xf32> to vector<32x1xf32>
    %181 = vector.extract_strided_slice %174 {offsets = [0, 9], sizes = [64, 1], strides = [1, 1]} : vector<64x10xf32> to vector<64x1xf32>
    %c1_45 = arith.constant 1 : index
    %c0_46 = arith.constant 0 : index
    %c0_47 = arith.constant 0 : index
    %182 = vector.load %arg8[%c1_45, %c0_46, %c0_47] : memref<4x32x32xbf16, #tpu.memory_space<vmem>>, vector<1x32x32xbf16>
    %183 = vector.shape_cast %182 : vector<1x32x32xbf16> to vector<32x32xbf16>
    %184 = arith.truncf %171 : vector<32x256xf32> to vector<32x256xbf16>
    %cst_48 = arith.constant dense<0.000000e+00> : vector<32x256xf32>
    %185 = tpu.matmul %183, %184, %cst_48 {dimension_numbers = #tpu.dot_dimension_numbers<[1], [0], [0], [1], [0, 0, 1, 1], [], []>} : vector<32x32xbf16>, vector<32x256xbf16>, vector<32x256xf32> -> vector<32x256xf32>
    %186 = vector.broadcast %175 : vector<32x1xf32> to vector<32x256xf32>
    %187 = arith.addf %185, %186 : vector<32x256xf32>
    %cst_49 = arith.constant 0.000000e+00 : f32
    %188 = vector.broadcast %cst_49 : f32 to vector<32x256xf32>
    %189 = arith.cmpf oge, %187, %188 : vector<32x256xf32>
    %c1_50 = arith.constant 1 : index
    %190 = memref.load %arg1[%c1_50] : memref<4xf32, #tpu.memory_space<smem>>
    %191 = vector.broadcast %190 : f32 to vector<32x256xf32>
    %192 = arith.mulf %191, %187 : vector<32x256xf32>
    %193 = arith.select %189, %187, %192 : vector<32x256xi1>, vector<32x256xf32>
    %194 = vector.shape_cast %193 : vector<32x256xf32> to vector<1x32x256xf32>
    %cst_51 = arith.constant dense<0.000000e+00> : vector<1xf32>
    %195 = vector.multi_reduction <add>, %194, %cst_51 [1, 2] : vector<1x32x256xf32> to vector<1xf32>
    %196 = vector.shape_cast %195 : vector<1xf32> to vector<1x1x1xf32>
    %197 = vector.extract %196[0, 0, 0] : f32 from vector<1x1x1xf32>
    %198 = vector.broadcast %197 : f32 to vector<1x1xf32>
    %199 = arith.mulf %193, %193 : vector<32x256xf32>
    %200 = vector.shape_cast %199 : vector<32x256xf32> to vector<1x32x256xf32>
    %cst_52 = arith.constant dense<0.000000e+00> : vector<1xf32>
    %201 = vector.multi_reduction <add>, %200, %cst_52 [1, 2] : vector<1x32x256xf32> to vector<1xf32>
    %202 = vector.shape_cast %201 : vector<1xf32> to vector<1x1x1xf32>
    %203 = vector.extract %202[0, 0, 0] : f32 from vector<1x1x1xf32>
    %204 = vector.broadcast %203 : f32 to vector<1x1xf32>
    %cst_53 = arith.constant 1.22070313E-4 : f32
    %205 = vector.broadcast %cst_53 : f32 to vector<1x1xf32>
    %206 = arith.mulf %198, %205 : vector<1x1xf32>
    %cst_54 = arith.constant 1.22070313E-4 : f32
    %207 = vector.broadcast %cst_54 : f32 to vector<1x1xf32>
    %208 = arith.mulf %204, %207 : vector<1x1xf32>
    %209 = arith.mulf %206, %206 : vector<1x1xf32>
    %210 = arith.subf %208, %209 : vector<1x1xf32>
    %cst_55 = arith.constant 0.000000e+00 : f32
    %211 = vector.broadcast %cst_55 : f32 to vector<1x1xf32>
    %212 = arith.maximumf %210, %211 : vector<1x1xf32>
    %cst_56 = arith.constant 9.99999993E-9 : f32
    %213 = vector.broadcast %cst_56 : f32 to vector<1x1xf32>
    %214 = arith.addf %212, %213 : vector<1x1xf32>
    %215 = math.rsqrt %214 : vector<1x1xf32>
    %216 = vector.broadcast %215 : vector<1x1xf32> to vector<32x1xf32>
    %217 = arith.mulf %176, %216 : vector<32x1xf32>
    %218 = vector.broadcast %206 : vector<1x1xf32> to vector<32x1xf32>
    %219 = arith.mulf %218, %217 : vector<32x1xf32>
    %220 = arith.subf %177, %219 : vector<32x1xf32>
    %221 = vector.broadcast %217 : vector<32x1xf32> to vector<32x256xf32>
    %222 = arith.mulf %193, %221 : vector<32x256xf32>
    %223 = vector.broadcast %220 : vector<32x1xf32> to vector<32x256xf32>
    %224 = arith.addf %222, %223 : vector<32x256xf32>
    %225 = vector.extract_strided_slice %174 {offsets = [0, 3], sizes = [32, 1], strides = [1, 1]} : vector<64x10xf32> to vector<32x1xf32>
    %c2_i32_57 = arith.constant 2 : i32
    %226 = tpu.dynamic_rotate %224 by %c2_i32_57 dim 1 : vector<32x256xf32>, i32 -> vector<32x256xf32>
    %cst_58 = arith.constant 0.000000e+00 : f32
    %227 = vector.shape_cast %6 : vector<1x256xi1> to vector<1x256xi1>
    %228 = vector.broadcast %227 : vector<1x256xi1> to vector<32x256xi1>
    %229 = vector.broadcast %cst_58 : f32 to vector<32x256xf32>
    %230 = arith.select %228, %226, %229 : vector<32x256xi1>, vector<32x256xf32>
    %231 = vector.broadcast %225 : vector<32x1xf32> to vector<32x256xf32>
    %232 = arith.mulf %231, %230 : vector<32x256xf32>
    %233 = vector.extract_strided_slice %174 {offsets = [0, 4], sizes = [32, 1], strides = [1, 1]} : vector<64x10xf32> to vector<32x1xf32>
    %234 = vector.broadcast %233 : vector<32x1xf32> to vector<32x256xf32>
    %235 = arith.mulf %234, %224 : vector<32x256xf32>
    %236 = arith.addf %232, %235 : vector<32x256xf32>
    %237 = vector.extract_strided_slice %174 {offsets = [0, 5], sizes = [32, 1], strides = [1, 1]} : vector<64x10xf32> to vector<32x1xf32>
    %c254_i32_59 = arith.constant 254 : i32
    %238 = tpu.dynamic_rotate %224 by %c254_i32_59 dim 1 : vector<32x256xf32>, i32 -> vector<32x256xf32>
    %cst_60 = arith.constant 0.000000e+00 : f32
    %239 = vector.shape_cast %8 : vector<1x256xi1> to vector<1x256xi1>
    %240 = vector.broadcast %239 : vector<1x256xi1> to vector<32x256xi1>
    %241 = vector.broadcast %cst_60 : f32 to vector<32x256xf32>
    %242 = arith.select %240, %238, %241 : vector<32x256xi1>, vector<32x256xf32>
    %243 = vector.broadcast %237 : vector<32x1xf32> to vector<32x256xf32>
    %244 = arith.mulf %243, %242 : vector<32x256xf32>
    %245 = arith.addf %236, %244 : vector<32x256xf32>
    %246 = vector.broadcast %178 : vector<32x1xf32> to vector<32x256xf32>
    %247 = arith.addf %245, %246 : vector<32x256xf32>
    %cst_61 = arith.constant 0.000000e+00 : f32
    %248 = vector.broadcast %cst_61 : f32 to vector<32x256xf32>
    %249 = arith.cmpf oge, %247, %248 : vector<32x256xf32>
    %c1_62 = arith.constant 1 : index
    %250 = memref.load %arg2[%c1_62] : memref<4xf32, #tpu.memory_space<smem>>
    %251 = vector.broadcast %250 : f32 to vector<32x256xf32>
    %252 = arith.mulf %251, %247 : vector<32x256xf32>
    %253 = arith.select %249, %247, %252 : vector<32x256xi1>, vector<32x256xf32>
    %254 = vector.shape_cast %253 : vector<32x256xf32> to vector<1x32x256xf32>
    %cst_63 = arith.constant dense<0.000000e+00> : vector<1xf32>
    %255 = vector.multi_reduction <add>, %254, %cst_63 [1, 2] : vector<1x32x256xf32> to vector<1xf32>
    %256 = vector.shape_cast %255 : vector<1xf32> to vector<1x1x1xf32>
    %257 = vector.extract %256[0, 0, 0] : f32 from vector<1x1x1xf32>
    %258 = vector.broadcast %257 : f32 to vector<1x1xf32>
    %259 = arith.mulf %253, %253 : vector<32x256xf32>
    %260 = vector.shape_cast %259 : vector<32x256xf32> to vector<1x32x256xf32>
    %cst_64 = arith.constant dense<0.000000e+00> : vector<1xf32>
    %261 = vector.multi_reduction <add>, %260, %cst_64 [1, 2] : vector<1x32x256xf32> to vector<1xf32>
    %262 = vector.shape_cast %261 : vector<1xf32> to vector<1x1x1xf32>
    %263 = vector.extract %262[0, 0, 0] : f32 from vector<1x1x1xf32>
    %264 = vector.broadcast %263 : f32 to vector<1x1xf32>
    %cst_65 = arith.constant 1.22070313E-4 : f32
    %265 = vector.broadcast %cst_65 : f32 to vector<1x1xf32>
    %266 = arith.mulf %258, %265 : vector<1x1xf32>
    %cst_66 = arith.constant 1.22070313E-4 : f32
    %267 = vector.broadcast %cst_66 : f32 to vector<1x1xf32>
    %268 = arith.mulf %264, %267 : vector<1x1xf32>
    %269 = arith.mulf %266, %266 : vector<1x1xf32>
    %270 = arith.subf %268, %269 : vector<1x1xf32>
    %cst_67 = arith.constant 0.000000e+00 : f32
    %271 = vector.broadcast %cst_67 : f32 to vector<1x1xf32>
    %272 = arith.maximumf %270, %271 : vector<1x1xf32>
    %cst_68 = arith.constant 9.99999993E-9 : f32
    %273 = vector.broadcast %cst_68 : f32 to vector<1x1xf32>
    %274 = arith.addf %272, %273 : vector<1x1xf32>
    %275 = math.rsqrt %274 : vector<1x1xf32>
    %276 = vector.broadcast %275 : vector<1x1xf32> to vector<32x1xf32>
    %277 = arith.mulf %179, %276 : vector<32x1xf32>
    %278 = vector.broadcast %266 : vector<1x1xf32> to vector<32x1xf32>
    %279 = arith.mulf %278, %277 : vector<32x1xf32>
    %280 = arith.subf %180, %279 : vector<32x1xf32>
    %281 = vector.broadcast %277 : vector<32x1xf32> to vector<32x256xf32>
    %282 = arith.mulf %253, %281 : vector<32x256xf32>
    %283 = vector.broadcast %280 : vector<32x1xf32> to vector<32x256xf32>
    %284 = arith.addf %282, %283 : vector<32x256xf32>
    %c1_69 = arith.constant 1 : index
    %c0_70 = arith.constant 0 : index
    %c0_71 = arith.constant 0 : index
    %285 = vector.load %arg9[%c1_69, %c0_70, %c0_71] : memref<4x64x32xbf16, #tpu.memory_space<vmem>>, vector<1x64x32xbf16>
    %286 = vector.shape_cast %285 : vector<1x64x32xbf16> to vector<64x32xbf16>
    %287 = arith.truncf %284 : vector<32x256xf32> to vector<32x256xbf16>
    %cst_72 = arith.constant dense<0.000000e+00> : vector<64x256xf32>
    %288 = tpu.matmul %286, %287, %cst_72 {dimension_numbers = #tpu.dot_dimension_numbers<[1], [0], [0], [1], [0, 0, 1, 1], [], []>} : vector<64x32xbf16>, vector<32x256xbf16>, vector<64x256xf32> -> vector<64x256xf32>
    %289 = vector.broadcast %181 : vector<64x1xf32> to vector<64x256xf32>
    %290 = arith.addf %288, %289 : vector<64x256xf32>
    %291 = vector.extract_strided_slice %290 {offsets = [0, 0], sizes = [32, 256], strides = [1, 1]} : vector<64x256xf32> to vector<32x256xf32>
    %292 = arith.addf %171, %291 : vector<32x256xf32>
    %293 = vector.extract_strided_slice %290 {offsets = [32, 0], sizes = [32, 256], strides = [1, 1]} : vector<64x256xf32> to vector<32x256xf32>
    %294 = arith.addf %172, %293 : vector<32x256xf32>
    %c2 = arith.constant 2 : index
    %c0_73 = arith.constant 0 : index
    %c0_74 = arith.constant 0 : index
    %295 = vector.load %arg7[%c2, %c0_73, %c0_74] : memref<4x64x10xf32, #tpu.memory_space<vmem>>, vector<1x64x10xf32>
    %296 = vector.shape_cast %295 : vector<1x64x10xf32> to vector<64x10xf32>
    %297 = vector.extract_strided_slice %296 {offsets = [0, 0], sizes = [32, 1], strides = [1, 1]} : vector<64x10xf32> to vector<32x1xf32>
    %298 = vector.extract_strided_slice %296 {offsets = [0, 1], sizes = [32, 1], strides = [1, 1]} : vector<64x10xf32> to vector<32x1xf32>
    %299 = vector.extract_strided_slice %296 {offsets = [0, 2], sizes = [32, 1], strides = [1, 1]} : vector<64x10xf32> to vector<32x1xf32>
    %300 = vector.extract_strided_slice %296 {offsets = [0, 6], sizes = [32, 1], strides = [1, 1]} : vector<64x10xf32> to vector<32x1xf32>
    %301 = vector.extract_strided_slice %296 {offsets = [0, 7], sizes = [32, 1], strides = [1, 1]} : vector<64x10xf32> to vector<32x1xf32>
    %302 = vector.extract_strided_slice %296 {offsets = [0, 8], sizes = [32, 1], strides = [1, 1]} : vector<64x10xf32> to vector<32x1xf32>
    %303 = vector.extract_strided_slice %296 {offsets = [0, 9], sizes = [64, 1], strides = [1, 1]} : vector<64x10xf32> to vector<64x1xf32>
    %c2_75 = arith.constant 2 : index
    %c0_76 = arith.constant 0 : index
    %c0_77 = arith.constant 0 : index
    %304 = vector.load %arg8[%c2_75, %c0_76, %c0_77] : memref<4x32x32xbf16, #tpu.memory_space<vmem>>, vector<1x32x32xbf16>
    %305 = vector.shape_cast %304 : vector<1x32x32xbf16> to vector<32x32xbf16>
    %306 = arith.truncf %292 : vector<32x256xf32> to vector<32x256xbf16>
    %cst_78 = arith.constant dense<0.000000e+00> : vector<32x256xf32>
    %307 = tpu.matmul %305, %306, %cst_78 {dimension_numbers = #tpu.dot_dimension_numbers<[1], [0], [0], [1], [0, 0, 1, 1], [], []>} : vector<32x32xbf16>, vector<32x256xbf16>, vector<32x256xf32> -> vector<32x256xf32>
    %308 = vector.broadcast %297 : vector<32x1xf32> to vector<32x256xf32>
    %309 = arith.addf %307, %308 : vector<32x256xf32>
    %cst_79 = arith.constant 0.000000e+00 : f32
    %310 = vector.broadcast %cst_79 : f32 to vector<32x256xf32>
    %311 = arith.cmpf oge, %309, %310 : vector<32x256xf32>
    %c2_80 = arith.constant 2 : index
    %312 = memref.load %arg1[%c2_80] : memref<4xf32, #tpu.memory_space<smem>>
    %313 = vector.broadcast %312 : f32 to vector<32x256xf32>
    %314 = arith.mulf %313, %309 : vector<32x256xf32>
    %315 = arith.select %311, %309, %314 : vector<32x256xi1>, vector<32x256xf32>
    %316 = vector.shape_cast %315 : vector<32x256xf32> to vector<1x32x256xf32>
    %cst_81 = arith.constant dense<0.000000e+00> : vector<1xf32>
    %317 = vector.multi_reduction <add>, %316, %cst_81 [1, 2] : vector<1x32x256xf32> to vector<1xf32>
    %318 = vector.shape_cast %317 : vector<1xf32> to vector<1x1x1xf32>
    %319 = vector.extract %318[0, 0, 0] : f32 from vector<1x1x1xf32>
    %320 = vector.broadcast %319 : f32 to vector<1x1xf32>
    %321 = arith.mulf %315, %315 : vector<32x256xf32>
    %322 = vector.shape_cast %321 : vector<32x256xf32> to vector<1x32x256xf32>
    %cst_82 = arith.constant dense<0.000000e+00> : vector<1xf32>
    %323 = vector.multi_reduction <add>, %322, %cst_82 [1, 2] : vector<1x32x256xf32> to vector<1xf32>
    %324 = vector.shape_cast %323 : vector<1xf32> to vector<1x1x1xf32>
    %325 = vector.extract %324[0, 0, 0] : f32 from vector<1x1x1xf32>
    %326 = vector.broadcast %325 : f32 to vector<1x1xf32>
    %cst_83 = arith.constant 1.22070313E-4 : f32
    %327 = vector.broadcast %cst_83 : f32 to vector<1x1xf32>
    %328 = arith.mulf %320, %327 : vector<1x1xf32>
    %cst_84 = arith.constant 1.22070313E-4 : f32
    %329 = vector.broadcast %cst_84 : f32 to vector<1x1xf32>
    %330 = arith.mulf %326, %329 : vector<1x1xf32>
    %331 = arith.mulf %328, %328 : vector<1x1xf32>
    %332 = arith.subf %330, %331 : vector<1x1xf32>
    %cst_85 = arith.constant 0.000000e+00 : f32
    %333 = vector.broadcast %cst_85 : f32 to vector<1x1xf32>
    %334 = arith.maximumf %332, %333 : vector<1x1xf32>
    %cst_86 = arith.constant 9.99999993E-9 : f32
    %335 = vector.broadcast %cst_86 : f32 to vector<1x1xf32>
    %336 = arith.addf %334, %335 : vector<1x1xf32>
    %337 = math.rsqrt %336 : vector<1x1xf32>
    %338 = vector.broadcast %337 : vector<1x1xf32> to vector<32x1xf32>
    %339 = arith.mulf %298, %338 : vector<32x1xf32>
    %340 = vector.broadcast %328 : vector<1x1xf32> to vector<32x1xf32>
    %341 = arith.mulf %340, %339 : vector<32x1xf32>
    %342 = arith.subf %299, %341 : vector<32x1xf32>
    %343 = vector.broadcast %339 : vector<32x1xf32> to vector<32x256xf32>
    %344 = arith.mulf %315, %343 : vector<32x256xf32>
    %345 = vector.broadcast %342 : vector<32x1xf32> to vector<32x256xf32>
    %346 = arith.addf %344, %345 : vector<32x256xf32>
    %347 = vector.extract_strided_slice %296 {offsets = [0, 3], sizes = [32, 1], strides = [1, 1]} : vector<64x10xf32> to vector<32x1xf32>
    %c1_i32_87 = arith.constant 1 : i32
    %348 = tpu.dynamic_rotate %346 by %c1_i32_87 dim 1 : vector<32x256xf32>, i32 -> vector<32x256xf32>
    %cst_88 = arith.constant 0.000000e+00 : f32
    %349 = vector.shape_cast %2 : vector<1x256xi1> to vector<1x256xi1>
    %350 = vector.broadcast %349 : vector<1x256xi1> to vector<32x256xi1>
    %351 = vector.broadcast %cst_88 : f32 to vector<32x256xf32>
    %352 = arith.select %350, %348, %351 : vector<32x256xi1>, vector<32x256xf32>
    %353 = vector.broadcast %347 : vector<32x1xf32> to vector<32x256xf32>
    %354 = arith.mulf %353, %352 : vector<32x256xf32>
    %355 = vector.extract_strided_slice %296 {offsets = [0, 4], sizes = [32, 1], strides = [1, 1]} : vector<64x10xf32> to vector<32x1xf32>
    %356 = vector.broadcast %355 : vector<32x1xf32> to vector<32x256xf32>
    %357 = arith.mulf %356, %346 : vector<32x256xf32>
    %358 = arith.addf %354, %357 : vector<32x256xf32>
    %359 = vector.extract_strided_slice %296 {offsets = [0, 5], sizes = [32, 1], strides = [1, 1]} : vector<64x10xf32> to vector<32x1xf32>
    %c255_i32_89 = arith.constant 255 : i32
    %360 = tpu.dynamic_rotate %346 by %c255_i32_89 dim 1 : vector<32x256xf32>, i32 -> vector<32x256xf32>
    %cst_90 = arith.constant 0.000000e+00 : f32
    %361 = vector.shape_cast %4 : vector<1x256xi1> to vector<1x256xi1>
    %362 = vector.broadcast %361 : vector<1x256xi1> to vector<32x256xi1>
    %363 = vector.broadcast %cst_90 : f32 to vector<32x256xf32>
    %364 = arith.select %362, %360, %363 : vector<32x256xi1>, vector<32x256xf32>
    %365 = vector.broadcast %359 : vector<32x1xf32> to vector<32x256xf32>
    %366 = arith.mulf %365, %364 : vector<32x256xf32>
    %367 = arith.addf %358, %366 : vector<32x256xf32>
    %368 = vector.broadcast %300 : vector<32x1xf32> to vector<32x256xf32>
    %369 = arith.addf %367, %368 : vector<32x256xf32>
    %cst_91 = arith.constant 0.000000e+00 : f32
    %370 = vector.broadcast %cst_91 : f32 to vector<32x256xf32>
    %371 = arith.cmpf oge, %369, %370 : vector<32x256xf32>
    %c2_92 = arith.constant 2 : index
    %372 = memref.load %arg2[%c2_92] : memref<4xf32, #tpu.memory_space<smem>>
    %373 = vector.broadcast %372 : f32 to vector<32x256xf32>
    %374 = arith.mulf %373, %369 : vector<32x256xf32>
    %375 = arith.select %371, %369, %374 : vector<32x256xi1>, vector<32x256xf32>
    %376 = vector.shape_cast %375 : vector<32x256xf32> to vector<1x32x256xf32>
    %cst_93 = arith.constant dense<0.000000e+00> : vector<1xf32>
    %377 = vector.multi_reduction <add>, %376, %cst_93 [1, 2] : vector<1x32x256xf32> to vector<1xf32>
    %378 = vector.shape_cast %377 : vector<1xf32> to vector<1x1x1xf32>
    %379 = vector.extract %378[0, 0, 0] : f32 from vector<1x1x1xf32>
    %380 = vector.broadcast %379 : f32 to vector<1x1xf32>
    %381 = arith.mulf %375, %375 : vector<32x256xf32>
    %382 = vector.shape_cast %381 : vector<32x256xf32> to vector<1x32x256xf32>
    %cst_94 = arith.constant dense<0.000000e+00> : vector<1xf32>
    %383 = vector.multi_reduction <add>, %382, %cst_94 [1, 2] : vector<1x32x256xf32> to vector<1xf32>
    %384 = vector.shape_cast %383 : vector<1xf32> to vector<1x1x1xf32>
    %385 = vector.extract %384[0, 0, 0] : f32 from vector<1x1x1xf32>
    %386 = vector.broadcast %385 : f32 to vector<1x1xf32>
    %cst_95 = arith.constant 1.22070313E-4 : f32
    %387 = vector.broadcast %cst_95 : f32 to vector<1x1xf32>
    %388 = arith.mulf %380, %387 : vector<1x1xf32>
    %cst_96 = arith.constant 1.22070313E-4 : f32
    %389 = vector.broadcast %cst_96 : f32 to vector<1x1xf32>
    %390 = arith.mulf %386, %389 : vector<1x1xf32>
    %391 = arith.mulf %388, %388 : vector<1x1xf32>
    %392 = arith.subf %390, %391 : vector<1x1xf32>
    %cst_97 = arith.constant 0.000000e+00 : f32
    %393 = vector.broadcast %cst_97 : f32 to vector<1x1xf32>
    %394 = arith.maximumf %392, %393 : vector<1x1xf32>
    %cst_98 = arith.constant 9.99999993E-9 : f32
    %395 = vector.broadcast %cst_98 : f32 to vector<1x1xf32>
    %396 = arith.addf %394, %395 : vector<1x1xf32>
    %397 = math.rsqrt %396 : vector<1x1xf32>
    %398 = vector.broadcast %397 : vector<1x1xf32> to vector<32x1xf32>
    %399 = arith.mulf %301, %398 : vector<32x1xf32>
    %400 = vector.broadcast %388 : vector<1x1xf32> to vector<32x1xf32>
    %401 = arith.mulf %400, %399 : vector<32x1xf32>
    %402 = arith.subf %302, %401 : vector<32x1xf32>
    %403 = vector.broadcast %399 : vector<32x1xf32> to vector<32x256xf32>
    %404 = arith.mulf %375, %403 : vector<32x256xf32>
    %405 = vector.broadcast %402 : vector<32x1xf32> to vector<32x256xf32>
    %406 = arith.addf %404, %405 : vector<32x256xf32>
    %c2_99 = arith.constant 2 : index
    %c0_100 = arith.constant 0 : index
    %c0_101 = arith.constant 0 : index
    %407 = vector.load %arg9[%c2_99, %c0_100, %c0_101] : memref<4x64x32xbf16, #tpu.memory_space<vmem>>, vector<1x64x32xbf16>
    %408 = vector.shape_cast %407 : vector<1x64x32xbf16> to vector<64x32xbf16>
    %409 = arith.truncf %406 : vector<32x256xf32> to vector<32x256xbf16>
    %cst_102 = arith.constant dense<0.000000e+00> : vector<64x256xf32>
    %410 = tpu.matmul %408, %409, %cst_102 {dimension_numbers = #tpu.dot_dimension_numbers<[1], [0], [0], [1], [0, 0, 1, 1], [], []>} : vector<64x32xbf16>, vector<32x256xbf16>, vector<64x256xf32> -> vector<64x256xf32>
    %411 = vector.broadcast %303 : vector<64x1xf32> to vector<64x256xf32>
    %412 = arith.addf %410, %411 : vector<64x256xf32>
    %413 = vector.extract_strided_slice %412 {offsets = [0, 0], sizes = [32, 256], strides = [1, 1]} : vector<64x256xf32> to vector<32x256xf32>
    %414 = arith.addf %292, %413 : vector<32x256xf32>
    %415 = vector.extract_strided_slice %412 {offsets = [32, 0], sizes = [32, 256], strides = [1, 1]} : vector<64x256xf32> to vector<32x256xf32>
    %416 = arith.addf %294, %415 : vector<32x256xf32>
    %c3 = arith.constant 3 : index
    %c0_103 = arith.constant 0 : index
    %c0_104 = arith.constant 0 : index
    %417 = vector.load %arg7[%c3, %c0_103, %c0_104] : memref<4x64x10xf32, #tpu.memory_space<vmem>>, vector<1x64x10xf32>
    %418 = vector.shape_cast %417 : vector<1x64x10xf32> to vector<64x10xf32>
    %419 = vector.extract_strided_slice %418 {offsets = [0, 0], sizes = [32, 1], strides = [1, 1]} : vector<64x10xf32> to vector<32x1xf32>
    %420 = vector.extract_strided_slice %418 {offsets = [0, 1], sizes = [32, 1], strides = [1, 1]} : vector<64x10xf32> to vector<32x1xf32>
    %421 = vector.extract_strided_slice %418 {offsets = [0, 2], sizes = [32, 1], strides = [1, 1]} : vector<64x10xf32> to vector<32x1xf32>
    %422 = vector.extract_strided_slice %418 {offsets = [0, 6], sizes = [32, 1], strides = [1, 1]} : vector<64x10xf32> to vector<32x1xf32>
    %423 = vector.extract_strided_slice %418 {offsets = [0, 7], sizes = [32, 1], strides = [1, 1]} : vector<64x10xf32> to vector<32x1xf32>
    %424 = vector.extract_strided_slice %418 {offsets = [0, 8], sizes = [32, 1], strides = [1, 1]} : vector<64x10xf32> to vector<32x1xf32>
    %425 = vector.extract_strided_slice %418 {offsets = [0, 9], sizes = [64, 1], strides = [1, 1]} : vector<64x10xf32> to vector<64x1xf32>
    %c3_105 = arith.constant 3 : index
    %c0_106 = arith.constant 0 : index
    %c0_107 = arith.constant 0 : index
    %426 = vector.load %arg8[%c3_105, %c0_106, %c0_107] : memref<4x32x32xbf16, #tpu.memory_space<vmem>>, vector<1x32x32xbf16>
    %427 = vector.shape_cast %426 : vector<1x32x32xbf16> to vector<32x32xbf16>
    %428 = arith.truncf %414 : vector<32x256xf32> to vector<32x256xbf16>
    %cst_108 = arith.constant dense<0.000000e+00> : vector<32x256xf32>
    %429 = tpu.matmul %427, %428, %cst_108 {dimension_numbers = #tpu.dot_dimension_numbers<[1], [0], [0], [1], [0, 0, 1, 1], [], []>} : vector<32x32xbf16>, vector<32x256xbf16>, vector<32x256xf32> -> vector<32x256xf32>
    %430 = vector.broadcast %419 : vector<32x1xf32> to vector<32x256xf32>
    %431 = arith.addf %429, %430 : vector<32x256xf32>
    %cst_109 = arith.constant 0.000000e+00 : f32
    %432 = vector.broadcast %cst_109 : f32 to vector<32x256xf32>
    %433 = arith.cmpf oge, %431, %432 : vector<32x256xf32>
    %c3_110 = arith.constant 3 : index
    %434 = memref.load %arg1[%c3_110] : memref<4xf32, #tpu.memory_space<smem>>
    %435 = vector.broadcast %434 : f32 to vector<32x256xf32>
    %436 = arith.mulf %435, %431 : vector<32x256xf32>
    %437 = arith.select %433, %431, %436 : vector<32x256xi1>, vector<32x256xf32>
    %438 = vector.shape_cast %437 : vector<32x256xf32> to vector<1x32x256xf32>
    %cst_111 = arith.constant dense<0.000000e+00> : vector<1xf32>
    %439 = vector.multi_reduction <add>, %438, %cst_111 [1, 2] : vector<1x32x256xf32> to vector<1xf32>
    %440 = vector.shape_cast %439 : vector<1xf32> to vector<1x1x1xf32>
    %441 = vector.extract %440[0, 0, 0] : f32 from vector<1x1x1xf32>
    %442 = vector.broadcast %441 : f32 to vector<1x1xf32>
    %443 = arith.mulf %437, %437 : vector<32x256xf32>
    %444 = vector.shape_cast %443 : vector<32x256xf32> to vector<1x32x256xf32>
    %cst_112 = arith.constant dense<0.000000e+00> : vector<1xf32>
    %445 = vector.multi_reduction <add>, %444, %cst_112 [1, 2] : vector<1x32x256xf32> to vector<1xf32>
    %446 = vector.shape_cast %445 : vector<1xf32> to vector<1x1x1xf32>
    %447 = vector.extract %446[0, 0, 0] : f32 from vector<1x1x1xf32>
    %448 = vector.broadcast %447 : f32 to vector<1x1xf32>
    %cst_113 = arith.constant 1.22070313E-4 : f32
    %449 = vector.broadcast %cst_113 : f32 to vector<1x1xf32>
    %450 = arith.mulf %442, %449 : vector<1x1xf32>
    %cst_114 = arith.constant 1.22070313E-4 : f32
    %451 = vector.broadcast %cst_114 : f32 to vector<1x1xf32>
    %452 = arith.mulf %448, %451 : vector<1x1xf32>
    %453 = arith.mulf %450, %450 : vector<1x1xf32>
    %454 = arith.subf %452, %453 : vector<1x1xf32>
    %cst_115 = arith.constant 0.000000e+00 : f32
    %455 = vector.broadcast %cst_115 : f32 to vector<1x1xf32>
    %456 = arith.maximumf %454, %455 : vector<1x1xf32>
    %cst_116 = arith.constant 9.99999993E-9 : f32
    %457 = vector.broadcast %cst_116 : f32 to vector<1x1xf32>
    %458 = arith.addf %456, %457 : vector<1x1xf32>
    %459 = math.rsqrt %458 : vector<1x1xf32>
    %460 = vector.broadcast %459 : vector<1x1xf32> to vector<32x1xf32>
    %461 = arith.mulf %420, %460 : vector<32x1xf32>
    %462 = vector.broadcast %450 : vector<1x1xf32> to vector<32x1xf32>
    %463 = arith.mulf %462, %461 : vector<32x1xf32>
    %464 = arith.subf %421, %463 : vector<32x1xf32>
    %465 = vector.broadcast %461 : vector<32x1xf32> to vector<32x256xf32>
    %466 = arith.mulf %437, %465 : vector<32x256xf32>
    %467 = vector.broadcast %464 : vector<32x1xf32> to vector<32x256xf32>
    %468 = arith.addf %466, %467 : vector<32x256xf32>
    %469 = vector.extract_strided_slice %418 {offsets = [0, 3], sizes = [32, 1], strides = [1, 1]} : vector<64x10xf32> to vector<32x1xf32>
    %c2_i32_117 = arith.constant 2 : i32
    %470 = tpu.dynamic_rotate %468 by %c2_i32_117 dim 1 : vector<32x256xf32>, i32 -> vector<32x256xf32>
    %cst_118 = arith.constant 0.000000e+00 : f32
    %471 = vector.shape_cast %6 : vector<1x256xi1> to vector<1x256xi1>
    %472 = vector.broadcast %471 : vector<1x256xi1> to vector<32x256xi1>
    %473 = vector.broadcast %cst_118 : f32 to vector<32x256xf32>
    %474 = arith.select %472, %470, %473 : vector<32x256xi1>, vector<32x256xf32>
    %475 = vector.broadcast %469 : vector<32x1xf32> to vector<32x256xf32>
    %476 = arith.mulf %475, %474 : vector<32x256xf32>
    %477 = vector.extract_strided_slice %418 {offsets = [0, 4], sizes = [32, 1], strides = [1, 1]} : vector<64x10xf32> to vector<32x1xf32>
    %478 = vector.broadcast %477 : vector<32x1xf32> to vector<32x256xf32>
    %479 = arith.mulf %478, %468 : vector<32x256xf32>
    %480 = arith.addf %476, %479 : vector<32x256xf32>
    %481 = vector.extract_strided_slice %418 {offsets = [0, 5], sizes = [32, 1], strides = [1, 1]} : vector<64x10xf32> to vector<32x1xf32>
    %c254_i32_119 = arith.constant 254 : i32
    %482 = tpu.dynamic_rotate %468 by %c254_i32_119 dim 1 : vector<32x256xf32>, i32 -> vector<32x256xf32>
    %cst_120 = arith.constant 0.000000e+00 : f32
    %483 = vector.shape_cast %8 : vector<1x256xi1> to vector<1x256xi1>
    %484 = vector.broadcast %483 : vector<1x256xi1> to vector<32x256xi1>
    %485 = vector.broadcast %cst_120 : f32 to vector<32x256xf32>
    %486 = arith.select %484, %482, %485 : vector<32x256xi1>, vector<32x256xf32>
    %487 = vector.broadcast %481 : vector<32x1xf32> to vector<32x256xf32>
    %488 = arith.mulf %487, %486 : vector<32x256xf32>
    %489 = arith.addf %480, %488 : vector<32x256xf32>
    %490 = vector.broadcast %422 : vector<32x1xf32> to vector<32x256xf32>
    %491 = arith.addf %489, %490 : vector<32x256xf32>
    %cst_121 = arith.constant 0.000000e+00 : f32
    %492 = vector.broadcast %cst_121 : f32 to vector<32x256xf32>
    %493 = arith.cmpf oge, %491, %492 : vector<32x256xf32>
    %c3_122 = arith.constant 3 : index
    %494 = memref.load %arg2[%c3_122] : memref<4xf32, #tpu.memory_space<smem>>
    %495 = vector.broadcast %494 : f32 to vector<32x256xf32>
    %496 = arith.mulf %495, %491 : vector<32x256xf32>
    %497 = arith.select %493, %491, %496 : vector<32x256xi1>, vector<32x256xf32>
    %498 = vector.shape_cast %497 : vector<32x256xf32> to vector<1x32x256xf32>
    %cst_123 = arith.constant dense<0.000000e+00> : vector<1xf32>
    %499 = vector.multi_reduction <add>, %498, %cst_123 [1, 2] : vector<1x32x256xf32> to vector<1xf32>
    %500 = vector.shape_cast %499 : vector<1xf32> to vector<1x1x1xf32>
    %501 = vector.extract %500[0, 0, 0] : f32 from vector<1x1x1xf32>
    %502 = vector.broadcast %501 : f32 to vector<1x1xf32>
    %503 = arith.mulf %497, %497 : vector<32x256xf32>
    %504 = vector.shape_cast %503 : vector<32x256xf32> to vector<1x32x256xf32>
    %cst_124 = arith.constant dense<0.000000e+00> : vector<1xf32>
    %505 = vector.multi_reduction <add>, %504, %cst_124 [1, 2] : vector<1x32x256xf32> to vector<1xf32>
    %506 = vector.shape_cast %505 : vector<1xf32> to vector<1x1x1xf32>
    %507 = vector.extract %506[0, 0, 0] : f32 from vector<1x1x1xf32>
    %508 = vector.broadcast %507 : f32 to vector<1x1xf32>
    %cst_125 = arith.constant 1.22070313E-4 : f32
    %509 = vector.broadcast %cst_125 : f32 to vector<1x1xf32>
    %510 = arith.mulf %502, %509 : vector<1x1xf32>
    %cst_126 = arith.constant 1.22070313E-4 : f32
    %511 = vector.broadcast %cst_126 : f32 to vector<1x1xf32>
    %512 = arith.mulf %508, %511 : vector<1x1xf32>
    %513 = arith.mulf %510, %510 : vector<1x1xf32>
    %514 = arith.subf %512, %513 : vector<1x1xf32>
    %cst_127 = arith.constant 0.000000e+00 : f32
    %515 = vector.broadcast %cst_127 : f32 to vector<1x1xf32>
    %516 = arith.maximumf %514, %515 : vector<1x1xf32>
    %cst_128 = arith.constant 9.99999993E-9 : f32
    %517 = vector.broadcast %cst_128 : f32 to vector<1x1xf32>
    %518 = arith.addf %516, %517 : vector<1x1xf32>
    %519 = math.rsqrt %518 : vector<1x1xf32>
    %520 = vector.broadcast %519 : vector<1x1xf32> to vector<32x1xf32>
    %521 = arith.mulf %423, %520 : vector<32x1xf32>
    %522 = vector.broadcast %510 : vector<1x1xf32> to vector<32x1xf32>
    %523 = arith.mulf %522, %521 : vector<32x1xf32>
    %524 = arith.subf %424, %523 : vector<32x1xf32>
    %525 = vector.broadcast %521 : vector<32x1xf32> to vector<32x256xf32>
    %526 = arith.mulf %497, %525 : vector<32x256xf32>
    %527 = vector.broadcast %524 : vector<32x1xf32> to vector<32x256xf32>
    %528 = arith.addf %526, %527 : vector<32x256xf32>
    %c3_129 = arith.constant 3 : index
    %c0_130 = arith.constant 0 : index
    %c0_131 = arith.constant 0 : index
    %529 = vector.load %arg9[%c3_129, %c0_130, %c0_131] : memref<4x64x32xbf16, #tpu.memory_space<vmem>>, vector<1x64x32xbf16>
    %530 = vector.shape_cast %529 : vector<1x64x32xbf16> to vector<64x32xbf16>
    %531 = arith.truncf %528 : vector<32x256xf32> to vector<32x256xbf16>
    %cst_132 = arith.constant dense<0.000000e+00> : vector<64x256xf32>
    %532 = tpu.matmul %530, %531, %cst_132 {dimension_numbers = #tpu.dot_dimension_numbers<[1], [0], [0], [1], [0, 0, 1, 1], [], []>} : vector<64x32xbf16>, vector<32x256xbf16>, vector<64x256xf32> -> vector<64x256xf32>
    %533 = vector.broadcast %425 : vector<64x1xf32> to vector<64x256xf32>
    %534 = arith.addf %532, %533 : vector<64x256xf32>
    %535 = vector.extract_strided_slice %534 {offsets = [32, 0], sizes = [32, 256], strides = [1, 1]} : vector<64x256xf32> to vector<32x256xf32>
    %536 = arith.addf %416, %535 : vector<32x256xf32>
    %cst_133 = arith.constant 0.000000e+00 : f32
    %537 = vector.broadcast %cst_133 : f32 to vector<32x256xf32>
    %538 = arith.cmpf oge, %536, %537 : vector<32x256xf32>
    %c0_134 = arith.constant 0 : index
    %539 = memref.load %arg3[%c0_134] : memref<1xf32, #tpu.memory_space<smem>>
    %540 = vector.broadcast %539 : f32 to vector<32x256xf32>
    %541 = arith.mulf %540, %536 : vector<32x256xf32>
    %542 = arith.select %538, %536, %541 : vector<32x256xi1>, vector<32x256xf32>
    %c0_135 = arith.constant 0 : index
    %c0_136 = arith.constant 0 : index
    %543 = vector.load %arg10[%c0_135, %c0_136] : memref<16x32xbf16, #tpu.memory_space<vmem>>, vector<16x32xbf16>
    %544 = arith.truncf %542 : vector<32x256xf32> to vector<32x256xbf16>
    %cst_137 = arith.constant dense<0.000000e+00> : vector<16x256xf32>
    %545 = tpu.matmul %543, %544, %cst_137 {dimension_numbers = #tpu.dot_dimension_numbers<[1], [0], [0], [1], [0, 0, 1, 1], [], []>} : vector<16x32xbf16>, vector<32x256xbf16>, vector<16x256xf32> -> vector<16x256xf32>
    %546 = vector.broadcast %13 : vector<16x1xf32> to vector<16x256xf32>
    %547 = arith.addf %545, %546 : vector<16x256xf32>
    %c0_138 = arith.constant 0 : index
    %c0_139 = arith.constant 0 : index
    %c0_140 = arith.constant 0 : index
    %548 = vector.load %arg11[%c0_138, %c0_139, %c0_140] : memref<1x16x256xf32, #tpu.memory_space<vmem>>, vector<1x16x256xf32>
    %549 = vector.shape_cast %548 : vector<1x16x256xf32> to vector<16x256xf32>
    %550 = vector.shape_cast %547 : vector<16x256xf32> to vector<1x16x256xf32>
    tpu.vector_store %arg11[%c0_138, %c0_139, %c0_140], %550 {strides = array<i32>} : memref<1x16x256xf32, #tpu.memory_space<vmem>>, vector<1x16x256xf32>,
    return
  }
  func.func @transform_0(%arg0: i32) -> i32 {
    %c0_i32 = arith.constant 0 : i32
    %c0_i32_0 = arith.constant 0 : i32
    return %c0_i32 : i32
  }
  func.func @transform_1(%arg0: i32) -> i32 {
    %c0_i32 = arith.constant 0 : i32
    %c0_i32_0 = arith.constant 0 : i32
    return %c0_i32 : i32
  }
  func.func @transform_2(%arg0: i32) -> i32 {
    %c0_i32 = arith.constant 0 : i32
    %c0_i32_0 = arith.constant 0 : i32
    return %c0_i32 : i32
  }
  func.func @transform_3(%arg0: i32) -> (i32, i32, i32) {
    %c0_i32 = arith.constant 0 : i32
    %c0_i32_0 = arith.constant 0 : i32
    %c0_i32_1 = arith.constant 0 : i32
    return %arg0, %c0_i32, %c0_i32_0 : i32, i32, i32
  }
  func.func @transform_4(%arg0: i32) -> (i32, i32) {
    %c0_i32 = arith.constant 0 : i32
    %c0_i32_0 = arith.constant 0 : i32
    %c0_i32_1 = arith.constant 0 : i32
    return %c0_i32, %c0_i32_0 : i32, i32
  }
  func.func @transform_5(%arg0: i32) -> (i32, i32) {
    %c0_i32 = arith.constant 0 : i32
    %c0_i32_0 = arith.constant 0 : i32
    %c0_i32_1 = arith.constant 0 : i32
    return %c0_i32, %c0_i32_0 : i32, i32
  }
  func.func @transform_6(%arg0: i32) -> (i32, i32, i32) {
    %c0_i32 = arith.constant 0 : i32
    %c0_i32_0 = arith.constant 0 : i32
    %c0_i32_1 = arith.constant 0 : i32
    %c0_i32_2 = arith.constant 0 : i32
    return %c0_i32, %c0_i32_0, %c0_i32_1 : i32, i32, i32
  }
  func.func @transform_7(%arg0: i32) -> (i32, i32, i32) {
    %c0_i32 = arith.constant 0 : i32
    %c0_i32_0 = arith.constant 0 : i32
    %c0_i32_1 = arith.constant 0 : i32
    %c0_i32_2 = arith.constant 0 : i32
    return %c0_i32, %c0_i32_0, %c0_i32_1 : i32, i32, i32
  }
  func.func @transform_8(%arg0: i32) -> (i32, i32, i32) {
    %c0_i32 = arith.constant 0 : i32
    %c0_i32_0 = arith.constant 0 : i32
    %c0_i32_1 = arith.constant 0 : i32
    %c0_i32_2 = arith.constant 0 : i32
    return %c0_i32, %c0_i32_0, %c0_i32_1 : i32, i32, i32
  }
  func.func @transform_9(%arg0: i32) -> (i32, i32) {
    %c0_i32 = arith.constant 0 : i32
    %c0_i32_0 = arith.constant 0 : i32
    %c0_i32_1 = arith.constant 0 : i32
    return %c0_i32, %c0_i32_0 : i32, i32
  }
  func.func @transform_10(%arg0: i32) -> (i32, i32, i32) {
    %c0_i32 = arith.constant 0 : i32
    %c0_i32_0 = arith.constant 0 : i32
    %c0_i32_1 = arith.constant 0 : i32
    return %arg0, %c0_i32, %c0_i32_0 : i32, i32, i32
  }
}

</mosaic_0001>

<llo_original>
// kernel: tpu_custom_call.1
$region0: #{tpu_custom_call.1}
  #allocation0 [shape = 'u32[]', space=smem, size = 0x4, offset = 0x4, fixed_abs, tag = 'smem constant byte address 0x4 - core index']
  #allocation1 [shape = 'u32[144,128]{1,0:T(1,128)}', space=vmem, size = 0x12000, scoped, tag = 'internal scratch']
  #allocation2 [shape = 'f32[1]{0:T(128)S(6)}', space=smem, size = 0x200, scoped, tag = 'scoped memory for tpu_custom_call.1']
  %s0 = inlined_call_operand.hbm [shape: f32[4], index: 0, kind: input, shape index: {}]
  %s1 = inlined_call_operand.hbm [shape: f32[4], index: 1, kind: input, shape index: {}]
  %s2 = inlined_call_operand.<no memory space> [shape: f32[1], index: 2, kind: input, shape index: {}]
  %s3 = inlined_call_operand.hbm [shape: f32[2,16,256], index: 3, kind: input, shape index: {}]
  %s4 = inlined_call_operand.hbm [shape: f32[32,4], index: 4, kind: input, shape index: {}]
  %s5 = inlined_call_operand.hbm [shape: bf16[32,16], index: 5, kind: input, shape index: {}]
  %s6 = inlined_call_operand.hbm [shape: f32[4,64,10], index: 6, kind: input, shape index: {}]
  %s7 = inlined_call_operand.hbm [shape: bf16[4,32,32], index: 7, kind: input, shape index: {}]
  %s8 = inlined_call_operand.hbm [shape: bf16[4,64,32], index: 8, kind: input, shape index: {}]
  %s9 = inlined_call_operand.hbm [shape: bf16[16,32], index: 9, kind: input, shape index: {}]
  %s10 = inlined_call_operand.hbm [shape: f32[2,16,256], index: 10, kind: output, shape index: {}]
  %s11 = sld [smem:[#allocation0]]
  $region109: #{tpu_custom_call.1} parent=0
    _
  %s13 = ssub.s32 1, %s11
  %s14 = scalar_select 0, %s13, %s11
  %15 = sst [smem:[#allocation2]] %s2
  $region1: #{tpu_custom_call.1} parent=0
    #allocation3 [shape = 'u8[512]{0}', space=smem, size = 0x200, scoped, tag = 'input window, operand 0, single buffered']
    #allocation4 [shape = 's32[2]{0}', space=sflag, size = 0x8, scoped, tag = 'scoped memory for tpu_custom_call.1']
    #allocation5 [shape = 's32[2]{0}', space=sflag, size = 0x8, scoped, tag = 'scoped memory for tpu_custom_call.1']
    #allocation6 [shape = 's32[2]{0}', space=sflag, size = 0x8, scoped, tag = 'scoped memory for tpu_custom_call.1']
    #allocation7 [shape = 'u8[512]{0}', space=smem, size = 0x200, scoped, tag = 'input window, operand 1, single buffered']
    #allocation8 [shape = 's32[1]{0}', space=sflag, size = 0x4, scoped, tag = 'scoped memory for tpu_custom_call.1']
    #allocation9 [shape = 'u8[32768]{0}', space=vmem, size = 0x8000, scoped, tag = 'input window, operand 3']
    #allocation10 [shape = 'u8[16384]{0}', space=vmem, size = 0x4000, scoped, tag = 'input window, operand 4, single buffered']
    #allocation11 [shape = 's32[1]{0}', space=sflag, size = 0x4, scoped, tag = 'scoped memory for tpu_custom_call.1']
    #allocation12 [shape = 'u8[8192]{0}', space=vmem, size = 0x2000, scoped, tag = 'input window, operand 5, single buffered']
    #allocation13 [shape = 'u8[131072]{0}', space=vmem, size = 0x20000, scoped, tag = 'input window, operand 6, single buffered']
    #allocation14 [shape = 's32[1]{0}', space=sflag, size = 0x4, scoped, tag = 'scoped memory for tpu_custom_call.1']
    #allocation15 [shape = 'u8[32768]{0}', space=vmem, size = 0x8000, scoped, tag = 'input window, operand 7, single buffered']
    #allocation16 [shape = 'u8[65536]{0}', space=vmem, size = 0x10000, scoped, tag = 'input window, operand 8, single buffered']
    #allocation17 [shape = 's32[1]{0}', space=sflag, size = 0x4, scoped, tag = 'scoped memory for tpu_custom_call.1']
    #allocation18 [shape = 'u8[4096]{0}', space=vmem, size = 0x1000, scoped, tag = 'input window, operand 9, single buffered']
    #allocation19 [shape = 'u8[32768]{0}', space=vmem, size = 0x8000, scoped, tag = 'output window, operand 0']
    %16 = vsyncpa [#allocation6], 0
    %17 = vsyncpa [#allocation8], 0
    %18 = vsyncpa [#allocation4], 0
    %s19 = scalar_lea.sflag [#allocation4], 1
    %20 = vsyncpa %s19, 0
    %21 = vsyncpa [#allocation11], 0
    %22 = vsyncpa [#allocation14], 0
    %23 = vsyncpa [#allocation17], 0
    %24 = vsyncpa [#allocation5], 0
    %s25 = scalar_lea.sflag [#allocation5], 1
    %26 = vsyncpa %s25, 0
    loop: start=0, step=1, limit=4
    $region2: #{tpu_custom_call.1} parent=1 // loop_pre_header
      _
    $region3: #{tpu_custom_call.1} parent=1 // loop_header
      %s28 = sphi 0, %s32
      %p29 = scmp.ge.s32.totalorder %s28, 4
      %s36 = sphi 0, %s36
      %s38 = sphi 0, %s36
      %s39 = sphi 0, %s38
      %s53 = sphi 0, %s39
      %s57 = sphi 0, %s57
      %s59 = sphi 0, %s57
      %s60 = sphi 0, %s59
      %s74 = sphi 0, %s60
      %s78 = sphi 0, %s78
      %s80 = sphi 0, %s78
      %s81 = sphi 0, %s80
      %s95 = sphi 0, %s81
      %s101 = sphi 0, %s103
      %s104 = sphi 0, %s101
      %s105 = sphi 0, %s104
      %s121 = sphi 0, %s105
      %s125 = sphi 0, %s125
      %s127 = sphi 0, %s125
      %s128 = sphi 0, %s127
      %s142 = sphi 0, %s128
      %s146 = sphi 0, %s146
      %s148 = sphi 0, %s146
      %s149 = sphi 0, %s148
      %s163 = sphi 0, %s149
      %s167 = sphi 0, %s167
      %s169 = sphi 0, %s167
      %s170 = sphi 0, %s169
      %s184 = sphi 0, %s170
      %s188 = sphi 0, %s188
      %s190 = sphi 0, %s188
      %s191 = sphi 0, %s190
      %s205 = sphi 0, %s191
      %s209 = sphi 0, %s209
      %s211 = sphi 0, %s209
      %s212 = sphi 0, %s211
      %s226 = sphi 0, %s212
      %s230 = sphi 0, %s230
      %s232 = sphi 0, %s230
      %s233 = sphi 0, %s232
      %s247 = sphi 0, %s233
      %s253 = sphi 0, %s255
      %s256 = sphi 0, %s253
      %s257 = sphi 0, %s256
      %s273 = sphi 0, %s257
    $region4: #{tpu_custom_call.1} parent=1 // loop_header_branch
      %31 = sbr.rel (%p29) target = $region8
    $region5: #{tpu_custom_call.1} parent=1 // loop_body
      %s33 = ssub.s32 %s28, 1
      %s34 = ssub.s32 %s28, 2
      %s35 = sadd.s32 %s28, 1
      %s37 = sadd.s32 %s36, 1
      %p40 = scmp.eq.s32.totalorder %s28, 1
      %p41 = scmp.ne.s32.totalorder %s36, %s38
      %p42 = scmp.eq.s32.totalorder %s28, 0
      %p43 = por %p41, %p42
      %p44 = scmp.ne.s32.totalorder %s36, %s38
      %p45 = scmp.eq.s32.totalorder %s33, 1
      %p46 = por %p44, %p45
      %p47 = scmp.ne.s32.totalorder %s38, %s39
      %p48 = scmp.eq.s32.totalorder %s33, 0
      %p49 = por %p47, %p48
      %p50 = scmp.ne.s32.totalorder %s38, %s39
      %p51 = scmp.eq.s32.totalorder %s34, 1
      %p52 = por %p50, %p51
      %p54 = scmp.ne.s32.totalorder %s39, %s53
      %p55 = scmp.eq.s32.totalorder %s34, 0
      %p56 = por %p54, %p55
      %s58 = sadd.s32 %s57, 1
      %p61 = scmp.eq.s32.totalorder %s28, 1
      %p62 = scmp.ne.s32.totalorder %s57, %s59
      %p63 = scmp.eq.s32.totalorder %s28, 0
      %p64 = por %p62, %p63
      %p65 = scmp.ne.s32.totalorder %s57, %s59
      %p66 = scmp.eq.s32.totalorder %s33, 1
      %p67 = por %p65, %p66
      %p68 = scmp.ne.s32.totalorder %s59, %s60
      %p69 = scmp.eq.s32.totalorder %s33, 0
      %p70 = por %p68, %p69
      %p71 = scmp.ne.s32.totalorder %s59, %s60
      %p72 = scmp.eq.s32.totalorder %s34, 1
      %p73 = por %p71, %p72
      %p75 = scmp.ne.s32.totalorder %s60, %s74
      %p76 = scmp.eq.s32.totalorder %s34, 0
      %p77 = por %p75, %p76
      %s79 = sadd.s32 %s78, 1
      %p82 = scmp.eq.s32.totalorder %s28, 1
      %p83 = scmp.ne.s32.totalorder %s78, %s80
      %p84 = scmp.eq.s32.totalorder %s28, 0
      %p85 = por %p83, %p84
      %p86 = scmp.ne.s32.totalorder %s78, %s80
      %p87 = scmp.eq.s32.totalorder %s33, 1
      %p88 = por %p86, %p87
      %p89 = scmp.ne.s32.totalorder %s80, %s81
      %p90 = scmp.eq.s32.totalorder %s33, 0
      %p91 = por %p89, %p90
      %p92 = scmp.ne.s32.totalorder %s80, %s81
      %p93 = scmp.eq.s32.totalorder %s34, 1
      %p94 = por %p92, %p93
      %p96 = scmp.ne.s32.totalorder %s81, %s95
      %p97 = scmp.eq.s32.totalorder %s34, 0
      %p98 = por %p96, %p97
      %s99 = ssub.s32 %s28, %s35
      %p100 = scmp.eq.s32.totalorder %s99, 0
      %s102 = sadd.s32 %s101, 1
      %s103 = scalar_select %p100, %s101, %s102
      %p106 = pneg %p100
      %p107 = scmp.eq.s32.totalorder %s28, 1
      %p108 = por %p106, %p107
      %p109 = scmp.ne.s32.totalorder %s101, %s104
      %p110 = scmp.eq.s32.totalorder %s28, 0
      %p111 = por %p109, %p110
      %p112 = scmp.ne.s32.totalorder %s101, %s104
      %p113 = scmp.eq.s32.totalorder %s33, 1
      %p114 = por %p112, %p113
      %p115 = scmp.ne.s32.totalorder %s104, %s105
      %p116 = scmp.eq.s32.totalorder %s33, 0
      %p117 = por %p115, %p116
      %p118 = scmp.ne.s32.totalorder %s104, %s105
      %p119 = scmp.eq.s32.totalorder %s34, 1
      %p120 = por %p118, %p119
      %p122 = scmp.ne.s32.totalorder %s105, %s121
      %p123 = scmp.eq.s32.totalorder %s34, 0
      %p124 = por %p122, %p123
      %s126 = sadd.s32 %s125, 1
      %p129 = scmp.eq.s32.totalorder %s28, 1
      %p130 = scmp.ne.s32.totalorder %s125, %s127
      %p131 = scmp.eq.s32.totalorder %s28, 0
      %p132 = por %p130, %p131
      %p133 = scmp.ne.s32.totalorder %s125, %s127
      %p134 = scmp.eq.s32.totalorder %s33, 1
      %p135 = por %p133, %p134
      %p136 = scmp.ne.s32.totalorder %s127, %s128
      %p137 = scmp.eq.s32.totalorder %s33, 0
      %p138 = por %p136, %p137
      %p139 = scmp.ne.s32.totalorder %s127, %s128
      %p140 = scmp.eq.s32.totalorder %s34, 1
      %p141 = por %p139, %p140
      %p143 = scmp.ne.s32.totalorder %s128, %s142
      %p144 = scmp.eq.s32.totalorder %s34, 0
      %p145 = por %p143, %p144
      %s147 = sadd.s32 %s146, 1
      %p150 = scmp.eq.s32.totalorder %s28, 1
      %p151 = scmp.ne.s32.totalorder %s146, %s148
      %p152 = scmp.eq.s32.totalorder %s28, 0
      %p153 = por %p151, %p152
      %p154 = scmp.ne.s32.totalorder %s146, %s148
      %p155 = scmp.eq.s32.totalorder %s33, 1
      %p156 = por %p154, %p155
      %p157 = scmp.ne.s32.totalorder %s148, %s149
      %p158 = scmp.eq.s32.totalorder %s33, 0
      %p159 = por %p157, %p158
      %p160 = scmp.ne.s32.totalorder %s148, %s149
      %p161 = scmp.eq.s32.totalorder %s34, 1
      %p162 = por %p160, %p161
      %p164 = scmp.ne.s32.totalorder %s149, %s163
      %p165 = scmp.eq.s32.totalorder %s34, 0
      %p166 = por %p164, %p165
      %s168 = sadd.s32 %s167, 1
      %p171 = scmp.eq.s32.totalorder %s28, 1
      %p172 = scmp.ne.s32.totalorder %s167, %s169
      %p173 = scmp.eq.s32.totalorder %s28, 0
      %p174 = por %p172, %p173
      %p175 = scmp.ne.s32.totalorder %s167, %s169
      %p176 = scmp.eq.s32.totalorder %s33, 1
      %p177 = por %p175, %p176
      %p178 = scmp.ne.s32.totalorder %s169, %s170
      %p179 = scmp.eq.s32.totalorder %s33, 0
      %p180 = por %p178, %p179
      %p181 = scmp.ne.s32.totalorder %s169, %s170
      %p182 = scmp.eq.s32.totalorder %s34, 1
      %p183 = por %p181, %p182
      %p185 = scmp.ne.s32.totalorder %s170, %s184
      %p186 = scmp.eq.s32.totalorder %s34, 0
      %p187 = por %p185, %p186
      %s189 = sadd.s32 %s188, 1
      %p192 = scmp.eq.s32.totalorder %s28, 1
      %p193 = scmp.ne.s32.totalorder %s188, %s190
      %p194 = scmp.eq.s32.totalorder %s28, 0
      %p195 = por %p193, %p194
      %p196 = scmp.ne.s32.totalorder %s188, %s190
      %p197 = scmp.eq.s32.totalorder %s33, 1
      %p198 = por %p196, %p197
      %p199 = scmp.ne.s32.totalorder %s190, %s191
      %p200 = scmp.eq.s32.totalorder %s33, 0
      %p201 = por %p199, %p200
      %p202 = scmp.ne.s32.totalorder %s190, %s191
      %p203 = scmp.eq.s32.totalorder %s34, 1
      %p204 = por %p202, %p203
      %p206 = scmp.ne.s32.totalorder %s191, %s205
      %p207 = scmp.eq.s32.totalorder %s34, 0
      %p208 = por %p206, %p207
      %s210 = sadd.s32 %s209, 1
      %p213 = scmp.eq.s32.totalorder %s28, 1
      %p214 = scmp.ne.s32.totalorder %s209, %s211
      %p215 = scmp.eq.s32.totalorder %s28, 0
      %p216 = por %p214, %p215
      %p217 = scmp.ne.s32.totalorder %s209, %s211
      %p218 = scmp.eq.s32.totalorder %s33, 1
      %p219 = por %p217, %p218
      %p220 = scmp.ne.s32.totalorder %s211, %s212
      %p221 = scmp.eq.s32.totalorder %s33, 0
      %p222 = por %p220, %p221
      %p223 = scmp.ne.s32.totalorder %s211, %s212
      %p224 = scmp.eq.s32.totalorder %s34, 1
      %p225 = por %p223, %p224
      %p227 = scmp.ne.s32.totalorder %s212, %s226
      %p228 = scmp.eq.s32.totalorder %s34, 0
      %p229 = por %p227, %p228
      %s231 = sadd.s32 %s230, 1
      %p234 = scmp.eq.s32.totalorder %s28, 1
      %p235 = scmp.ne.s32.totalorder %s230, %s232
      %p236 = scmp.eq.s32.totalorder %s28, 0
      %p237 = por %p235, %p236
      %p238 = scmp.ne.s32.totalorder %s230, %s232
      %p239 = scmp.eq.s32.totalorder %s33, 1
      %p240 = por %p238, %p239
      %p241 = scmp.ne.s32.totalorder %s232, %s233
      %p242 = scmp.eq.s32.totalorder %s33, 0
      %p243 = por %p241, %p242
      %p244 = scmp.ne.s32.totalorder %s232, %s233
      %p245 = scmp.eq.s32.totalorder %s34, 1
      %p246 = por %p244, %p245
      %p248 = scmp.ne.s32.totalorder %s233, %s247
      %p249 = scmp.eq.s32.totalorder %s34, 0
      %p250 = por %p248, %p249
      %s251 = ssub.s32 %s28, %s35
      %p252 = scmp.eq.s32.totalorder %s251, 0
      %s254 = sadd.s32 %s253, 1
      %s255 = scalar_select %p252, %s253, %s254
      %p258 = pneg %p252
      %p259 = scmp.eq.s32.totalorder %s28, 1
      %p260 = por %p258, %p259
      %p261 = scmp.ne.s32.totalorder %s253, %s256
      %p262 = scmp.eq.s32.totalorder %s28, 0
      %p263 = por %p261, %p262
      %p264 = scmp.ne.s32.totalorder %s253, %s256
      %p265 = scmp.eq.s32.totalorder %s33, 1
      %p266 = por %p264, %p265
      %p267 = scmp.ne.s32.totalorder %s256, %s257
      %p268 = scmp.eq.s32.totalorder %s33, 0
      %p269 = por %p267, %p268
      %p270 = scmp.ne.s32.totalorder %s256, %s257
      %p271 = scmp.eq.s32.totalorder %s34, 1
      %p272 = por %p270, %p271
      %p274 = scmp.ne.s32.totalorder %s257, %s273
      %p275 = scmp.eq.s32.totalorder %s34, 0
      %p276 = por %p274, %p275
      %p277 = scmp.le.s32.totalorder 1, %s28
      %p278 = scmp.lt.s32.totalorder %s28, 3
      %p279 = pnand %p277, %p278
      %p280 = pneg %p279
      // Predicated region
      $region9: #{tpu_custom_call.1} parent=5 // pred_check
        _
      $region10: #{tpu_custom_call.1} parent=5 // pred_check_branch
        %282 = sbr.rel (%p279) target = $region12
      $region11: #{tpu_custom_call.1} parent=5 // pred_region
        %s283 = ssub.s32 %s28, 1
        // Predicated region
        $region13: #{tpu_custom_call.1} parent=11 // pred_check
          %p284 = pneg %p49
        $region14: #{tpu_custom_call.1} parent=11 // pred_check_branch
          %286 = sbr.rel (%p284) target = $region16
        $region15: #{tpu_custom_call.1} parent=11 // pred_region
          %s288 = ssub.s32 16, 16
          %289 = vsyncadd [#allocation6], %s288
          %292 = dma.hbm_to_smem %s0, 16, [#allocation3], [#allocation6]
        $region16: #{tpu_custom_call.1} parent=11 // pred_fallthru
          _
        // Predicated region
        $region17: #{tpu_custom_call.1} parent=11 // pred_check
          %p293 = pneg %p70
        $region18: #{tpu_custom_call.1} parent=11 // pred_check_branch
          %295 = sbr.rel (%p293) target = $region20
        $region19: #{tpu_custom_call.1} parent=11 // pred_region
          %s297 = ssub.s32 16, 16
          %298 = vsyncadd [#allocation8], %s297
          %301 = dma.hbm_to_smem %s1, 16, [#allocation7], [#allocation8]
        $region20: #{tpu_custom_call.1} parent=11 // pred_fallthru
          _
        // Predicated region
        $region21: #{tpu_custom_call.1} parent=11 // pred_check
          %p302 = pneg %p91
        $region22: #{tpu_custom_call.1} parent=11 // pred_check_branch
          %304 = sbr.rel (%p302) target = $region24
        $region23: #{tpu_custom_call.1} parent=11 // pred_region
          _
        $region24: #{tpu_custom_call.1} parent=11 // pred_fallthru
          _
        // Predicated region
        $region25: #{tpu_custom_call.1} parent=11 // pred_check
          %p305 = pneg %p138
        $region26: #{tpu_custom_call.1} parent=11 // pred_check_branch
          %307 = sbr.rel (%p305) target = $region28
        $region27: #{tpu_custom_call.1} parent=11 // pred_region
          %s309 = ssub.s32 512, 512
          %310 = vsyncadd [#allocation11], %s309
          %s311 = sshll.u32 [#allocation10], 4
          %s312 = int_to_ptr.vmem [resolvable:$true] %s311
          %317 = dma.hbm_to_vmem [thread:$0]  %s4, 512, %s312, [#allocation11], 128, 128, 8
        $region28: #{tpu_custom_call.1} parent=11 // pred_fallthru
          _
        // Predicated region
        $region29: #{tpu_custom_call.1} parent=11 // pred_check
          %p318 = pneg %p159
        $region30: #{tpu_custom_call.1} parent=11 // pred_check_branch
          %320 = sbr.rel (%p318) target = $region32
        $region31: #{tpu_custom_call.1} parent=11 // pred_region
          %s322 = ssub.s32 256, 256
          %323 = vsyncadd [#allocation11], %s322
          %s324 = sshll.u32 [#allocation12], 4
          %s325 = int_to_ptr.vmem [resolvable:$true] %s324
          %330 = dma.hbm_to_vmem [thread:$0]  %s5, 256, %s325, [#allocation11], 64, 64, 4
        $region32: #{tpu_custom_call.1} parent=11 // pred_fallthru
          _
        // Predicated region
        $region33: #{tpu_custom_call.1} parent=11 // pred_check
          %p331 = pneg %p180
        $region34: #{tpu_custom_call.1} parent=11 // pred_check_branch
          %333 = sbr.rel (%p331) target = $region36
        $region35: #{tpu_custom_call.1} parent=11 // pred_region
          %s335 = ssub.s32 4096, 4096
          %336 = vsyncadd [#allocation14], %s335
          %s337 = sshll.u32 [#allocation13], 4
          %s338 = int_to_ptr.vmem [resolvable:$true] %s337
          %343 = dma.hbm_to_vmem [thread:$0]  %s6, 4096, %s338, [#allocation14], 128, 128, 8
        $region36: #{tpu_custom_call.1} parent=11 // pred_fallthru
          _
        // Predicated region
        $region37: #{tpu_custom_call.1} parent=11 // pred_check
          %p344 = pneg %p201
        $region38: #{tpu_custom_call.1} parent=11 // pred_check_branch
          %346 = sbr.rel (%p344) target = $region40
        $region39: #{tpu_custom_call.1} parent=11 // pred_region
          %s348 = ssub.s32 1024, 1024
          %349 = vsyncadd [#allocation14], %s348
          %s350 = sshll.u32 [#allocation15], 4
          %s351 = int_to_ptr.vmem [resolvable:$true] %s350
          %356 = dma.hbm_to_vmem [thread:$0]  %s7, 1024, %s351, [#allocation14], 64, 64, 4
        $region40: #{tpu_custom_call.1} parent=11 // pred_fallthru
          _
        // Predicated region
        $region41: #{tpu_custom_call.1} parent=11 // pred_check
          %p357 = pneg %p222
        $region42: #{tpu_custom_call.1} parent=11 // pred_check_branch
          %359 = sbr.rel (%p357) target = $region44
        $region43: #{tpu_custom_call.1} parent=11 // pred_region
          %s361 = ssub.s32 2048, 2048
          %362 = vsyncadd [#allocation17], %s361
          %s363 = sshll.u32 [#allocation16], 4
          %s364 = int_to_ptr.vmem [resolvable:$true] %s363
          %369 = dma.hbm_to_vmem [thread:$0]  %s8, 2048, %s364, [#allocation17], 64, 64, 4
        $region44: #{tpu_custom_call.1} parent=11 // pred_fallthru
          _
        // Predicated region
        $region45: #{tpu_custom_call.1} parent=11 // pred_check
          %p370 = pneg %p243
        $region46: #{tpu_custom_call.1} parent=11 // pred_check_branch
          %372 = sbr.rel (%p370) target = $region48
        $region47: #{tpu_custom_call.1} parent=11 // pred_region
          %s374 = ssub.s32 128, 128
          %375 = vsyncadd [#allocation17], %s374
          %s376 = sshll.u32 [#allocation18], 4
          %s377 = int_to_ptr.vmem [resolvable:$true] %s376
          %382 = dma.hbm_to_vmem [thread:$0]  %s9, 128, %s377, [#allocation17], 64, 64, 4
        $region48: #{tpu_custom_call.1} parent=11 // pred_fallthru
          _
      $region12: #{tpu_custom_call.1} parent=5 // pred_fallthru
        _
      %p383 = scmp.lt.s32.totalorder %s28, 2
      // Predicated region
      $region49: #{tpu_custom_call.1} parent=5 // pred_check
        %p384 = pneg %p383
      $region50: #{tpu_custom_call.1} parent=5 // pred_check_branch
        %386 = sbr.rel (%p384) target = $region52
      $region51: #{tpu_custom_call.1} parent=5 // pred_region
        // Predicated region
        $region53: #{tpu_custom_call.1} parent=51 // pred_check
          %p387 = pneg %p111
        $region54: #{tpu_custom_call.1} parent=51 // pred_check_branch
          %389 = sbr.rel (%p387) target = $region56
        $region55: #{tpu_custom_call.1} parent=51 // pred_region
          %s390 = sand.u32 %s101, 1
          %s391 = scalar_lea.sflag [#allocation4], %s390
          %s392 = sand.u32 %s101, 1
          %s393 = smul.addr %s392, 32
          %s394 = scalar_lea.vmem [#allocation9], %s393
          %s396 = ssub.s32 512, 512
          %397 = vsyncadd %s391, %s396
          %s398 = smul.addr %s28, 4
          %s399 = smul.addr %s398, 128
          %s400 = scalar_lea.hbm %s3, %s399
          %s401 = sshll.u32 %s394, 4
          %s402 = int_to_ptr.vmem [resolvable:$true] %s401
          %407 = dma.hbm_to_vmem [thread:$0]  %s400, 512, %s402, %s391, 256, 256, 16
        $region56: #{tpu_custom_call.1} parent=51 // pred_fallthru
          _
      $region52: #{tpu_custom_call.1} parent=5 // pred_fallthru
        _
      %p408 = scmp.le.s32.totalorder 1, %s28
      %p409 = scmp.lt.s32.totalorder %s28, 3
      %p410 = pnand %p408, %p409
      %p411 = pneg %p410
      // Predicated region
      $region57: #{tpu_custom_call.1} parent=5 // pred_check
        _
      $region58: #{tpu_custom_call.1} parent=5 // pred_check_branch
        %413 = sbr.rel (%p410) target = $region60
      $region59: #{tpu_custom_call.1} parent=5 // pred_region
        %s414 = ssub.s32 %s28, 1
        // Predicated region
        $region61: #{tpu_custom_call.1} parent=59 // pred_check
          %p415 = pneg %p49
        $region62: #{tpu_custom_call.1} parent=59 // pred_check_branch
          %417 = sbr.rel (%p415) target = $region64
        $region63: #{tpu_custom_call.1} parent=59 // pred_region
          %418 = dma.done [#allocation6], 16
        $region64: #{tpu_custom_call.1} parent=59 // pred_fallthru
          _
        // Predicated region
        $region65: #{tpu_custom_call.1} parent=59 // pred_check
          %p419 = pneg %p70
        $region66: #{tpu_custom_call.1} parent=59 // pred_check_branch
          %421 = sbr.rel (%p419) target = $region68
        $region67: #{tpu_custom_call.1} parent=59 // pred_region
          %422 = dma.done [#allocation8], 16
        $region68: #{tpu_custom_call.1} parent=59 // pred_fallthru
          _
        %s423 = sand.u32 %s104, 1
        %s424 = scalar_lea.sflag [#allocation4], %s423
        %s425 = sand.u32 %s104, 1
        %s426 = smul.addr %s425, 32
        %s427 = scalar_lea.vmem [#allocation9], %s426
        // Predicated region
        $region69: #{tpu_custom_call.1} parent=59 // pred_check
          %p428 = pneg %p117
        $region70: #{tpu_custom_call.1} parent=59 // pred_check_branch
          %430 = sbr.rel (%p428) target = $region72
        $region71: #{tpu_custom_call.1} parent=59 // pred_region
          %431 = dma.done %s424, 512
        $region72: #{tpu_custom_call.1} parent=59 // pred_fallthru
          _
        // Predicated region
        $region73: #{tpu_custom_call.1} parent=59 // pred_check
          %p432 = pneg %p138
        $region74: #{tpu_custom_call.1} parent=59 // pred_check_branch
          %434 = sbr.rel (%p432) target = $region76
        $region75: #{tpu_custom_call.1} parent=59 // pred_region
          %435 = dma.done [#allocation11], 512
        $region76: #{tpu_custom_call.1} parent=59 // pred_fallthru
          _
        // Predicated region
        $region77: #{tpu_custom_call.1} parent=59 // pred_check
          %p436 = pneg %p159
        $region78: #{tpu_custom_call.1} parent=59 // pred_check_branch
          %438 = sbr.rel (%p436) target = $region80
        $region79: #{tpu_custom_call.1} parent=59 // pred_region
          %439 = dma.done [#allocation11], 256
        $region80: #{tpu_custom_call.1} parent=59 // pred_fallthru
          _
        // Predicated region
        $region81: #{tpu_custom_call.1} parent=59 // pred_check
          %p440 = pneg %p180
        $region82: #{tpu_custom_call.1} parent=59 // pred_check_branch
          %442 = sbr.rel (%p440) target = $region84
        $region83: #{tpu_custom_call.1} parent=59 // pred_region
          %443 = dma.done [#allocation14], 4096
        $region84: #{tpu_custom_call.1} parent=59 // pred_fallthru
          _
        // Predicated region
        $region85: #{tpu_custom_call.1} parent=59 // pred_check
          %p444 = pneg %p201
        $region86: #{tpu_custom_call.1} parent=59 // pred_check_branch
          %446 = sbr.rel (%p444) target = $region88
        $region87: #{tpu_custom_call.1} parent=59 // pred_region
          %447 = dma.done [#allocation14], 1024
        $region88: #{tpu_custom_call.1} parent=59 // pred_fallthru
          _
        // Predicated region
        $region89: #{tpu_custom_call.1} parent=59 // pred_check
          %p448 = pneg %p222
        $region90: #{tpu_custom_call.1} parent=59 // pred_check_branch
          %450 = sbr.rel (%p448) target = $region92
        $region91: #{tpu_custom_call.1} parent=59 // pred_region
          %451 = dma.done [#allocation17], 2048
        $region92: #{tpu_custom_call.1} parent=59 // pred_fallthru
          _
        // Predicated region
        $region93: #{tpu_custom_call.1} parent=59 // pred_check
          %p452 = pneg %p243
        $region94: #{tpu_custom_call.1} parent=59 // pred_check_branch
          %454 = sbr.rel (%p452) target = $region96
        $region95: #{tpu_custom_call.1} parent=59 // pred_region
          %455 = dma.done [#allocation17], 128
        $region96: #{tpu_custom_call.1} parent=59 // pred_fallthru
          _
        %456 = sfence
        %p457 = pneg %p49
        %p458 = pneg %p46
        %p459 = pneg %p70
        %p460 = pneg %p67
        %p461 = pneg %p91
        %p462 = pneg %p88
        %s463 = sand.u32 %s104, 1
        %s464 = scalar_lea.sflag [#allocation4], %s463
        %s465 = sand.u32 %s104, 1
        %s466 = smul.addr %s465, 32
        %s467 = scalar_lea.vmem [#allocation9], %s466
        %p468 = pneg %p117
        %p469 = pneg %p114
        %p470 = pneg %p138
        %p471 = pneg %p135
        %p472 = pneg %p159
        %p473 = pneg %p156
        %p474 = pneg %p180
        %p475 = pneg %p177
        %p476 = pneg %p201
        %p477 = pneg %p198
        %p478 = pneg %p222
        %p479 = pneg %p219
        %p480 = pneg %p243
        %p481 = pneg %p240
        %p482 = pneg %p269
        %p483 = pneg %p266
        %s484 = sand.u32 %s256, 1
        %s485 = scalar_lea.sflag [#allocation5], %s484
        %s486 = sand.u32 %s256, 1
        %s487 = smul.addr %s486, 32
        %s488 = scalar_lea.vmem [#allocation19], %s487
        %v490 = vlaneseq
        %v491 = vand.u32 %v490, 127
        %v492 = vadd.s32 %v491, 128
        %vm493 = vcmp.ge.s32.totalorder %v491, 1
        %vm494 = vcmp.ge.s32.totalorder %v492, 1
        %vm495 = vcmp.lt.s32.totalorder %v491, 255
        %vm496 = vcmp.lt.s32.totalorder %v492, 255
        %vm497 = vcmp.ge.s32.totalorder %v491, 2
        %vm498 = vcmp.ge.s32.totalorder %v492, 2
        %vm499 = vcmp.lt.s32.totalorder %v491, 254
        %vm500 = vcmp.lt.s32.totalorder %v492, 254
        %v501 = vld [vmem:[#allocation10] sm:$0xff]
        %v502 = vld [vmem:[#allocation10 + $0x8] sm:$0xff]
        %v503 = vld [vmem:[#allocation10 + $0x10] sm:$0xff]
        %v504 = vld [vmem:[#allocation10 + $0x18] sm:$0xff]
        %v505 = vld [vmem:[%s427] sm:$0xff]
        %v506 = vld [vmem:[%s427 + $0x8] sm:$0xff]
        %v507 = vld [vmem:[%s427 + $0x10] sm:$0xff]
        %v508 = vld [vmem:[%s427 + $0x18] sm:$0xff]
        %v509 = vadd.f32 %v505, %v506
        %v510 = vadd.f32 %v509, %v507
        %v511 = vadd.f32 %v510, %v508
        %512 = vadd.xlane.f32.xlu0 %v511
        %v513 = vpop.xlane.xlu0 %512
        %v514 = vrot.slane %v513, 4
        %v515 = vadd.f32 %v513, %v514
        %v516 = vrot.slane %v515, 2
        %v517 = vadd.f32 %v515, %v516
        %v518 = vrot.slane %v517, 1
        %v519 = vadd.f32 %v517, %v518
        %s520 = vtos %v519
        %v521 = vstv %s520
        %v522 = vmul.f32 %v505, %v505
        %v523 = vmul.f32 %v506, %v506
        %v524 = vmul.f32 %v507, %v507
        %v525 = vmul.f32 %v508, %v508
        %v526 = vadd.f32 %v522, %v523
        %v527 = vadd.f32 %v526, %v524
        %v528 = vadd.f32 %v527, %v525
        %529 = vadd.xlane.f32.xlu0 %v528
        %v530 = vpop.xlane.xlu0 %529
        %v531 = vrot.slane %v530, 4
        %v532 = vadd.f32 %v530, %v531
        %v533 = vrot.slane %v532, 2
        %v534 = vadd.f32 %v532, %v533
        %v535 = vrot.slane %v534, 1
        %v536 = vadd.f32 %v534, %v535
        %s537 = vtos %v536
        %v538 = vstv %s537
        %v539 = vmul.f32 %v521, 0.00024414063
        %v540 = vmul.f32 %v538, 0.00024414063
        %v541 = vmul.f32 %v539, %v539
        %v542 = vsub.f32 %v540, %v541
        %v543 = vmax.f32 %v542, 0.0
        %v544 = vadd.f32 %v543, 1e-08
        %v545 = vrsqrt.pop %v544
        %v546 = vmul.f32 %v501, %v545
        %v547 = vmul.f32 %v502, %v545
        %v548 = vmul.f32 %v539, %v546
        %v549 = vmul.f32 %v539, %v547
        %552 = vrot.lane.b32.xlu0 %v548, 1
        %v553 = vpop.permute.xlu0 %552
        %554 = vrot.lane.b32.xlu0 %v549, 1
        %v555 = vpop.permute.xlu0 %554
        %v558 = vsub.f32 %v501, %v553
        %v559 = vsub.f32 %v502, %v555
        %561 = vset.pattern.permute.xlu0 0
        %562 = vperm.xlu0 %561, %v546
        %v563 = vpop.permute.xlu0 %562
        %566 = vset.pattern.permute.xlu0 0
        %567 = vperm.xlu0 %566, %v547
        %v568 = vpop.permute.xlu0 %567
        %v570 = vmul.f32 %v505, %v563
        %v571 = vmul.f32 %v506, %v563
        %v572 = vmul.f32 %v507, %v568
        %v573 = vmul.f32 %v508, %v568
        %575 = vset.pattern.permute.xlu0 1
        %576 = vperm.xlu0 %575, %v558
        %v577 = vpop.permute.xlu0 %576
        %580 = vset.pattern.permute.xlu0 1
        %581 = vperm.xlu0 %580, %v559
        %v582 = vpop.permute.xlu0 %581
        %v584 = vadd.f32 %v570, %v577
        %v585 = vadd.f32 %v571, %v577
        %v586 = vadd.f32 %v572, %v582
        %v587 = vadd.f32 %v573, %v582
        %v588 = vld [vmem:[#allocation12] sm:$0xf]
        %v589 = vld [vmem:[#allocation12 + $0x4] sm:$0xf]
        %v590 = vld [vmem:[#allocation12 + $0x8] sm:$0xf]
        %v591 = vld [vmem:[#allocation12 + $0xc] sm:$0xf]
        %v592 = vpack.c.bf16 %v586, %v584
        %v593 = vpack.c.bf16 %v587, %v585
        %595 = vset.pattern.permute.xlu0 2
        %596 = vperm.xlu0 %595, %v501
        %v597 = vpop.permute.xlu0 %596
        %600 = vset.pattern.permute.xlu0 2
        %601 = vperm.xlu0 %600, %v502
        %v602 = vpop.permute.xlu0 %601
        %605 = vset.pattern.permute.xlu0 2
        %606 = vperm.xlu0 %605, %v503
        %v607 = vpop.permute.xlu0 %606
        %610 = vset.pattern.permute.xlu0 2
        %611 = vperm.xlu0 %610, %v504
        %v612 = vpop.permute.xlu0 %611
        %v618 = vunpack.c.l.b16 %v588
        %v619 = vunpack.c.l.b16 %v589
        %v620 = vunpack.c.l.b16 %v590
        %v621 = vunpack.c.l.b16 %v591
        %v622 = vpack.c.b16 %v619, %v618
        %v623 = vpack.c.b16 %v621, %v620
        %vm624 = vcmask 130048
        %v626 = vsel %vm624, %v622, 0
        %v629 = vsel %vm624, %v623, 0
        %631 = vmatprep.subr.bf16.mxu0 %v593
        %632 = vmatpush1.bf16.msra.mxu0 %v592
        %633 = vmatprep.subr.bf16.mxu0 0
        %634 = vmatpush1.bf16.msra.mxu0 0
        %635 = vmatprep.subr.bf16.mxu0 0
        %636 = vmatpush1.bf16.msra.mxu0 0
        %637 = vmatprep.subr.bf16.mxu0 0
        %638 = vmatpush1.bf16.msra.mxu0 0
        %639 = vmatprep.subr.bf16.mxu0 0
        %640 = vmatpush1.bf16.msra.mxu0 0
        %641 = vmatprep.subr.bf16.mxu0 0
        %642 = vmatpush1.bf16.msra.mxu0 0
        %643 = vmatprep.subr.bf16.mxu0 0
        %644 = vmatpush1.bf16.msra.mxu0 0
        %645 = vmatprep.subr.bf16.mxu0 0
        %646 = vmatpush1.bf16.msra.mxu0 0
        %647 = vmatprep.subr.bf16.mxu0 0
        %648 = vmatpush1.bf16.msra.mxu0 0
        %649 = vmatprep.subr.bf16.mxu0 0
        %650 = vmatpush1.bf16.msra.mxu0 0
        %651 = vmatprep.subr.bf16.mxu0 0
        %652 = vmatpush1.bf16.msra.mxu0 0
        %653 = vmatprep.subr.bf16.mxu0 0
        %654 = vmatpush1.bf16.msra.mxu0 0
        %655 = vmatprep.subr.bf16.mxu0 0
        %656 = vmatpush1.bf16.msra.mxu0 0
        %657 = vmatprep.subr.bf16.mxu0 0
        %658 = vmatpush1.bf16.msra.mxu0 0
        %659 = vmatprep.subr.bf16.mxu0 0
        %660 = vmatpush1.bf16.msra.mxu0 0
        %661 = vmatprep.subr.bf16.mxu0 0
        %662 = vmatpush1.bf16.msra.mxu0 0
        %663 = vmatprep.mubr.bf16.mxu0 0
        %664 = vmatmul.mubr.bf16.gmra.mrb[0].mxu0 %v626
        %v665 = vpop.f32.mrb[0].mxu0
        %v666 = vadd.f32 %v597, %v665
        %v667 = vpop.f32.mrb[0].mxu0
        %v668 = vadd.f32 %v597, %v667
        %v669 = vpop.f32.mrb[0].mxu0
        %v670 = vadd.f32 %v602, %v669
        %v671 = vpop.f32.mrb[0].mxu0
        %v672 = vadd.f32 %v602, %v671
        %673 = vmatprep.mubr.bf16.mxu0 0
        %674 = vmatmul.mubr.bf16.gmra.mrb[0].mxu0 %v629
        %v675 = vpop.f32.mrb[0].mxu0
        %v676 = vadd.f32 %v607, %v675
        %v677 = vpop.f32.mrb[0].mxu0
        %v678 = vadd.f32 %v607, %v677
        %v679 = vpop.f32.mrb[0].mxu0
        %v680 = vadd.f32 %v612, %v679
        %v681 = vpop.f32.mrb[0].mxu0
        %v682 = vadd.f32 %v612, %v681
        %683 = vdwg.mxu0
        %v684 = vld [vmem:[#allocation13] sm:$0xff]
        %v685 = vld [vmem:[#allocation13 + $0x8] sm:$0xff]
        %v686 = vld [vmem:[#allocation13 + $0x10] sm:$0xff]
        %v687 = vld [vmem:[#allocation13 + $0x18] sm:$0xff]
        %v688 = vld [vmem:[#allocation13 + $0x20] sm:$0xff]
        %v689 = vld [vmem:[#allocation13 + $0x28] sm:$0xff]
        %v690 = vld [vmem:[#allocation13 + $0x30] sm:$0xff]
        %v691 = vld [vmem:[#allocation13 + $0x38] sm:$0xff]
        %v692 = vld [vmem:[#allocation15] sm:$0xf]
        %v693 = vld [vmem:[#allocation15 + $0x4] sm:$0xf]
        %v694 = vld [vmem:[#allocation15 + $0x8] sm:$0xf]
        %v695 = vld [vmem:[#allocation15 + $0xc] sm:$0xf]
        %v696 = vpack.c.bf16 %v670, %v666
        %v697 = vpack.c.bf16 %v672, %v668
        %v698 = vpack.c.bf16 %v680, %v676
        %v699 = vpack.c.bf16 %v682, %v678
        %701 = vset.pattern.permute.xlu0 0
        %702 = vperm.xlu0 %701, %v684
        %v703 = vpop.permute.xlu0 %702
        %706 = vset.pattern.permute.xlu0 0
        %707 = vperm.xlu0 %706, %v685
        %v708 = vpop.permute.xlu0 %707
        %711 = vset.pattern.permute.xlu0 0
        %712 = vperm.xlu0 %711, %v686
        %v713 = vpop.permute.xlu0 %712
        %716 = vset.pattern.permute.xlu0 0
        %717 = vperm.xlu0 %716, %v687
        %v718 = vpop.permute.xlu0 %717
        %v724 = vunpack.c.l.b16 %v692
        %v725 = vunpack.c.l.b16 %v693
        %v726 = vunpack.c.l.b16 %v694
        %v727 = vunpack.c.l.b16 %v695
        %v728 = vpack.c.b16 %v725, %v724
        %v729 = vpack.c.b16 %v727, %v726
        %vm730 = vcmask 261120
        %v732 = vsel %vm730, %v728, 0
        %v735 = vsel %vm730, %v729, 0
        %737 = vmatprep.subr.bf16.mxu0 %v697
        %738 = vmatpush1.bf16.msra.mxu0 %v696
        %739 = vmatprep.subr.bf16.mxu0 %v699
        %740 = vmatpush1.bf16.msra.mxu0 %v698
        %741 = vmatprep.subr.bf16.mxu0 0
        %742 = vmatpush1.bf16.msra.mxu0 0
        %743 = vmatprep.subr.bf16.mxu0 0
        %744 = vmatpush1.bf16.msra.mxu0 0
        %745 = vmatprep.subr.bf16.mxu0 0
        %746 = vmatpush1.bf16.msra.mxu0 0
        %747 = vmatprep.subr.bf16.mxu0 0
        %748 = vmatpush1.bf16.msra.mxu0 0
        %749 = vmatprep.subr.bf16.mxu0 0
        %750 = vmatpush1.bf16.msra.mxu0 0
        %751 = vmatprep.subr.bf16.mxu0 0
        %752 = vmatpush1.bf16.msra.mxu0 0
        %753 = vmatprep.subr.bf16.mxu0 0
        %754 = vmatpush1.bf16.msra.mxu0 0
        %755 = vmatprep.subr.bf16.mxu0 0
        %756 = vmatpush1.bf16.msra.mxu0 0
        %757 = vmatprep.subr.bf16.mxu0 0
        %758 = vmatpush1.bf16.msra.mxu0 0
        %759 = vmatprep.subr.bf16.mxu0 0
        %760 = vmatpush1.bf16.msra.mxu0 0
        %761 = vmatprep.subr.bf16.mxu0 0
        %762 = vmatpush1.bf16.msra.mxu0 0
        %763 = vmatprep.subr.bf16.mxu0 0
        %764 = vmatpush1.bf16.msra.mxu0 0
        %765 = vmatprep.subr.bf16.mxu0 0
        %766 = vmatpush1.bf16.msra.mxu0 0
        %767 = vmatprep.subr.bf16.mxu0 0
        %768 = vmatpush1.bf16.msra.mxu0 0
        %769 = vmatprep.mubr.bf16.mxu0 0
        %770 = vmatmul.mubr.bf16.gmra.mrb[0].mxu0 %v732
        %v771 = vpop.f32.mrb[0].mxu0
        %v772 = vadd.f32 %v703, %v771
        %v773 = vpop.f32.mrb[0].mxu0
        %v774 = vadd.f32 %v703, %v773
        %v775 = vpop.f32.mrb[0].mxu0
        %v776 = vadd.f32 %v708, %v775
        %v777 = vpop.f32.mrb[0].mxu0
        %v778 = vadd.f32 %v708, %v777
        %779 = vmatprep.mubr.bf16.mxu0 0
        %780 = vmatmul.mubr.bf16.gmra.mrb[0].mxu0 %v735
        %v781 = vpop.f32.mrb[0].mxu0
        %v782 = vadd.f32 %v713, %v781
        %v783 = vpop.f32.mrb[0].mxu0
        %v784 = vadd.f32 %v713, %v783
        %v785 = vpop.f32.mrb[0].mxu0
        %v786 = vadd.f32 %v718, %v785
        %v787 = vpop.f32.mrb[0].mxu0
        %v788 = vadd.f32 %v718, %v787
        %789 = vdwg.mxu0
        %vm790 = vcmp.ge.f32.partialorder %v772, 0.0
        %vm791 = vcmp.ge.f32.partialorder %v774, 0.0
        %vm792 = vcmp.ge.f32.partialorder %v776, 0.0
        %vm793 = vcmp.ge.f32.partialorder %v778, 0.0
        %vm794 = vcmp.ge.f32.partialorder %v782, 0.0
        %vm795 = vcmp.ge.f32.partialorder %v784, 0.0
        %vm796 = vcmp.ge.f32.partialorder %v786, 0.0
        %vm797 = vcmp.ge.f32.partialorder %v788, 0.0
        %s798 = sld [smem:[#allocation3]]
        %v799 = vstv %s798
        %v800 = vmul.f32 %v799, %v772
        %v801 = vmul.f32 %v799, %v774
        %v802 = vmul.f32 %v799, %v776
        %v803 = vmul.f32 %v799, %v778
        %v804 = vmul.f32 %v799, %v782
        %v805 = vmul.f32 %v799, %v784
        %v806 = vmul.f32 %v799, %v786
        %v807 = vmul.f32 %v799, %v788
        %v808 = vsel %vm790, %v772, %v800
        %v809 = vsel %vm791, %v774, %v801
        %v810 = vsel %vm792, %v776, %v802
        %v811 = vsel %vm793, %v778, %v803
        %v812 = vsel %vm794, %v782, %v804
        %v813 = vsel %vm795, %v784, %v805
        %v814 = vsel %vm796, %v786, %v806
        %v815 = vsel %vm797, %v788, %v807
        %v816 = vadd.f32 %v808, %v809
        %v817 = vadd.f32 %v816, %v810
        %v818 = vadd.f32 %v817, %v811
        %v819 = vadd.f32 %v818, %v812
        %v820 = vadd.f32 %v819, %v813
        %v821 = vadd.f32 %v820, %v814
        %v822 = vadd.f32 %v821, %v815
        %823 = vadd.xlane.f32.xlu0 %v822
        %v824 = vpop.xlane.xlu0 %823
        %v825 = vrot.slane %v824, 4
        %v826 = vadd.f32 %v824, %v825
        %v827 = vrot.slane %v826, 2
        %v828 = vadd.f32 %v826, %v827
        %v829 = vrot.slane %v828, 1
        %v830 = vadd.f32 %v828, %v829
        %s831 = vtos %v830
        %v832 = vstv %s831
        %v833 = vmul.f32 %v808, %v808
        %v834 = vmul.f32 %v809, %v809
        %v835 = vmul.f32 %v810, %v810
        %v836 = vmul.f32 %v811, %v811
        %v837 = vmul.f32 %v812, %v812
        %v838 = vmul.f32 %v813, %v813
        %v839 = vmul.f32 %v814, %v814
        %v840 = vmul.f32 %v815, %v815
        %v841 = vadd.f32 %v833, %v834
        %v842 = vadd.f32 %v841, %v835
        %v843 = vadd.f32 %v842, %v836
        %v844 = vadd.f32 %v843, %v837
        %v845 = vadd.f32 %v844, %v838
        %v846 = vadd.f32 %v845, %v839
        %v847 = vadd.f32 %v846, %v840
        %848 = vadd.xlane.f32.xlu0 %v847
        %v849 = vpop.xlane.xlu0 %848
        %v850 = vrot.slane %v849, 4
        %v851 = vadd.f32 %v849, %v850
        %v852 = vrot.slane %v851, 2
        %v853 = vadd.f32 %v851, %v852
        %v854 = vrot.slane %v853, 1
        %v855 = vadd.f32 %v853, %v854
        %s856 = vtos %v855
        %v857 = vstv %s856
        %v858 = vmul.f32 %v832, 0.00012207031
        %v859 = vmul.f32 %v857, 0.00012207031
        %v860 = vmul.f32 %v858, %v858
        %v861 = vsub.f32 %v859, %v860
        %v862 = vmax.f32 %v861, 0.0
        %v863 = vadd.f32 %v862, 1e-08
        %v864 = vrsqrt.pop %v863
        %v865 = vmul.f32 %v684, %v864
        %v866 = vmul.f32 %v685, %v864
        %v867 = vmul.f32 %v686, %v864
        %v868 = vmul.f32 %v687, %v864
        %v869 = vmul.f32 %v858, %v865
        %v870 = vmul.f32 %v858, %v866
        %v871 = vmul.f32 %v858, %v867
        %v872 = vmul.f32 %v858, %v868
        %877 = vrot.lane.b32.xlu0 %v869, 1
        %v878 = vpop.permute.xlu0 %877
        %879 = vrot.lane.b32.xlu0 %v870, 1
        %v880 = vpop.permute.xlu0 %879
        %881 = vrot.lane.b32.xlu0 %v871, 1
        %v882 = vpop.permute.xlu0 %881
        %883 = vrot.lane.b32.xlu0 %v872, 1
        %v884 = vpop.permute.xlu0 %883
        %v889 = vsub.f32 %v684, %v878
        %v890 = vsub.f32 %v685, %v880
        %v891 = vsub.f32 %v686, %v882
        %v892 = vsub.f32 %v687, %v884
        %894 = vset.pattern.permute.xlu0 1
        %895 = vperm.xlu0 %894, %v865
        %v896 = vpop.permute.xlu0 %895
        %899 = vset.pattern.permute.xlu0 1
        %900 = vperm.xlu0 %899, %v866
        %v901 = vpop.permute.xlu0 %900
        %904 = vset.pattern.permute.xlu0 1
        %905 = vperm.xlu0 %904, %v867
        %v906 = vpop.permute.xlu0 %905
        %909 = vset.pattern.permute.xlu0 1
        %910 = vperm.xlu0 %909, %v868
        %v911 = vpop.permute.xlu0 %910
        %v913 = vmul.f32 %v808, %v896
        %v914 = vmul.f32 %v809, %v896
        %v915 = vmul.f32 %v810, %v901
        %v916 = vmul.f32 %v811, %v901
        %v917 = vmul.f32 %v812, %v906
        %v918 = vmul.f32 %v813, %v906
        %v919 = vmul.f32 %v814, %v911
        %v920 = vmul.f32 %v815, %v911
        %922 = vset.pattern.permute.xlu0 2
        %923 = vperm.xlu0 %922, %v889
        %v924 = vpop.permute.xlu0 %923
        %927 = vset.pattern.permute.xlu0 2
        %928 = vperm.xlu0 %927, %v890
        %v929 = vpop.permute.xlu0 %928
        %932 = vset.pattern.permute.xlu0 2
        %933 = vperm.xlu0 %932, %v891
        %v934 = vpop.permute.xlu0 %933
        %937 = vset.pattern.permute.xlu0 2
        %938 = vperm.xlu0 %937, %v892
        %v939 = vpop.permute.xlu0 %938
        %v941 = vadd.f32 %v913, %v924
        %v942 = vadd.f32 %v914, %v924
        %v943 = vadd.f32 %v915, %v929
        %v944 = vadd.f32 %v916, %v929
        %v945 = vadd.f32 %v917, %v934
        %v946 = vadd.f32 %v918, %v934
        %v947 = vadd.f32 %v919, %v939
        %v948 = vadd.f32 %v920, %v939
        %949 = vrot.lane.b32.xlu0 %v941, 1
        %v950 = vpop.permute.xlu0 %949
        %951 = vrot.lane.b32.xlu0 %v943, 1
        %v952 = vpop.permute.xlu0 %951
        %953 = vrot.lane.b32.xlu0 %v945, 1
        %v954 = vpop.permute.xlu0 %953
        %955 = vrot.lane.b32.xlu0 %v947, 1
        %v956 = vpop.permute.xlu0 %955
        %957 = vrot.lane.b32.xlu0 %v942, 1
        %v958 = vpop.permute.xlu0 %957
        %959 = vrot.lane.b32.xlu0 %v944, 1
        %v960 = vpop.permute.xlu0 %959
        %961 = vrot.lane.b32.xlu0 %v946, 1
        %v962 = vpop.permute.xlu0 %961
        %963 = vrot.lane.b32.xlu0 %v948, 1
        %v964 = vpop.permute.xlu0 %963
        %vm965 = vcmp.lt.s32.totalorder %v491, 1
        %v966 = vsel %vm965, %v950, %v958
        %v967 = vsel %vm965, %v952, %v960
        %v968 = vsel %vm965, %v954, %v962
        %v969 = vsel %vm965, %v956, %v964
        %v970 = vsel %vm965, %v958, %v950
        %v971 = vsel %vm965, %v960, %v952
        %v972 = vsel %vm965, %v962, %v954
        %v973 = vsel %vm965, %v964, %v956
        %v974 = vsel %vm493, 1, 0
        %v975 = vsel %vm494, 1, 0
        %vm976 = vcmp.eq.s32.totalorder %v974, 1
        %vm977 = vcmp.eq.s32.totalorder %v975, 1
        %v978 = vsel %vm976, %v970, 0.0
        %v979 = vsel %vm977, %v966, 0.0
        %v980 = vsel %vm976, %v971, 0.0
        %v981 = vsel %vm977, %v967, 0.0
        %v982 = vsel %vm976, %v972, 0.0
        %v983 = vsel %vm977, %v968, 0.0
        %v984 = vsel %vm976, %v973, 0.0
        %v985 = vsel %vm977, %v969, 0.0
        %986 = vset.pattern.permute.xlu0 3
        %987 = vperm.xlu0 %986, %v684
        %v988 = vpop.permute.xlu0 %987
        %990 = vset.pattern.permute.xlu0 3
        %991 = vperm.xlu0 %990, %v685
        %v992 = vpop.permute.xlu0 %991
        %994 = vset.pattern.permute.xlu0 3
        %995 = vperm.xlu0 %994, %v686
        %v996 = vpop.permute.xlu0 %995
        %998 = vset.pattern.permute.xlu0 3
        %999 = vperm.xlu0 %998, %v687
        %v1000 = vpop.permute.xlu0 %999
        %v1002 = vmul.f32 %v988, %v978
        %v1003 = vmul.f32 %v988, %v979
        %v1004 = vmul.f32 %v992, %v980
        %v1005 = vmul.f32 %v992, %v981
        %v1006 = vmul.f32 %v996, %v982
        %v1007 = vmul.f32 %v996, %v983
        %v1008 = vmul.f32 %v1000, %v984
        %v1009 = vmul.f32 %v1000, %v985
        %1010 = vset.pattern.permute.xlu0 4
        %1011 = vperm.xlu0 %1010, %v684
        %v1012 = vpop.permute.xlu0 %1011
        %1014 = vset.pattern.permute.xlu0 4
        %1015 = vperm.xlu0 %1014, %v685
        %v1016 = vpop.permute.xlu0 %1015
        %1018 = vset.pattern.permute.xlu0 4
        %1019 = vperm.xlu0 %1018, %v686
        %v1020 = vpop.permute.xlu0 %1019
        %1022 = vset.pattern.permute.xlu0 4
        %1023 = vperm.xlu0 %1022, %v687
        %v1024 = vpop.permute.xlu0 %1023
        %v1026 = vmul.f32 %v1012, %v941
        %v1027 = vmul.f32 %v1012, %v942
        %v1028 = vmul.f32 %v1016, %v943
        %v1029 = vmul.f32 %v1016, %v944
        %v1030 = vmul.f32 %v1020, %v945
        %v1031 = vmul.f32 %v1020, %v946
        %v1032 = vmul.f32 %v1024, %v947
        %v1033 = vmul.f32 %v1024, %v948
        %v1034 = vadd.f32 %v1002, %v1026
        %v1035 = vadd.f32 %v1003, %v1027
        %v1036 = vadd.f32 %v1004, %v1028
        %v1037 = vadd.f32 %v1005, %v1029
        %v1038 = vadd.f32 %v1006, %v1030
        %v1039 = vadd.f32 %v1007, %v1031
        %v1040 = vadd.f32 %v1008, %v1032
        %v1041 = vadd.f32 %v1009, %v1033
        %1042 = vrot.lane.b32.xlu0 %v941, 127
        %v1043 = vpop.permute.xlu0 %1042
        %1044 = vrot.lane.b32.xlu0 %v943, 127
        %v1045 = vpop.permute.xlu0 %1044
        %1046 = vrot.lane.b32.xlu0 %v945, 127
        %v1047 = vpop.permute.xlu0 %1046
        %1048 = vrot.lane.b32.xlu0 %v947, 127
        %v1049 = vpop.permute.xlu0 %1048
        %1050 = vrot.lane.b32.xlu0 %v942, 127
        %v1051 = vpop.permute.xlu0 %1050
        %1052 = vrot.lane.b32.xlu0 %v944, 127
        %v1053 = vpop.permute.xlu0 %1052
        %1054 = vrot.lane.b32.xlu0 %v946, 127
        %v1055 = vpop.permute.xlu0 %1054
        %1056 = vrot.lane.b32.xlu0 %v948, 127
        %v1057 = vpop.permute.xlu0 %1056
        %vm1058 = vcmp.lt.s32.totalorder %v491, 127
        %v1059 = vsel %vm1058, %v1043, %v1051
        %v1060 = vsel %vm1058, %v1045, %v1053
        %v1061 = vsel %vm1058, %v1047, %v1055
        %v1062 = vsel %vm1058, %v1049, %v1057
        %v1063 = vsel %vm1058, %v1051, %v1043
        %v1064 = vsel %vm1058, %v1053, %v1045
        %v1065 = vsel %vm1058, %v1055, %v1047
        %v1066 = vsel %vm1058, %v1057, %v1049
        %v1067 = vsel %vm495, 1, 0
        %v1068 = vsel %vm496, 1, 0
        %vm1069 = vcmp.eq.s32.totalorder %v1067, 1
        %vm1070 = vcmp.eq.s32.totalorder %v1068, 1
        %v1071 = vsel %vm1069, %v1059, 0.0
        %v1072 = vsel %vm1070, %v1063, 0.0
        %v1073 = vsel %vm1069, %v1060, 0.0
        %v1074 = vsel %vm1070, %v1064, 0.0
        %v1075 = vsel %vm1069, %v1061, 0.0
        %v1076 = vsel %vm1070, %v1065, 0.0
        %v1077 = vsel %vm1069, %v1062, 0.0
        %v1078 = vsel %vm1070, %v1066, 0.0
        %1079 = vset.pattern.permute.xlu0 5
        %1080 = vperm.xlu0 %1079, %v684
        %v1081 = vpop.permute.xlu0 %1080
        %1083 = vset.pattern.permute.xlu0 5
        %1084 = vperm.xlu0 %1083, %v685
        %v1085 = vpop.permute.xlu0 %1084
        %1087 = vset.pattern.permute.xlu0 5
        %1088 = vperm.xlu0 %1087, %v686
        %v1089 = vpop.permute.xlu0 %1088
        %1091 = vset.pattern.permute.xlu0 5
        %1092 = vperm.xlu0 %1091, %v687
        %v1093 = vpop.permute.xlu0 %1092
        %v1095 = vmul.f32 %v1081, %v1071
        %v1096 = vmul.f32 %v1081, %v1072
        %v1097 = vmul.f32 %v1085, %v1073
        %v1098 = vmul.f32 %v1085, %v1074
        %v1099 = vmul.f32 %v1089, %v1075
        %v1100 = vmul.f32 %v1089, %v1076
        %v1101 = vmul.f32 %v1093, %v1077
        %v1102 = vmul.f32 %v1093, %v1078
        %v1103 = vadd.f32 %v1034, %v1095
        %v1104 = vadd.f32 %v1035, %v1096
        %v1105 = vadd.f32 %v1036, %v1097
        %v1106 = vadd.f32 %v1037, %v1098
        %v1107 = vadd.f32 %v1038, %v1099
        %v1108 = vadd.f32 %v1039, %v1100
        %v1109 = vadd.f32 %v1040, %v1101
        %v1110 = vadd.f32 %v1041, %v1102
        %1111 = vset.pattern.permute.xlu0 6
        %1112 = vperm.xlu0 %1111, %v684
        %v1113 = vpop.permute.xlu0 %1112
        %1115 = vset.pattern.permute.xlu0 6
        %1116 = vperm.xlu0 %1115, %v685
        %v1117 = vpop.permute.xlu0 %1116
        %1119 = vset.pattern.permute.xlu0 6
        %1120 = vperm.xlu0 %1119, %v686
        %v1121 = vpop.permute.xlu0 %1120
        %1123 = vset.pattern.permute.xlu0 6
        %1124 = vperm.xlu0 %1123, %v687
        %v1125 = vpop.permute.xlu0 %1124
        %v1127 = vadd.f32 %v1103, %v1113
        %v1128 = vadd.f32 %v1104, %v1113
        %v1129 = vadd.f32 %v1105, %v1117
        %v1130 = vadd.f32 %v1106, %v1117
        %v1131 = vadd.f32 %v1107, %v1121
        %v1132 = vadd.f32 %v1108, %v1121
        %v1133 = vadd.f32 %v1109, %v1125
        %v1134 = vadd.f32 %v1110, %v1125
        %vm1135 = vcmp.ge.f32.partialorder %v1127, 0.0
        %vm1136 = vcmp.ge.f32.partialorder %v1128, 0.0
        %vm1137 = vcmp.ge.f32.partialorder %v1129, 0.0
        %vm1138 = vcmp.ge.f32.partialorder %v1130, 0.0
        %vm1139 = vcmp.ge.f32.partialorder %v1131, 0.0
        %vm1140 = vcmp.ge.f32.partialorder %v1132, 0.0
        %vm1141 = vcmp.ge.f32.partialorder %v1133, 0.0
        %vm1142 = vcmp.ge.f32.partialorder %v1134, 0.0
        %s1143 = sld [smem:[#allocation7]]
        %v1144 = vstv %s1143
        %v1145 = vmul.f32 %v1144, %v1127
        %v1146 = vmul.f32 %v1144, %v1128
        %v1147 = vmul.f32 %v1144, %v1129
        %v1148 = vmul.f32 %v1144, %v1130
        %v1149 = vmul.f32 %v1144, %v1131
        %v1150 = vmul.f32 %v1144, %v1132
        %v1151 = vmul.f32 %v1144, %v1133
        %v1152 = vmul.f32 %v1144, %v1134
        %v1153 = vsel %vm1135, %v1127, %v1145
        %v1154 = vsel %vm1136, %v1128, %v1146
        %v1155 = vsel %vm1137, %v1129, %v1147
        %v1156 = vsel %vm1138, %v1130, %v1148
        %v1157 = vsel %vm1139, %v1131, %v1149
        %v1158 = vsel %vm1140, %v1132, %v1150
        %v1159 = vsel %vm1141, %v1133, %v1151
        %v1160 = vsel %vm1142, %v1134, %v1152
        %v1161 = vadd.f32 %v1153, %v1154
        %v1162 = vadd.f32 %v1161, %v1155
        %v1163 = vadd.f32 %v1162, %v1156
        %v1164 = vadd.f32 %v1163, %v1157
        %v1165 = vadd.f32 %v1164, %v1158
        %v1166 = vadd.f32 %v1165, %v1159
        %v1167 = vadd.f32 %v1166, %v1160
        %1168 = vadd.xlane.f32.xlu0 %v1167
        %v1169 = vpop.xlane.xlu0 %1168
        %v1170 = vrot.slane %v1169, 4
        %v1171 = vadd.f32 %v1169, %v1170
        %v1172 = vrot.slane %v1171, 2
        %v1173 = vadd.f32 %v1171, %v1172
        %v1174 = vrot.slane %v1173, 1
        %v1175 = vadd.f32 %v1173, %v1174
        %s1176 = vtos %v1175
        %v1177 = vstv %s1176
        %v1178 = vmul.f32 %v1153, %v1153
        %v1179 = vmul.f32 %v1154, %v1154
        %v1180 = vmul.f32 %v1155, %v1155
        %v1181 = vmul.f32 %v1156, %v1156
        %v1182 = vmul.f32 %v1157, %v1157
        %v1183 = vmul.f32 %v1158, %v1158
        %v1184 = vmul.f32 %v1159, %v1159
        %v1185 = vmul.f32 %v1160, %v1160
        %v1186 = vadd.f32 %v1178, %v1179
        %v1187 = vadd.f32 %v1186, %v1180
        %v1188 = vadd.f32 %v1187, %v1181
        %v1189 = vadd.f32 %v1188, %v1182
        %v1190 = vadd.f32 %v1189, %v1183
        %v1191 = vadd.f32 %v1190, %v1184
        %v1192 = vadd.f32 %v1191, %v1185
        %1193 = vadd.xlane.f32.xlu0 %v1192
        %v1194 = vpop.xlane.xlu0 %1193
        %v1195 = vrot.slane %v1194, 4
        %v1196 = vadd.f32 %v1194, %v1195
        %v1197 = vrot.slane %v1196, 2
        %v1198 = vadd.f32 %v1196, %v1197
        %v1199 = vrot.slane %v1198, 1
        %v1200 = vadd.f32 %v1198, %v1199
        %s1201 = vtos %v1200
        %v1202 = vstv %s1201
        %v1203 = vmul.f32 %v1177, 0.00012207031
        %v1204 = vmul.f32 %v1202, 0.00012207031
        %v1205 = vmul.f32 %v1203, %v1203
        %v1206 = vsub.f32 %v1204, %v1205
        %v1207 = vmax.f32 %v1206, 0.0
        %v1208 = vadd.f32 %v1207, 1e-08
        %v1209 = vrsqrt.pop %v1208
        %v1210 = vmul.f32 %v684, %v1209
        %v1211 = vmul.f32 %v685, %v1209
        %v1212 = vmul.f32 %v686, %v1209
        %v1213 = vmul.f32 %v687, %v1209
        %v1214 = vmul.f32 %v1203, %v1210
        %v1215 = vmul.f32 %v1203, %v1211
        %v1216 = vmul.f32 %v1203, %v1212
        %v1217 = vmul.f32 %v1203, %v1213
        %1222 = vrot.lane.b32.xlu0 %v1214, 1
        %v1223 = vpop.permute.xlu0 %1222
        %1224 = vrot.lane.b32.xlu0 %v1215, 1
        %v1225 = vpop.permute.xlu0 %1224
        %1226 = vrot.lane.b32.xlu0 %v1216, 1
        %v1227 = vpop.permute.xlu0 %1226
        %1228 = vrot.lane.b32.xlu0 %v1217, 1
        %v1229 = vpop.permute.xlu0 %1228
        %v1234 = vsub.f32 %v684, %v1223
        %v1235 = vsub.f32 %v685, %v1225
        %v1236 = vsub.f32 %v686, %v1227
        %v1237 = vsub.f32 %v687, %v1229
        %1239 = vset.pattern.permute.xlu0 7
        %1240 = vperm.xlu0 %1239, %v1210
        %v1241 = vpop.permute.xlu0 %1240
        %1244 = vset.pattern.permute.xlu0 7
        %1245 = vperm.xlu0 %1244, %v1211
        %v1246 = vpop.permute.xlu0 %1245
        %1249 = vset.pattern.permute.xlu0 7
        %1250 = vperm.xlu0 %1249, %v1212
        %v1251 = vpop.permute.xlu0 %1250
        %1254 = vset.pattern.permute.xlu0 7
        %1255 = vperm.xlu0 %1254, %v1213
        %v1256 = vpop.permute.xlu0 %1255
        %v1258 = vmul.f32 %v1153, %v1241
        %v1259 = vmul.f32 %v1154, %v1241
        %v1260 = vmul.f32 %v1155, %v1246
        %v1261 = vmul.f32 %v1156, %v1246
        %v1262 = vmul.f32 %v1157, %v1251
        %v1263 = vmul.f32 %v1158, %v1251
        %v1264 = vmul.f32 %v1159, %v1256
        %v1265 = vmul.f32 %v1160, %v1256
        %1267 = vset.pattern.permute.xlu0 8
        %1268 = vperm.xlu0 %1267, %v1234
        %v1269 = vpop.permute.xlu0 %1268
        %1272 = vset.pattern.permute.xlu0 8
        %1273 = vperm.xlu0 %1272, %v1235
        %v1274 = vpop.permute.xlu0 %1273
        %1277 = vset.pattern.permute.xlu0 8
        %1278 = vperm.xlu0 %1277, %v1236
        %v1279 = vpop.permute.xlu0 %1278
        %1282 = vset.pattern.permute.xlu0 8
        %1283 = vperm.xlu0 %1282, %v1237
        %v1284 = vpop.permute.xlu0 %1283
        %v1286 = vadd.f32 %v1258, %v1269
        %v1287 = vadd.f32 %v1259, %v1269
        %v1288 = vadd.f32 %v1260, %v1274
        %v1289 = vadd.f32 %v1261, %v1274
        %v1290 = vadd.f32 %v1262, %v1279
        %v1291 = vadd.f32 %v1263, %v1279
        %v1292 = vadd.f32 %v1264, %v1284
        %v1293 = vadd.f32 %v1265, %v1284
        %v1294 = vld [vmem:[#allocation16] sm:$0xf]
        %v1295 = vld [vmem:[#allocation16 + $0x4] sm:$0xf]
        %v1296 = vld [vmem:[#allocation16 + $0x8] sm:$0xf]
        %v1297 = vld [vmem:[#allocation16 + $0xc] sm:$0xf]
        %v1298 = vld [vmem:[#allocation16 + $0x10] sm:$0xf]
        %v1299 = vld [vmem:[#allocation16 + $0x14] sm:$0xf]
        %v1300 = vld [vmem:[#allocation16 + $0x18] sm:$0xf]
        %v1301 = vld [vmem:[#allocation16 + $0x1c] sm:$0xf]
        %v1302 = vpack.c.bf16 %v1288, %v1286
        %v1303 = vpack.c.bf16 %v1289, %v1287
        %v1304 = vpack.c.bf16 %v1292, %v1290
        %v1305 = vpack.c.bf16 %v1293, %v1291
        %1306 = vset.pattern.permute.xlu0 9
        %1307 = vperm.xlu0 %1306, %v684
        %v1308 = vpop.permute.xlu0 %1307
        %1310 = vset.pattern.permute.xlu0 9
        %1311 = vperm.xlu0 %1310, %v685
        %v1312 = vpop.permute.xlu0 %1311
        %1314 = vset.pattern.permute.xlu0 9
        %1315 = vperm.xlu0 %1314, %v686
        %v1316 = vpop.permute.xlu0 %1315
        %1318 = vset.pattern.permute.xlu0 9
        %1319 = vperm.xlu0 %1318, %v687
        %v1320 = vpop.permute.xlu0 %1319
        %1323 = vset.pattern.permute.xlu0 9
        %1324 = vperm.xlu0 %1323, %v688
        %v1325 = vpop.permute.xlu0 %1324
        %1328 = vset.pattern.permute.xlu0 9
        %1329 = vperm.xlu0 %1328, %v689
        %v1330 = vpop.permute.xlu0 %1329
        %1333 = vset.pattern.permute.xlu0 9
        %1334 = vperm.xlu0 %1333, %v690
        %v1335 = vpop.permute.xlu0 %1334
        %1338 = vset.pattern.permute.xlu0 9
        %1339 = vperm.xlu0 %1338, %v691
        %v1340 = vpop.permute.xlu0 %1339
        %v1350 = vunpack.c.l.b16 %v1294
        %v1351 = vunpack.c.l.b16 %v1295
        %v1352 = vunpack.c.l.b16 %v1296
        %v1353 = vunpack.c.l.b16 %v1297
        %v1354 = vunpack.c.l.b16 %v1298
        %v1355 = vunpack.c.l.b16 %v1299
        %v1356 = vunpack.c.l.b16 %v1300
        %v1357 = vunpack.c.l.b16 %v1301
        %v1358 = vpack.c.b16 %v1351, %v1350
        %v1359 = vpack.c.b16 %v1353, %v1352
        %v1360 = vpack.c.b16 %v1355, %v1354
        %v1361 = vpack.c.b16 %v1357, %v1356
        %v1363 = vsel %vm730, %v1358, 0
        %v1366 = vsel %vm730, %v1359, 0
        %v1369 = vsel %vm730, %v1360, 0
        %v1372 = vsel %vm730, %v1361, 0
        %1374 = vmatprep.subr.bf16.mxu0 %v1303
        %1375 = vmatpush1.bf16.msra.mxu0 %v1302
        %1376 = vmatprep.subr.bf16.mxu0 %v1305
        %1377 = vmatpush1.bf16.msra.mxu0 %v1304
        %1378 = vmatprep.subr.bf16.mxu0 0
        %1379 = vmatpush1.bf16.msra.mxu0 0
        %1380 = vmatprep.subr.bf16.mxu0 0
        %1381 = vmatpush1.bf16.msra.mxu0 0
        %1382 = vmatprep.subr.bf16.mxu0 0
        %1383 = vmatpush1.bf16.msra.mxu0 0
        %1384 = vmatprep.subr.bf16.mxu0 0
        %1385 = vmatpush1.bf16.msra.mxu0 0
        %1386 = vmatprep.subr.bf16.mxu0 0
        %1387 = vmatpush1.bf16.msra.mxu0 0
        %1388 = vmatprep.subr.bf16.mxu0 0
        %1389 = vmatpush1.bf16.msra.mxu0 0
        %1390 = vmatprep.subr.bf16.mxu0 0
        %1391 = vmatpush1.bf16.msra.mxu0 0
        %1392 = vmatprep.subr.bf16.mxu0 0
        %1393 = vmatpush1.bf16.msra.mxu0 0
        %1394 = vmatprep.subr.bf16.mxu0 0
        %1395 = vmatpush1.bf16.msra.mxu0 0
        %1396 = vmatprep.subr.bf16.mxu0 0
        %1397 = vmatpush1.bf16.msra.mxu0 0
        %1398 = vmatprep.subr.bf16.mxu0 0
        %1399 = vmatpush1.bf16.msra.mxu0 0
        %1400 = vmatprep.subr.bf16.mxu0 0
        %1401 = vmatpush1.bf16.msra.mxu0 0
        %1402 = vmatprep.subr.bf16.mxu0 0
        %1403 = vmatpush1.bf16.msra.mxu0 0
        %1404 = vmatprep.subr.bf16.mxu0 0
        %1405 = vmatpush1.bf16.msra.mxu0 0
        %1406 = vmatprep.mubr.bf16.mxu0 0
        %1407 = vmatmul.mubr.bf16.gmra.mrb[0].mxu0 %v1363
        %v1408 = vpop.f32.mrb[0].mxu0
        %v1409 = vadd.f32 %v1308, %v1408
        %v1410 = vpop.f32.mrb[0].mxu0
        %v1411 = vadd.f32 %v1308, %v1410
        %v1412 = vpop.f32.mrb[0].mxu0
        %v1413 = vadd.f32 %v1312, %v1412
        %v1414 = vpop.f32.mrb[0].mxu0
        %v1415 = vadd.f32 %v1312, %v1414
        %1416 = vmatprep.mubr.bf16.mxu0 0
        %1417 = vmatmul.mubr.bf16.gmra.mrb[0].mxu0 %v1366
        %v1418 = vpop.f32.mrb[0].mxu0
        %v1419 = vadd.f32 %v1316, %v1418
        %v1420 = vpop.f32.mrb[0].mxu0
        %v1421 = vadd.f32 %v1316, %v1420
        %v1422 = vpop.f32.mrb[0].mxu0
        %v1423 = vadd.f32 %v1320, %v1422
        %v1424 = vpop.f32.mrb[0].mxu0
        %v1425 = vadd.f32 %v1320, %v1424
        %1426 = vmatprep.mubr.bf16.mxu0 0
        %1427 = vmatmul.mubr.bf16.gmra.mrb[0].mxu0 %v1369
        %v1428 = vpop.f32.mrb[0].mxu0
        %v1429 = vadd.f32 %v1325, %v1428
        %v1430 = vpop.f32.mrb[0].mxu0
        %v1431 = vadd.f32 %v1325, %v1430
        %v1432 = vpop.f32.mrb[0].mxu0
        %v1433 = vadd.f32 %v1330, %v1432
        %v1434 = vpop.f32.mrb[0].mxu0
        %v1435 = vadd.f32 %v1330, %v1434
        %1436 = vmatprep.mubr.bf16.mxu0 0
        %1437 = vmatmul.mubr.bf16.gmra.mrb[0].mxu0 %v1372
        %v1438 = vpop.f32.mrb[0].mxu0
        %v1439 = vadd.f32 %v1335, %v1438
        %v1440 = vpop.f32.mrb[0].mxu0
        %v1441 = vadd.f32 %v1335, %v1440
        %v1442 = vpop.f32.mrb[0].mxu0
        %v1443 = vadd.f32 %v1340, %v1442
        %v1444 = vpop.f32.mrb[0].mxu0
        %v1445 = vadd.f32 %v1340, %v1444
        %1446 = vdwg.mxu0
        %v1447 = vadd.f32 %v666, %v1409
        %v1448 = vadd.f32 %v668, %v1411
        %v1449 = vadd.f32 %v670, %v1413
        %v1450 = vadd.f32 %v672, %v1415
        %v1451 = vadd.f32 %v676, %v1419
        %v1452 = vadd.f32 %v678, %v1421
        %v1453 = vadd.f32 %v680, %v1423
        %v1454 = vadd.f32 %v682, %v1425
        %s1455 = scalar_lea.vmem [#allocation13], 64
        %v1456 = vld [vmem:[%s1455] sm:$0xff]
        %v1457 = vld [vmem:[%s1455 + $0x8] sm:$0xff]
        %v1458 = vld [vmem:[%s1455 + $0x10] sm:$0xff]
        %v1459 = vld [vmem:[%s1455 + $0x18] sm:$0xff]
        %v1460 = vld [vmem:[%s1455 + $0x20] sm:$0xff]
        %v1461 = vld [vmem:[%s1455 + $0x28] sm:$0xff]
        %v1462 = vld [vmem:[%s1455 + $0x30] sm:$0xff]
        %v1463 = vld [vmem:[%s1455 + $0x38] sm:$0xff]
        %s1464 = scalar_lea.vmem [#allocation15], 16
        %v1465 = vld [vmem:[%s1464] sm:$0xf]
        %v1466 = vld [vmem:[%s1464 + $0x4] sm:$0xf]
        %v1467 = vld [vmem:[%s1464 + $0x8] sm:$0xf]
        %v1468 = vld [vmem:[%s1464 + $0xc] sm:$0xf]
        %v1469 = vpack.c.bf16 %v1449, %v1447
        %v1470 = vpack.c.bf16 %v1450, %v1448
        %v1471 = vpack.c.bf16 %v1453, %v1451
        %v1472 = vpack.c.bf16 %v1454, %v1452
        %1474 = vset.pattern.permute.xlu0 0
        %1475 = vperm.xlu0 %1474, %v1456
        %v1476 = vpop.permute.xlu0 %1475
        %1479 = vset.pattern.permute.xlu0 0
        %1480 = vperm.xlu0 %1479, %v1457
        %v1481 = vpop.permute.xlu0 %1480
        %1484 = vset.pattern.permute.xlu0 0
        %1485 = vperm.xlu0 %1484, %v1458
        %v1486 = vpop.permute.xlu0 %1485
        %1489 = vset.pattern.permute.xlu0 0
        %1490 = vperm.xlu0 %1489, %v1459
        %v1491 = vpop.permute.xlu0 %1490
        %v1497 = vunpack.c.l.b16 %v1465
        %v1498 = vunpack.c.l.b16 %v1466
        %v1499 = vunpack.c.l.b16 %v1467
        %v1500 = vunpack.c.l.b16 %v1468
        %v1501 = vpack.c.b16 %v1498, %v1497
        %v1502 = vpack.c.b16 %v1500, %v1499
        %v1504 = vsel %vm730, %v1501, 0
        %v1507 = vsel %vm730, %v1502, 0
        %1509 = vmatprep.subr.bf16.mxu0 %v1470
        %1510 = vmatpush1.bf16.msra.mxu0 %v1469
        %1511 = vmatprep.subr.bf16.mxu0 %v1472
        %1512 = vmatpush1.bf16.msra.mxu0 %v1471
        %1513 = vmatprep.subr.bf16.mxu0 0
        %1514 = vmatpush1.bf16.msra.mxu0 0
        %1515 = vmatprep.subr.bf16.mxu0 0
        %1516 = vmatpush1.bf16.msra.mxu0 0
        %1517 = vmatprep.subr.bf16.mxu0 0
        %1518 = vmatpush1.bf16.msra.mxu0 0
        %1519 = vmatprep.subr.bf16.mxu0 0
        %1520 = vmatpush1.bf16.msra.mxu0 0
        %1521 = vmatprep.subr.bf16.mxu0 0
        %1522 = vmatpush1.bf16.msra.mxu0 0
        %1523 = vmatprep.subr.bf16.mxu0 0
        %1524 = vmatpush1.bf16.msra.mxu0 0
        %1525 = vmatprep.subr.bf16.mxu0 0
        %1526 = vmatpush1.bf16.msra.mxu0 0
        %1527 = vmatprep.subr.bf16.mxu0 0
        %1528 = vmatpush1.bf16.msra.mxu0 0
        %1529 = vmatprep.subr.bf16.mxu0 0
        %1530 = vmatpush1.bf16.msra.mxu0 0
        %1531 = vmatprep.subr.bf16.mxu0 0
        %1532 = vmatpush1.bf16.msra.mxu0 0
        %1533 = vmatprep.subr.bf16.mxu0 0
        %1534 = vmatpush1.bf16.msra.mxu0 0
        %1535 = vmatprep.subr.bf16.mxu0 0
        %1536 = vmatpush1.bf16.msra.mxu0 0
        %1537 = vmatprep.subr.bf16.mxu0 0
        %1538 = vmatpush1.bf16.msra.mxu0 0
        %1539 = vmatprep.subr.bf16.mxu0 0
        %1540 = vmatpush1.bf16.msra.mxu0 0
        %1541 = vmatprep.mubr.bf16.mxu0 0
        %1542 = vmatmul.mubr.bf16.gmra.mrb[0].mxu0 %v1504
        %v1543 = vpop.f32.mrb[0].mxu0
        %v1544 = vadd.f32 %v1476, %v1543
        %v1545 = vpop.f32.mrb[0].mxu0
        %v1546 = vadd.f32 %v1476, %v1545
        %v1547 = vpop.f32.mrb[0].mxu0
        %v1548 = vadd.f32 %v1481, %v1547
        %v1549 = vpop.f32.mrb[0].mxu0
        %v1550 = vadd.f32 %v1481, %v1549
        %1551 = vmatprep.mubr.bf16.mxu0 0
        %1552 = vmatmul.mubr.bf16.gmra.mrb[0].mxu0 %v1507
        %v1553 = vpop.f32.mrb[0].mxu0
        %v1554 = vadd.f32 %v1486, %v1553
        %v1555 = vpop.f32.mrb[0].mxu0
        %v1556 = vadd.f32 %v1486, %v1555
        %v1557 = vpop.f32.mrb[0].mxu0
        %v1558 = vadd.f32 %v1491, %v1557
        %v1559 = vpop.f32.mrb[0].mxu0
        %v1560 = vadd.f32 %v1491, %v1559
        %1561 = vdwg.mxu0
        %vm1562 = vcmp.ge.f32.partialorder %v1544, 0.0
        %vm1563 = vcmp.ge.f32.partialorder %v1546, 0.0
        %vm1564 = vcmp.ge.f32.partialorder %v1548, 0.0
        %vm1565 = vcmp.ge.f32.partialorder %v1550, 0.0
        %vm1566 = vcmp.ge.f32.partialorder %v1554, 0.0
        %vm1567 = vcmp.ge.f32.partialorder %v1556, 0.0
        %vm1568 = vcmp.ge.f32.partialorder %v1558, 0.0
        %vm1569 = vcmp.ge.f32.partialorder %v1560, 0.0
        %s1570 = sld [smem:[#allocation3 + $0x1]]
        %v1571 = vstv %s1570
        %v1572 = vmul.f32 %v1571, %v1544
        %v1573 = vmul.f32 %v1571, %v1546
        %v1574 = vmul.f32 %v1571, %v1548
        %v1575 = vmul.f32 %v1571, %v1550
        %v1576 = vmul.f32 %v1571, %v1554
        %v1577 = vmul.f32 %v1571, %v1556
        %v1578 = vmul.f32 %v1571, %v1558
        %v1579 = vmul.f32 %v1571, %v1560
        %v1580 = vsel %vm1562, %v1544, %v1572
        %v1581 = vsel %vm1563, %v1546, %v1573
        %v1582 = vsel %vm1564, %v1548, %v1574
        %v1583 = vsel %vm1565, %v1550, %v1575
        %v1584 = vsel %vm1566, %v1554, %v1576
        %v1585 = vsel %vm1567, %v1556, %v1577
        %v1586 = vsel %vm1568, %v1558, %v1578
        %v1587 = vsel %vm1569, %v1560, %v1579
        %v1588 = vadd.f32 %v1580, %v1581
        %v1589 = vadd.f32 %v1588, %v1582
        %v1590 = vadd.f32 %v1589, %v1583
        %v1591 = vadd.f32 %v1590, %v1584
        %v1592 = vadd.f32 %v1591, %v1585
        %v1593 = vadd.f32 %v1592, %v1586
        %v1594 = vadd.f32 %v1593, %v1587
        %1595 = vadd.xlane.f32.xlu0 %v1594
        %v1596 = vpop.xlane.xlu0 %1595
        %v1597 = vrot.slane %v1596, 4
        %v1598 = vadd.f32 %v1596, %v1597
        %v1599 = vrot.slane %v1598, 2
        %v1600 = vadd.f32 %v1598, %v1599
        %v1601 = vrot.slane %v1600, 1
        %v1602 = vadd.f32 %v1600, %v1601
        %s1603 = vtos %v1602
        %v1604 = vstv %s1603
        %v1605 = vmul.f32 %v1580, %v1580
        %v1606 = vmul.f32 %v1581, %v1581
        %v1607 = vmul.f32 %v1582, %v1582
        %v1608 = vmul.f32 %v1583, %v1583
        %v1609 = vmul.f32 %v1584, %v1584
        %v1610 = vmul.f32 %v1585, %v1585
        %v1611 = vmul.f32 %v1586, %v1586
        %v1612 = vmul.f32 %v1587, %v1587
        %v1613 = vadd.f32 %v1605, %v1606
        %v1614 = vadd.f32 %v1613, %v1607
        %v1615 = vadd.f32 %v1614, %v1608
        %v1616 = vadd.f32 %v1615, %v1609
        %v1617 = vadd.f32 %v1616, %v1610
        %v1618 = vadd.f32 %v1617, %v1611
        %v1619 = vadd.f32 %v1618, %v1612
        %1620 = vadd.xlane.f32.xlu0 %v1619
        %v1621 = vpop.xlane.xlu0 %1620
        %v1622 = vrot.slane %v1621, 4
        %v1623 = vadd.f32 %v1621, %v1622
        %v1624 = vrot.slane %v1623, 2
        %v1625 = vadd.f32 %v1623, %v1624
        %v1626 = vrot.slane %v1625, 1
        %v1627 = vadd.f32 %v1625, %v1626
        %s1628 = vtos %v1627
        %v1629 = vstv %s1628
        %v1630 = vmul.f32 %v1604, 0.00012207031
        %v1631 = vmul.f32 %v1629, 0.00012207031
        %v1632 = vmul.f32 %v1630, %v1630
        %v1633 = vsub.f32 %v1631, %v1632
        %v1634 = vmax.f32 %v1633, 0.0
        %v1635 = vadd.f32 %v1634, 1e-08
        %v1636 = vrsqrt.pop %v1635
        %v1637 = vmul.f32 %v1456, %v1636
        %v1638 = vmul.f32 %v1457, %v1636
        %v1639 = vmul.f32 %v1458, %v1636
        %v1640 = vmul.f32 %v1459, %v1636
        %v1641 = vmul.f32 %v1630, %v1637
        %v1642 = vmul.f32 %v1630, %v1638
        %v1643 = vmul.f32 %v1630, %v1639
        %v1644 = vmul.f32 %v1630, %v1640
        %1649 = vrot.lane.b32.xlu0 %v1641, 1
        %v1650 = vpop.permute.xlu0 %1649
        %1651 = vrot.lane.b32.xlu0 %v1642, 1
        %v1652 = vpop.permute.xlu0 %1651
        %1653 = vrot.lane.b32.xlu0 %v1643, 1
        %v1654 = vpop.permute.xlu0 %1653
        %1655 = vrot.lane.b32.xlu0 %v1644, 1
        %v1656 = vpop.permute.xlu0 %1655
        %v1661 = vsub.f32 %v1456, %v1650
        %v1662 = vsub.f32 %v1457, %v1652
        %v1663 = vsub.f32 %v1458, %v1654
        %v1664 = vsub.f32 %v1459, %v1656
        %1666 = vset.pattern.permute.xlu0 1
        %1667 = vperm.xlu0 %1666, %v1637
        %v1668 = vpop.permute.xlu0 %1667
        %1671 = vset.pattern.permute.xlu0 1
        %1672 = vperm.xlu0 %1671, %v1638
        %v1673 = vpop.permute.xlu0 %1672
        %1676 = vset.pattern.permute.xlu0 1
        %1677 = vperm.xlu0 %1676, %v1639
        %v1678 = vpop.permute.xlu0 %1677
        %1681 = vset.pattern.permute.xlu0 1
        %1682 = vperm.xlu0 %1681, %v1640
        %v1683 = vpop.permute.xlu0 %1682
        %v1685 = vmul.f32 %v1580, %v1668
        %v1686 = vmul.f32 %v1581, %v1668
        %v1687 = vmul.f32 %v1582, %v1673
        %v1688 = vmul.f32 %v1583, %v1673
        %v1689 = vmul.f32 %v1584, %v1678
        %v1690 = vmul.f32 %v1585, %v1678
        %v1691 = vmul.f32 %v1586, %v1683
        %v1692 = vmul.f32 %v1587, %v1683
        %1694 = vset.pattern.permute.xlu0 2
        %1695 = vperm.xlu0 %1694, %v1661
        %v1696 = vpop.permute.xlu0 %1695
        %1699 = vset.pattern.permute.xlu0 2
        %1700 = vperm.xlu0 %1699, %v1662
        %v1701 = vpop.permute.xlu0 %1700
        %1704 = vset.pattern.permute.xlu0 2
        %1705 = vperm.xlu0 %1704, %v1663
        %v1706 = vpop.permute.xlu0 %1705
        %1709 = vset.pattern.permute.xlu0 2
        %1710 = vperm.xlu0 %1709, %v1664
        %v1711 = vpop.permute.xlu0 %1710
        %v1713 = vadd.f32 %v1685, %v1696
        %v1714 = vadd.f32 %v1686, %v1696
        %v1715 = vadd.f32 %v1687, %v1701
        %v1716 = vadd.f32 %v1688, %v1701
        %v1717 = vadd.f32 %v1689, %v1706
        %v1718 = vadd.f32 %v1690, %v1706
        %v1719 = vadd.f32 %v1691, %v1711
        %v1720 = vadd.f32 %v1692, %v1711
        %1721 = vrot.lane.b32.xlu0 %v1713, 2
        %v1722 = vpop.permute.xlu0 %1721
        %1723 = vrot.lane.b32.xlu0 %v1715, 2
        %v1724 = vpop.permute.xlu0 %1723
        %1725 = vrot.lane.b32.xlu0 %v1717, 2
        %v1726 = vpop.permute.xlu0 %1725
        %1727 = vrot.lane.b32.xlu0 %v1719, 2
        %v1728 = vpop.permute.xlu0 %1727
        %1729 = vrot.lane.b32.xlu0 %v1714, 2
        %v1730 = vpop.permute.xlu0 %1729
        %1731 = vrot.lane.b32.xlu0 %v1716, 2
        %v1732 = vpop.permute.xlu0 %1731
        %1733 = vrot.lane.b32.xlu0 %v1718, 2
        %v1734 = vpop.permute.xlu0 %1733
        %1735 = vrot.lane.b32.xlu0 %v1720, 2
        %v1736 = vpop.permute.xlu0 %1735
        %vm1737 = vcmp.lt.s32.totalorder %v491, 2
        %v1738 = vsel %vm1737, %v1722, %v1730
        %v1739 = vsel %vm1737, %v1724, %v1732
        %v1740 = vsel %vm1737, %v1726, %v1734
        %v1741 = vsel %vm1737, %v1728, %v1736
        %v1742 = vsel %vm1737, %v1730, %v1722
        %v1743 = vsel %vm1737, %v1732, %v1724
        %v1744 = vsel %vm1737, %v1734, %v1726
        %v1745 = vsel %vm1737, %v1736, %v1728
        %v1746 = vsel %vm497, 1, 0
        %v1747 = vsel %vm498, 1, 0
        %vm1748 = vcmp.eq.s32.totalorder %v1746, 1
        %vm1749 = vcmp.eq.s32.totalorder %v1747, 1
        %v1750 = vsel %vm1748, %v1742, 0.0
        %v1751 = vsel %vm1749, %v1738, 0.0
        %v1752 = vsel %vm1748, %v1743, 0.0
        %v1753 = vsel %vm1749, %v1739, 0.0
        %v1754 = vsel %vm1748, %v1744, 0.0
        %v1755 = vsel %vm1749, %v1740, 0.0
        %v1756 = vsel %vm1748, %v1745, 0.0
        %v1757 = vsel %vm1749, %v1741, 0.0
        %1758 = vset.pattern.permute.xlu0 3
        %1759 = vperm.xlu0 %1758, %v1456
        %v1760 = vpop.permute.xlu0 %1759
        %1762 = vset.pattern.permute.xlu0 3
        %1763 = vperm.xlu0 %1762, %v1457
        %v1764 = vpop.permute.xlu0 %1763
        %1766 = vset.pattern.permute.xlu0 3
        %1767 = vperm.xlu0 %1766, %v1458
        %v1768 = vpop.permute.xlu0 %1767
        %1770 = vset.pattern.permute.xlu0 3
        %1771 = vperm.xlu0 %1770, %v1459
        %v1772 = vpop.permute.xlu0 %1771
        %v1774 = vmul.f32 %v1760, %v1750
        %v1775 = vmul.f32 %v1760, %v1751
        %v1776 = vmul.f32 %v1764, %v1752
        %v1777 = vmul.f32 %v1764, %v1753
        %v1778 = vmul.f32 %v1768, %v1754
        %v1779 = vmul.f32 %v1768, %v1755
        %v1780 = vmul.f32 %v1772, %v1756
        %v1781 = vmul.f32 %v1772, %v1757
        %1782 = vset.pattern.permute.xlu0 4
        %1783 = vperm.xlu0 %1782, %v1456
        %v1784 = vpop.permute.xlu0 %1783
        %1786 = vset.pattern.permute.xlu0 4
        %1787 = vperm.xlu0 %1786, %v1457
        %v1788 = vpop.permute.xlu0 %1787
        %1790 = vset.pattern.permute.xlu0 4
        %1791 = vperm.xlu0 %1790, %v1458
        %v1792 = vpop.permute.xlu0 %1791
        %1794 = vset.pattern.permute.xlu0 4
        %1795 = vperm.xlu0 %1794, %v1459
        %v1796 = vpop.permute.xlu0 %1795
        %v1798 = vmul.f32 %v1784, %v1713
        %v1799 = vmul.f32 %v1784, %v1714
        %v1800 = vmul.f32 %v1788, %v1715
        %v1801 = vmul.f32 %v1788, %v1716
        %v1802 = vmul.f32 %v1792, %v1717
        %v1803 = vmul.f32 %v1792, %v1718
        %v1804 = vmul.f32 %v1796, %v1719
        %v1805 = vmul.f32 %v1796, %v1720
        %v1806 = vadd.f32 %v1774, %v1798
        %v1807 = vadd.f32 %v1775, %v1799
        %v1808 = vadd.f32 %v1776, %v1800
        %v1809 = vadd.f32 %v1777, %v1801
        %v1810 = vadd.f32 %v1778, %v1802
        %v1811 = vadd.f32 %v1779, %v1803
        %v1812 = vadd.f32 %v1780, %v1804
        %v1813 = vadd.f32 %v1781, %v1805
        %1814 = vrot.lane.b32.xlu0 %v1713, 126
        %v1815 = vpop.permute.xlu0 %1814
        %1816 = vrot.lane.b32.xlu0 %v1715, 126
        %v1817 = vpop.permute.xlu0 %1816
        %1818 = vrot.lane.b32.xlu0 %v1717, 126
        %v1819 = vpop.permute.xlu0 %1818
        %1820 = vrot.lane.b32.xlu0 %v1719, 126
        %v1821 = vpop.permute.xlu0 %1820
        %1822 = vrot.lane.b32.xlu0 %v1714, 126
        %v1823 = vpop.permute.xlu0 %1822
        %1824 = vrot.lane.b32.xlu0 %v1716, 126
        %v1825 = vpop.permute.xlu0 %1824
        %1826 = vrot.lane.b32.xlu0 %v1718, 126
        %v1827 = vpop.permute.xlu0 %1826
        %1828 = vrot.lane.b32.xlu0 %v1720, 126
        %v1829 = vpop.permute.xlu0 %1828
        %vm1830 = vcmp.lt.s32.totalorder %v491, 126
        %v1831 = vsel %vm1830, %v1815, %v1823
        %v1832 = vsel %vm1830, %v1817, %v1825
        %v1833 = vsel %vm1830, %v1819, %v1827
        %v1834 = vsel %vm1830, %v1821, %v1829
        %v1835 = vsel %vm1830, %v1823, %v1815
        %v1836 = vsel %vm1830, %v1825, %v1817
        %v1837 = vsel %vm1830, %v1827, %v1819
        %v1838 = vsel %vm1830, %v1829, %v1821
        %v1839 = vsel %vm499, 1, 0
        %v1840 = vsel %vm500, 1, 0
        %vm1841 = vcmp.eq.s32.totalorder %v1839, 1
        %vm1842 = vcmp.eq.s32.totalorder %v1840, 1
        %v1843 = vsel %vm1841, %v1831, 0.0
        %v1844 = vsel %vm1842, %v1835, 0.0
        %v1845 = vsel %vm1841, %v1832, 0.0
        %v1846 = vsel %vm1842, %v1836, 0.0
        %v1847 = vsel %vm1841, %v1833, 0.0
        %v1848 = vsel %vm1842, %v1837, 0.0
        %v1849 = vsel %vm1841, %v1834, 0.0
        %v1850 = vsel %vm1842, %v1838, 0.0
        %1851 = vset.pattern.permute.xlu0 5
        %1852 = vperm.xlu0 %1851, %v1456
        %v1853 = vpop.permute.xlu0 %1852
        %1855 = vset.pattern.permute.xlu0 5
        %1856 = vperm.xlu0 %1855, %v1457
        %v1857 = vpop.permute.xlu0 %1856
        %1859 = vset.pattern.permute.xlu0 5
        %1860 = vperm.xlu0 %1859, %v1458
        %v1861 = vpop.permute.xlu0 %1860
        %1863 = vset.pattern.permute.xlu0 5
        %1864 = vperm.xlu0 %1863, %v1459
        %v1865 = vpop.permute.xlu0 %1864
        %v1867 = vmul.f32 %v1853, %v1843
        %v1868 = vmul.f32 %v1853, %v1844
        %v1869 = vmul.f32 %v1857, %v1845
        %v1870 = vmul.f32 %v1857, %v1846
        %v1871 = vmul.f32 %v1861, %v1847
        %v1872 = vmul.f32 %v1861, %v1848
        %v1873 = vmul.f32 %v1865, %v1849
        %v1874 = vmul.f32 %v1865, %v1850
        %v1875 = vadd.f32 %v1806, %v1867
        %v1876 = vadd.f32 %v1807, %v1868
        %v1877 = vadd.f32 %v1808, %v1869
        %v1878 = vadd.f32 %v1809, %v1870
        %v1879 = vadd.f32 %v1810, %v1871
        %v1880 = vadd.f32 %v1811, %v1872
        %v1881 = vadd.f32 %v1812, %v1873
        %v1882 = vadd.f32 %v1813, %v1874
        %1883 = vset.pattern.permute.xlu0 6
        %1884 = vperm.xlu0 %1883, %v1456
        %v1885 = vpop.permute.xlu0 %1884
        %1887 = vset.pattern.permute.xlu0 6
        %1888 = vperm.xlu0 %1887, %v1457
        %v1889 = vpop.permute.xlu0 %1888
        %1891 = vset.pattern.permute.xlu0 6
        %1892 = vperm.xlu0 %1891, %v1458
        %v1893 = vpop.permute.xlu0 %1892
        %1895 = vset.pattern.permute.xlu0 6
        %1896 = vperm.xlu0 %1895, %v1459
        %v1897 = vpop.permute.xlu0 %1896
        %v1899 = vadd.f32 %v1875, %v1885
        %v1900 = vadd.f32 %v1876, %v1885
        %v1901 = vadd.f32 %v1877, %v1889
        %v1902 = vadd.f32 %v1878, %v1889
        %v1903 = vadd.f32 %v1879, %v1893
        %v1904 = vadd.f32 %v1880, %v1893
        %v1905 = vadd.f32 %v1881, %v1897
        %v1906 = vadd.f32 %v1882, %v1897
        %vm1907 = vcmp.ge.f32.partialorder %v1899, 0.0
        %vm1908 = vcmp.ge.f32.partialorder %v1900, 0.0
        %vm1909 = vcmp.ge.f32.partialorder %v1901, 0.0
        %vm1910 = vcmp.ge.f32.partialorder %v1902, 0.0
        %vm1911 = vcmp.ge.f32.partialorder %v1903, 0.0
        %vm1912 = vcmp.ge.f32.partialorder %v1904, 0.0
        %vm1913 = vcmp.ge.f32.partialorder %v1905, 0.0
        %vm1914 = vcmp.ge.f32.partialorder %v1906, 0.0
        %s1915 = sld [smem:[#allocation7 + $0x1]]
        %v1916 = vstv %s1915
        %v1917 = vmul.f32 %v1916, %v1899
        %v1918 = vmul.f32 %v1916, %v1900
        %v1919 = vmul.f32 %v1916, %v1901
        %v1920 = vmul.f32 %v1916, %v1902
        %v1921 = vmul.f32 %v1916, %v1903
        %v1922 = vmul.f32 %v1916, %v1904
        %v1923 = vmul.f32 %v1916, %v1905
        %v1924 = vmul.f32 %v1916, %v1906
        %v1925 = vsel %vm1907, %v1899, %v1917
        %v1926 = vsel %vm1908, %v1900, %v1918
        %v1927 = vsel %vm1909, %v1901, %v1919
        %v1928 = vsel %vm1910, %v1902, %v1920
        %v1929 = vsel %vm1911, %v1903, %v1921
        %v1930 = vsel %vm1912, %v1904, %v1922
        %v1931 = vsel %vm1913, %v1905, %v1923
        %v1932 = vsel %vm1914, %v1906, %v1924
        %v1933 = vadd.f32 %v1925, %v1926
        %v1934 = vadd.f32 %v1933, %v1927
        %v1935 = vadd.f32 %v1934, %v1928
        %v1936 = vadd.f32 %v1935, %v1929
        %v1937 = vadd.f32 %v1936, %v1930
        %v1938 = vadd.f32 %v1937, %v1931
        %v1939 = vadd.f32 %v1938, %v1932
        %1940 = vadd.xlane.f32.xlu0 %v1939
        %v1941 = vpop.xlane.xlu0 %1940
        %v1942 = vrot.slane %v1941, 4
        %v1943 = vadd.f32 %v1941, %v1942
        %v1944 = vrot.slane %v1943, 2
        %v1945 = vadd.f32 %v1943, %v1944
        %v1946 = vrot.slane %v1945, 1
        %v1947 = vadd.f32 %v1945, %v1946
        %s1948 = vtos %v1947
        %v1949 = vstv %s1948
        %v1950 = vmul.f32 %v1925, %v1925
        %v1951 = vmul.f32 %v1926, %v1926
        %v1952 = vmul.f32 %v1927, %v1927
        %v1953 = vmul.f32 %v1928, %v1928
        %v1954 = vmul.f32 %v1929, %v1929
        %v1955 = vmul.f32 %v1930, %v1930
        %v1956 = vmul.f32 %v1931, %v1931
        %v1957 = vmul.f32 %v1932, %v1932
        %v1958 = vadd.f32 %v1950, %v1951
        %v1959 = vadd.f32 %v1958, %v1952
        %v1960 = vadd.f32 %v1959, %v1953
        %v1961 = vadd.f32 %v1960, %v1954
        %v1962 = vadd.f32 %v1961, %v1955
        %v1963 = vadd.f32 %v1962, %v1956
        %v1964 = vadd.f32 %v1963, %v1957
        %1965 = vadd.xlane.f32.xlu0 %v1964
        %v1966 = vpop.xlane.xlu0 %1965
        %v1967 = vrot.slane %v1966, 4
        %v1968 = vadd.f32 %v1966, %v1967
        %v1969 = vrot.slane %v1968, 2
        %v1970 = vadd.f32 %v1968, %v1969
        %v1971 = vrot.slane %v1970, 1
        %v1972 = vadd.f32 %v1970, %v1971
        %s1973 = vtos %v1972
        %v1974 = vstv %s1973
        %v1975 = vmul.f32 %v1949, 0.00012207031
        %v1976 = vmul.f32 %v1974, 0.00012207031
        %v1977 = vmul.f32 %v1975, %v1975
        %v1978 = vsub.f32 %v1976, %v1977
        %v1979 = vmax.f32 %v1978, 0.0
        %v1980 = vadd.f32 %v1979, 1e-08
        %v1981 = vrsqrt.pop %v1980
        %v1982 = vmul.f32 %v1456, %v1981
        %v1983 = vmul.f32 %v1457, %v1981
        %v1984 = vmul.f32 %v1458, %v1981
        %v1985 = vmul.f32 %v1459, %v1981
        %v1986 = vmul.f32 %v1975, %v1982
        %v1987 = vmul.f32 %v1975, %v1983
        %v1988 = vmul.f32 %v1975, %v1984
        %v1989 = vmul.f32 %v1975, %v1985
        %1994 = vrot.lane.b32.xlu0 %v1986, 1
        %v1995 = vpop.permute.xlu0 %1994
        %1996 = vrot.lane.b32.xlu0 %v1987, 1
        %v1997 = vpop.permute.xlu0 %1996
        %1998 = vrot.lane.b32.xlu0 %v1988, 1
        %v1999 = vpop.permute.xlu0 %1998
        %2000 = vrot.lane.b32.xlu0 %v1989, 1
        %v2001 = vpop.permute.xlu0 %2000
        %v2006 = vsub.f32 %v1456, %v1995
        %v2007 = vsub.f32 %v1457, %v1997
        %v2008 = vsub.f32 %v1458, %v1999
        %v2009 = vsub.f32 %v1459, %v2001
        %2011 = vset.pattern.permute.xlu0 7
        %2012 = vperm.xlu0 %2011, %v1982
        %v2013 = vpop.permute.xlu0 %2012
        %2016 = vset.pattern.permute.xlu0 7
        %2017 = vperm.xlu0 %2016, %v1983
        %v2018 = vpop.permute.xlu0 %2017
        %2021 = vset.pattern.permute.xlu0 7
        %2022 = vperm.xlu0 %2021, %v1984
        %v2023 = vpop.permute.xlu0 %2022
        %2026 = vset.pattern.permute.xlu0 7
        %2027 = vperm.xlu0 %2026, %v1985
        %v2028 = vpop.permute.xlu0 %2027
        %v2030 = vmul.f32 %v1925, %v2013
        %v2031 = vmul.f32 %v1926, %v2013
        %v2032 = vmul.f32 %v1927, %v2018
        %v2033 = vmul.f32 %v1928, %v2018
        %v2034 = vmul.f32 %v1929, %v2023
        %v2035 = vmul.f32 %v1930, %v2023
        %v2036 = vmul.f32 %v1931, %v2028
        %v2037 = vmul.f32 %v1932, %v2028
        %2039 = vset.pattern.permute.xlu0 8
        %2040 = vperm.xlu0 %2039, %v2006
        %v2041 = vpop.permute.xlu0 %2040
        %2044 = vset.pattern.permute.xlu0 8
        %2045 = vperm.xlu0 %2044, %v2007
        %v2046 = vpop.permute.xlu0 %2045
        %2049 = vset.pattern.permute.xlu0 8
        %2050 = vperm.xlu0 %2049, %v2008
        %v2051 = vpop.permute.xlu0 %2050
        %2054 = vset.pattern.permute.xlu0 8
        %2055 = vperm.xlu0 %2054, %v2009
        %v2056 = vpop.permute.xlu0 %2055
        %v2058 = vadd.f32 %v2030, %v2041
        %v2059 = vadd.f32 %v2031, %v2041
        %v2060 = vadd.f32 %v2032, %v2046
        %v2061 = vadd.f32 %v2033, %v2046
        %v2062 = vadd.f32 %v2034, %v2051
        %v2063 = vadd.f32 %v2035, %v2051
        %v2064 = vadd.f32 %v2036, %v2056
        %v2065 = vadd.f32 %v2037, %v2056
        %s2066 = scalar_lea.vmem [#allocation16], 32
        %v2067 = vld [vmem:[%s2066] sm:$0xf]
        %v2068 = vld [vmem:[%s2066 + $0x4] sm:$0xf]
        %v2069 = vld [vmem:[%s2066 + $0x8] sm:$0xf]
        %v2070 = vld [vmem:[%s2066 + $0xc] sm:$0xf]
        %v2071 = vld [vmem:[%s2066 + $0x10] sm:$0xf]
        %v2072 = vld [vmem:[%s2066 + $0x14] sm:$0xf]
        %v2073 = vld [vmem:[%s2066 + $0x18] sm:$0xf]
        %v2074 = vld [vmem:[%s2066 + $0x1c] sm:$0xf]
        %v2075 = vpack.c.bf16 %v2060, %v2058
        %v2076 = vpack.c.bf16 %v2061, %v2059
        %v2077 = vpack.c.bf16 %v2064, %v2062
        %v2078 = vpack.c.bf16 %v2065, %v2063
        %2079 = vset.pattern.permute.xlu0 9
        %2080 = vperm.xlu0 %2079, %v1456
        %v2081 = vpop.permute.xlu0 %2080
        %2083 = vset.pattern.permute.xlu0 9
        %2084 = vperm.xlu0 %2083, %v1457
        %v2085 = vpop.permute.xlu0 %2084
        %2087 = vset.pattern.permute.xlu0 9
        %2088 = vperm.xlu0 %2087, %v1458
        %v2089 = vpop.permute.xlu0 %2088
        %2091 = vset.pattern.permute.xlu0 9
        %2092 = vperm.xlu0 %2091, %v1459
        %v2093 = vpop.permute.xlu0 %2092
        %2096 = vset.pattern.permute.xlu0 9
        %2097 = vperm.xlu0 %2096, %v1460
        %v2098 = vpop.permute.xlu0 %2097
        %2101 = vset.pattern.permute.xlu0 9
        %2102 = vperm.xlu0 %2101, %v1461
        %v2103 = vpop.permute.xlu0 %2102
        %2106 = vset.pattern.permute.xlu0 9
        %2107 = vperm.xlu0 %2106, %v1462
        %v2108 = vpop.permute.xlu0 %2107
        %2111 = vset.pattern.permute.xlu0 9
        %2112 = vperm.xlu0 %2111, %v1463
        %v2113 = vpop.permute.xlu0 %2112
        %v2123 = vunpack.c.l.b16 %v2067
        %v2124 = vunpack.c.l.b16 %v2068
        %v2125 = vunpack.c.l.b16 %v2069
        %v2126 = vunpack.c.l.b16 %v2070
        %v2127 = vunpack.c.l.b16 %v2071
        %v2128 = vunpack.c.l.b16 %v2072
        %v2129 = vunpack.c.l.b16 %v2073
        %v2130 = vunpack.c.l.b16 %v2074
        %v2131 = vpack.c.b16 %v2124, %v2123
        %v2132 = vpack.c.b16 %v2126, %v2125
        %v2133 = vpack.c.b16 %v2128, %v2127
        %v2134 = vpack.c.b16 %v2130, %v2129
        %v2136 = vsel %vm730, %v2131, 0
        %v2139 = vsel %vm730, %v2132, 0
        %v2142 = vsel %vm730, %v2133, 0
        %v2145 = vsel %vm730, %v2134, 0
        %2147 = vmatprep.subr.bf16.mxu0 %v2076
        %2148 = vmatpush1.bf16.msra.mxu0 %v2075
        %2149 = vmatprep.subr.bf16.mxu0 %v2078
        %2150 = vmatpush1.bf16.msra.mxu0 %v2077
        %2151 = vmatprep.subr.bf16.mxu0 0
        %2152 = vmatpush1.bf16.msra.mxu0 0
        %2153 = vmatprep.subr.bf16.mxu0 0
        %2154 = vmatpush1.bf16.msra.mxu0 0
        %2155 = vmatprep.subr.bf16.mxu0 0
        %2156 = vmatpush1.bf16.msra.mxu0 0
        %2157 = vmatprep.subr.bf16.mxu0 0
        %2158 = vmatpush1.bf16.msra.mxu0 0
        %2159 = vmatprep.subr.bf16.mxu0 0
        %2160 = vmatpush1.bf16.msra.mxu0 0
        %2161 = vmatprep.subr.bf16.mxu0 0
        %2162 = vmatpush1.bf16.msra.mxu0 0
        %2163 = vmatprep.subr.bf16.mxu0 0
        %2164 = vmatpush1.bf16.msra.mxu0 0
        %2165 = vmatprep.subr.bf16.mxu0 0
        %2166 = vmatpush1.bf16.msra.mxu0 0
        %2167 = vmatprep.subr.bf16.mxu0 0
        %2168 = vmatpush1.bf16.msra.mxu0 0
        %2169 = vmatprep.subr.bf16.mxu0 0
        %2170 = vmatpush1.bf16.msra.mxu0 0
        %2171 = vmatprep.subr.bf16.mxu0 0
        %2172 = vmatpush1.bf16.msra.mxu0 0
        %2173 = vmatprep.subr.bf16.mxu0 0
        %2174 = vmatpush1.bf16.msra.mxu0 0
        %2175 = vmatprep.subr.bf16.mxu0 0
        %2176 = vmatpush1.bf16.msra.mxu0 0
        %2177 = vmatprep.subr.bf16.mxu0 0
        %2178 = vmatpush1.bf16.msra.mxu0 0
        %2179 = vmatprep.mubr.bf16.mxu0 0
        %2180 = vmatmul.mubr.bf16.gmra.mrb[0].mxu0 %v2136
        %v2181 = vpop.f32.mrb[0].mxu0
        %v2182 = vadd.f32 %v2081, %v2181
        %v2183 = vpop.f32.mrb[0].mxu0
        %v2184 = vadd.f32 %v2081, %v2183
        %v2185 = vpop.f32.mrb[0].mxu0
        %v2186 = vadd.f32 %v2085, %v2185
        %v2187 = vpop.f32.mrb[0].mxu0
        %v2188 = vadd.f32 %v2085, %v2187
        %2189 = vmatprep.mubr.bf16.mxu0 0
        %2190 = vmatmul.mubr.bf16.gmra.mrb[0].mxu0 %v2139
        %v2191 = vpop.f32.mrb[0].mxu0
        %v2192 = vadd.f32 %v2089, %v2191
        %v2193 = vpop.f32.mrb[0].mxu0
        %v2194 = vadd.f32 %v2089, %v2193
        %v2195 = vpop.f32.mrb[0].mxu0
        %v2196 = vadd.f32 %v2093, %v2195
        %v2197 = vpop.f32.mrb[0].mxu0
        %v2198 = vadd.f32 %v2093, %v2197
        %2199 = vmatprep.mubr.bf16.mxu0 0
        %2200 = vmatmul.mubr.bf16.gmra.mrb[0].mxu0 %v2142
        %v2201 = vpop.f32.mrb[0].mxu0
        %v2202 = vadd.f32 %v2098, %v2201
        %v2203 = vpop.f32.mrb[0].mxu0
        %v2204 = vadd.f32 %v2098, %v2203
        %v2205 = vpop.f32.mrb[0].mxu0
        %v2206 = vadd.f32 %v2103, %v2205
        %v2207 = vpop.f32.mrb[0].mxu0
        %v2208 = vadd.f32 %v2103, %v2207
        %2209 = vmatprep.mubr.bf16.mxu0 0
        %2210 = vmatmul.mubr.bf16.gmra.mrb[0].mxu0 %v2145
        %v2211 = vpop.f32.mrb[0].mxu0
        %v2212 = vadd.f32 %v2108, %v2211
        %v2213 = vpop.f32.mrb[0].mxu0
        %v2214 = vadd.f32 %v2108, %v2213
        %v2215 = vpop.f32.mrb[0].mxu0
        %v2216 = vadd.f32 %v2113, %v2215
        %v2217 = vpop.f32.mrb[0].mxu0
        %v2218 = vadd.f32 %v2113, %v2217
        %2219 = vdwg.mxu0
        %v2220 = vadd.f32 %v1447, %v2182
        %v2221 = vadd.f32 %v1448, %v2184
        %v2222 = vadd.f32 %v1449, %v2186
        %v2223 = vadd.f32 %v1450, %v2188
        %v2224 = vadd.f32 %v1451, %v2192
        %v2225 = vadd.f32 %v1452, %v2194
        %v2226 = vadd.f32 %v1453, %v2196
        %v2227 = vadd.f32 %v1454, %v2198
        %v2228 = vadd.f32 %v1429, %v2202
        %v2229 = vadd.f32 %v1431, %v2204
        %v2230 = vadd.f32 %v1433, %v2206
        %v2231 = vadd.f32 %v1435, %v2208
        %v2232 = vadd.f32 %v1439, %v2212
        %v2233 = vadd.f32 %v1441, %v2214
        %v2234 = vadd.f32 %v1443, %v2216
        %v2235 = vadd.f32 %v1445, %v2218
        %s2236 = scalar_lea.vmem [#allocation13], 128
        %v2237 = vld [vmem:[%s2236] sm:$0xff]
        %v2238 = vld [vmem:[%s2236 + $0x8] sm:$0xff]
        %v2239 = vld [vmem:[%s2236 + $0x10] sm:$0xff]
        %v2240 = vld [vmem:[%s2236 + $0x18] sm:$0xff]
        %v2241 = vld [vmem:[%s2236 + $0x20] sm:$0xff]
        %v2242 = vld [vmem:[%s2236 + $0x28] sm:$0xff]
        %v2243 = vld [vmem:[%s2236 + $0x30] sm:$0xff]
        %v2244 = vld [vmem:[%s2236 + $0x38] sm:$0xff]
        %s2245 = scalar_lea.vmem [#allocation15], 32
        %v2246 = vld [vmem:[%s2245] sm:$0xf]
        %v2247 = vld [vmem:[%s2245 + $0x4] sm:$0xf]
        %v2248 = vld [vmem:[%s2245 + $0x8] sm:$0xf]
        %v2249 = vld [vmem:[%s2245 + $0xc] sm:$0xf]
        %v2250 = vpack.c.bf16 %v2222, %v2220
        %v2251 = vpack.c.bf16 %v2223, %v2221
        %v2252 = vpack.c.bf16 %v2226, %v2224
        %v2253 = vpack.c.bf16 %v2227, %v2225
        %2255 = vset.pattern.permute.xlu0 0
        %2256 = vperm.xlu0 %2255, %v2237
        %v2257 = vpop.permute.xlu0 %2256
        %2260 = vset.pattern.permute.xlu0 0
        %2261 = vperm.xlu0 %2260, %v2238
        %v2262 = vpop.permute.xlu0 %2261
        %2265 = vset.pattern.permute.xlu0 0
        %2266 = vperm.xlu0 %2265, %v2239
        %v2267 = vpop.permute.xlu0 %2266
        %2270 = vset.pattern.permute.xlu0 0
        %2271 = vperm.xlu0 %2270, %v2240
        %v2272 = vpop.permute.xlu0 %2271
        %v2278 = vunpack.c.l.b16 %v2246
        %v2279 = vunpack.c.l.b16 %v2247
        %v2280 = vunpack.c.l.b16 %v2248
        %v2281 = vunpack.c.l.b16 %v2249
        %v2282 = vpack.c.b16 %v2279, %v2278
        %v2283 = vpack.c.b16 %v2281, %v2280
        %v2285 = vsel %vm730, %v2282, 0
        %v2288 = vsel %vm730, %v2283, 0
        %2290 = vmatprep.subr.bf16.mxu0 %v2251
        %2291 = vmatpush1.bf16.msra.mxu0 %v2250
        %2292 = vmatprep.subr.bf16.mxu0 %v2253
        %2293 = vmatpush1.bf16.msra.mxu0 %v2252
        %2294 = vmatprep.subr.bf16.mxu0 0
        %2295 = vmatpush1.bf16.msra.mxu0 0
        %2296 = vmatprep.subr.bf16.mxu0 0
        %2297 = vmatpush1.bf16.msra.mxu0 0
        %2298 = vmatprep.subr.bf16.mxu0 0
        %2299 = vmatpush1.bf16.msra.mxu0 0
        %2300 = vmatprep.subr.bf16.mxu0 0
        %2301 = vmatpush1.bf16.msra.mxu0 0
        %2302 = vmatprep.subr.bf16.mxu0 0
        %2303 = vmatpush1.bf16.msra.mxu0 0
        %2304 = vmatprep.subr.bf16.mxu0 0
        %2305 = vmatpush1.bf16.msra.mxu0 0
        %2306 = vmatprep.subr.bf16.mxu0 0
        %2307 = vmatpush1.bf16.msra.mxu0 0
        %2308 = vmatprep.subr.bf16.mxu0 0
        %2309 = vmatpush1.bf16.msra.mxu0 0
        %2310 = vmatprep.subr.bf16.mxu0 0
        %2311 = vmatpush1.bf16.msra.mxu0 0
        %2312 = vmatprep.subr.bf16.mxu0 0
        %2313 = vmatpush1.bf16.msra.mxu0 0
        %2314 = vmatprep.subr.bf16.mxu0 0
        %2315 = vmatpush1.bf16.msra.mxu0 0
        %2316 = vmatprep.subr.bf16.mxu0 0
        %2317 = vmatpush1.bf16.msra.mxu0 0
        %2318 = vmatprep.subr.bf16.mxu0 0
        %2319 = vmatpush1.bf16.msra.mxu0 0
        %2320 = vmatprep.subr.bf16.mxu0 0
        %2321 = vmatpush1.bf16.msra.mxu0 0
        %2322 = vmatprep.mubr.bf16.mxu0 0
        %2323 = vmatmul.mubr.bf16.gmra.mrb[0].mxu0 %v2285
        %v2324 = vpop.f32.mrb[0].mxu0
        %v2325 = vadd.f32 %v2257, %v2324
        %v2326 = vpop.f32.mrb[0].mxu0
        %v2327 = vadd.f32 %v2257, %v2326
        %v2328 = vpop.f32.mrb[0].mxu0
        %v2329 = vadd.f32 %v2262, %v2328
        %v2330 = vpop.f32.mrb[0].mxu0
        %v2331 = vadd.f32 %v2262, %v2330
        %2332 = vmatprep.mubr.bf16.mxu0 0
        %2333 = vmatmul.mubr.bf16.gmra.mrb[0].mxu0 %v2288
        %v2334 = vpop.f32.mrb[0].mxu0
        %v2335 = vadd.f32 %v2267, %v2334
        %v2336 = vpop.f32.mrb[0].mxu0
        %v2337 = vadd.f32 %v2267, %v2336
        %v2338 = vpop.f32.mrb[0].mxu0
        %v2339 = vadd.f32 %v2272, %v2338
        %v2340 = vpop.f32.mrb[0].mxu0
        %v2341 = vadd.f32 %v2272, %v2340
        %2342 = vdwg.mxu0
        %vm2343 = vcmp.ge.f32.partialorder %v2325, 0.0
        %vm2344 = vcmp.ge.f32.partialorder %v2327, 0.0
        %vm2345 = vcmp.ge.f32.partialorder %v2329, 0.0
        %vm2346 = vcmp.ge.f32.partialorder %v2331, 0.0
        %vm2347 = vcmp.ge.f32.partialorder %v2335, 0.0
        %vm2348 = vcmp.ge.f32.partialorder %v2337, 0.0
        %vm2349 = vcmp.ge.f32.partialorder %v2339, 0.0
        %vm2350 = vcmp.ge.f32.partialorder %v2341, 0.0
        %s2351 = sld [smem:[#allocation3 + $0x2]]
        %v2352 = vstv %s2351
        %v2353 = vmul.f32 %v2352, %v2325
        %v2354 = vmul.f32 %v2352, %v2327
        %v2355 = vmul.f32 %v2352, %v2329
        %v2356 = vmul.f32 %v2352, %v2331
        %v2357 = vmul.f32 %v2352, %v2335
        %v2358 = vmul.f32 %v2352, %v2337
        %v2359 = vmul.f32 %v2352, %v2339
        %v2360 = vmul.f32 %v2352, %v2341
        %v2361 = vsel %vm2343, %v2325, %v2353
        %v2362 = vsel %vm2344, %v2327, %v2354
        %v2363 = vsel %vm2345, %v2329, %v2355
        %v2364 = vsel %vm2346, %v2331, %v2356
        %v2365 = vsel %vm2347, %v2335, %v2357
        %v2366 = vsel %vm2348, %v2337, %v2358
        %v2367 = vsel %vm2349, %v2339, %v2359
        %v2368 = vsel %vm2350, %v2341, %v2360
        %v2369 = vadd.f32 %v2361, %v2362
        %v2370 = vadd.f32 %v2369, %v2363
        %v2371 = vadd.f32 %v2370, %v2364
        %v2372 = vadd.f32 %v2371, %v2365
        %v2373 = vadd.f32 %v2372, %v2366
        %v2374 = vadd.f32 %v2373, %v2367
        %v2375 = vadd.f32 %v2374, %v2368
        %2376 = vadd.xlane.f32.xlu0 %v2375
        %v2377 = vpop.xlane.xlu0 %2376
        %v2378 = vrot.slane %v2377, 4
        %v2379 = vadd.f32 %v2377, %v2378
        %v2380 = vrot.slane %v2379, 2
        %v2381 = vadd.f32 %v2379, %v2380
        %v2382 = vrot.slane %v2381, 1
        %v2383 = vadd.f32 %v2381, %v2382
        %s2384 = vtos %v2383
        %v2385 = vstv %s2384
        %v2386 = vmul.f32 %v2361, %v2361
        %v2387 = vmul.f32 %v2362, %v2362
        %v2388 = vmul.f32 %v2363, %v2363
        %v2389 = vmul.f32 %v2364, %v2364
        %v2390 = vmul.f32 %v2365, %v2365
        %v2391 = vmul.f32 %v2366, %v2366
        %v2392 = vmul.f32 %v2367, %v2367
        %v2393 = vmul.f32 %v2368, %v2368
        %v2394 = vadd.f32 %v2386, %v2387
        %v2395 = vadd.f32 %v2394, %v2388
        %v2396 = vadd.f32 %v2395, %v2389
        %v2397 = vadd.f32 %v2396, %v2390
        %v2398 = vadd.f32 %v2397, %v2391
        %v2399 = vadd.f32 %v2398, %v2392
        %v2400 = vadd.f32 %v2399, %v2393
        %2401 = vadd.xlane.f32.xlu0 %v2400
        %v2402 = vpop.xlane.xlu0 %2401
        %v2403 = vrot.slane %v2402, 4
        %v2404 = vadd.f32 %v2402, %v2403
        %v2405 = vrot.slane %v2404, 2
        %v2406 = vadd.f32 %v2404, %v2405
        %v2407 = vrot.slane %v2406, 1
        %v2408 = vadd.f32 %v2406, %v2407
        %s2409 = vtos %v2408
        %v2410 = vstv %s2409
        %v2411 = vmul.f32 %v2385, 0.00012207031
        %v2412 = vmul.f32 %v2410, 0.00012207031
        %v2413 = vmul.f32 %v2411, %v2411
        %v2414 = vsub.f32 %v2412, %v2413
        %v2415 = vmax.f32 %v2414, 0.0
        %v2416 = vadd.f32 %v2415, 1e-08
        %v2417 = vrsqrt.pop %v2416
        %v2418 = vmul.f32 %v2237, %v2417
        %v2419 = vmul.f32 %v2238, %v2417
        %v2420 = vmul.f32 %v2239, %v2417
        %v2421 = vmul.f32 %v2240, %v2417
        %v2422 = vmul.f32 %v2411, %v2418
        %v2423 = vmul.f32 %v2411, %v2419
        %v2424 = vmul.f32 %v2411, %v2420
        %v2425 = vmul.f32 %v2411, %v2421
        %2430 = vrot.lane.b32.xlu0 %v2422, 1
        %v2431 = vpop.permute.xlu0 %2430
        %2432 = vrot.lane.b32.xlu0 %v2423, 1
        %v2433 = vpop.permute.xlu0 %2432
        %2434 = vrot.lane.b32.xlu0 %v2424, 1
        %v2435 = vpop.permute.xlu0 %2434
        %2436 = vrot.lane.b32.xlu0 %v2425, 1
        %v2437 = vpop.permute.xlu0 %2436
        %v2442 = vsub.f32 %v2237, %v2431
        %v2443 = vsub.f32 %v2238, %v2433
        %v2444 = vsub.f32 %v2239, %v2435
        %v2445 = vsub.f32 %v2240, %v2437
        %2447 = vset.pattern.permute.xlu0 1
        %2448 = vperm.xlu0 %2447, %v2418
        %v2449 = vpop.permute.xlu0 %2448
        %2452 = vset.pattern.permute.xlu0 1
        %2453 = vperm.xlu0 %2452, %v2419
        %v2454 = vpop.permute.xlu0 %2453
        %2457 = vset.pattern.permute.xlu0 1
        %2458 = vperm.xlu0 %2457, %v2420
        %v2459 = vpop.permute.xlu0 %2458
        %2462 = vset.pattern.permute.xlu0 1
        %2463 = vperm.xlu0 %2462, %v2421
        %v2464 = vpop.permute.xlu0 %2463
        %v2466 = vmul.f32 %v2361, %v2449
        %v2467 = vmul.f32 %v2362, %v2449
        %v2468 = vmul.f32 %v2363, %v2454
        %v2469 = vmul.f32 %v2364, %v2454
        %v2470 = vmul.f32 %v2365, %v2459
        %v2471 = vmul.f32 %v2366, %v2459
        %v2472 = vmul.f32 %v2367, %v2464
        %v2473 = vmul.f32 %v2368, %v2464
        %2475 = vset.pattern.permute.xlu0 2
        %2476 = vperm.xlu0 %2475, %v2442
        %v2477 = vpop.permute.xlu0 %2476
        %2480 = vset.pattern.permute.xlu0 2
        %2481 = vperm.xlu0 %2480, %v2443
        %v2482 = vpop.permute.xlu0 %2481
        %2485 = vset.pattern.permute.xlu0 2
        %2486 = vperm.xlu0 %2485, %v2444
        %v2487 = vpop.permute.xlu0 %2486
        %2490 = vset.pattern.permute.xlu0 2
        %2491 = vperm.xlu0 %2490, %v2445
        %v2492 = vpop.permute.xlu0 %2491
        %v2494 = vadd.f32 %v2466, %v2477
        %v2495 = vadd.f32 %v2467, %v2477
        %v2496 = vadd.f32 %v2468, %v2482
        %v2497 = vadd.f32 %v2469, %v2482
        %v2498 = vadd.f32 %v2470, %v2487
        %v2499 = vadd.f32 %v2471, %v2487
        %v2500 = vadd.f32 %v2472, %v2492
        %v2501 = vadd.f32 %v2473, %v2492
        %2502 = vrot.lane.b32.xlu0 %v2494, 1
        %v2503 = vpop.permute.xlu0 %2502
        %2504 = vrot.lane.b32.xlu0 %v2496, 1
        %v2505 = vpop.permute.xlu0 %2504
        %2506 = vrot.lane.b32.xlu0 %v2498, 1
        %v2507 = vpop.permute.xlu0 %2506
        %2508 = vrot.lane.b32.xlu0 %v2500, 1
        %v2509 = vpop.permute.xlu0 %2508
        %2510 = vrot.lane.b32.xlu0 %v2495, 1
        %v2511 = vpop.permute.xlu0 %2510
        %2512 = vrot.lane.b32.xlu0 %v2497, 1
        %v2513 = vpop.permute.xlu0 %2512
        %2514 = vrot.lane.b32.xlu0 %v2499, 1
        %v2515 = vpop.permute.xlu0 %2514
        %2516 = vrot.lane.b32.xlu0 %v2501, 1
        %v2517 = vpop.permute.xlu0 %2516
        %v2518 = vsel %vm965, %v2503, %v2511
        %v2519 = vsel %vm965, %v2505, %v2513
        %v2520 = vsel %vm965, %v2507, %v2515
        %v2521 = vsel %vm965, %v2509, %v2517
        %v2522 = vsel %vm965, %v2511, %v2503
        %v2523 = vsel %vm965, %v2513, %v2505
        %v2524 = vsel %vm965, %v2515, %v2507
        %v2525 = vsel %vm965, %v2517, %v2509
        %v2526 = vsel %vm976, %v2522, 0.0
        %v2527 = vsel %vm977, %v2518, 0.0
        %v2528 = vsel %vm976, %v2523, 0.0
        %v2529 = vsel %vm977, %v2519, 0.0
        %v2530 = vsel %vm976, %v2524, 0.0
        %v2531 = vsel %vm977, %v2520, 0.0
        %v2532 = vsel %vm976, %v2525, 0.0
        %v2533 = vsel %vm977, %v2521, 0.0
        %2534 = vset.pattern.permute.xlu0 3
        %2535 = vperm.xlu0 %2534, %v2237
        %v2536 = vpop.permute.xlu0 %2535
        %2538 = vset.pattern.permute.xlu0 3
        %2539 = vperm.xlu0 %2538, %v2238
        %v2540 = vpop.permute.xlu0 %2539
        %2542 = vset.pattern.permute.xlu0 3
        %2543 = vperm.xlu0 %2542, %v2239
        %v2544 = vpop.permute.xlu0 %2543
        %2546 = vset.pattern.permute.xlu0 3
        %2547 = vperm.xlu0 %2546, %v2240
        %v2548 = vpop.permute.xlu0 %2547
        %v2550 = vmul.f32 %v2536, %v2526
        %v2551 = vmul.f32 %v2536, %v2527
        %v2552 = vmul.f32 %v2540, %v2528
        %v2553 = vmul.f32 %v2540, %v2529
        %v2554 = vmul.f32 %v2544, %v2530
        %v2555 = vmul.f32 %v2544, %v2531
        %v2556 = vmul.f32 %v2548, %v2532
        %v2557 = vmul.f32 %v2548, %v2533
        %2558 = vset.pattern.permute.xlu0 4
        %2559 = vperm.xlu0 %2558, %v2237
        %v2560 = vpop.permute.xlu0 %2559
        %2562 = vset.pattern.permute.xlu0 4
        %2563 = vperm.xlu0 %2562, %v2238
        %v2564 = vpop.permute.xlu0 %2563
        %2566 = vset.pattern.permute.xlu0 4
        %2567 = vperm.xlu0 %2566, %v2239
        %v2568 = vpop.permute.xlu0 %2567
        %2570 = vset.pattern.permute.xlu0 4
        %2571 = vperm.xlu0 %2570, %v2240
        %v2572 = vpop.permute.xlu0 %2571
        %v2574 = vmul.f32 %v2560, %v2494
        %v2575 = vmul.f32 %v2560, %v2495
        %v2576 = vmul.f32 %v2564, %v2496
        %v2577 = vmul.f32 %v2564, %v2497
        %v2578 = vmul.f32 %v2568, %v2498
        %v2579 = vmul.f32 %v2568, %v2499
        %v2580 = vmul.f32 %v2572, %v2500
        %v2581 = vmul.f32 %v2572, %v2501
        %v2582 = vadd.f32 %v2550, %v2574
        %v2583 = vadd.f32 %v2551, %v2575
        %v2584 = vadd.f32 %v2552, %v2576
        %v2585 = vadd.f32 %v2553, %v2577
        %v2586 = vadd.f32 %v2554, %v2578
        %v2587 = vadd.f32 %v2555, %v2579
        %v2588 = vadd.f32 %v2556, %v2580
        %v2589 = vadd.f32 %v2557, %v2581
        %2590 = vrot.lane.b32.xlu0 %v2494, 127
        %v2591 = vpop.permute.xlu0 %2590
        %2592 = vrot.lane.b32.xlu0 %v2496, 127
        %v2593 = vpop.permute.xlu0 %2592
        %2594 = vrot.lane.b32.xlu0 %v2498, 127
        %v2595 = vpop.permute.xlu0 %2594
        %2596 = vrot.lane.b32.xlu0 %v2500, 127
        %v2597 = vpop.permute.xlu0 %2596
        %2598 = vrot.lane.b32.xlu0 %v2495, 127
        %v2599 = vpop.permute.xlu0 %2598
        %2600 = vrot.lane.b32.xlu0 %v2497, 127
        %v2601 = vpop.permute.xlu0 %2600
        %2602 = vrot.lane.b32.xlu0 %v2499, 127
        %v2603 = vpop.permute.xlu0 %2602
        %2604 = vrot.lane.b32.xlu0 %v2501, 127
        %v2605 = vpop.permute.xlu0 %2604
        %v2606 = vsel %vm1058, %v2591, %v2599
        %v2607 = vsel %vm1058, %v2593, %v2601
        %v2608 = vsel %vm1058, %v2595, %v2603
        %v2609 = vsel %vm1058, %v2597, %v2605
        %v2610 = vsel %vm1058, %v2599, %v2591
        %v2611 = vsel %vm1058, %v2601, %v2593
        %v2612 = vsel %vm1058, %v2603, %v2595
        %v2613 = vsel %vm1058, %v2605, %v2597
        %v2614 = vsel %vm1069, %v2606, 0.0
        %v2615 = vsel %vm1070, %v2610, 0.0
        %v2616 = vsel %vm1069, %v2607, 0.0
        %v2617 = vsel %vm1070, %v2611, 0.0
        %v2618 = vsel %vm1069, %v2608, 0.0
        %v2619 = vsel %vm1070, %v2612, 0.0
        %v2620 = vsel %vm1069, %v2609, 0.0
        %v2621 = vsel %vm1070, %v2613, 0.0
        %2622 = vset.pattern.permute.xlu0 5
        %2623 = vperm.xlu0 %2622, %v2237
        %v2624 = vpop.permute.xlu0 %2623
        %2626 = vset.pattern.permute.xlu0 5
        %2627 = vperm.xlu0 %2626, %v2238
        %v2628 = vpop.permute.xlu0 %2627
        %2630 = vset.pattern.permute.xlu0 5
        %2631 = vperm.xlu0 %2630, %v2239
        %v2632 = vpop.permute.xlu0 %2631
        %2634 = vset.pattern.permute.xlu0 5
        %2635 = vperm.xlu0 %2634, %v2240
        %v2636 = vpop.permute.xlu0 %2635
        %v2638 = vmul.f32 %v2624, %v2614
        %v2639 = vmul.f32 %v2624, %v2615
        %v2640 = vmul.f32 %v2628, %v2616
        %v2641 = vmul.f32 %v2628, %v2617
        %v2642 = vmul.f32 %v2632, %v2618
        %v2643 = vmul.f32 %v2632, %v2619
        %v2644 = vmul.f32 %v2636, %v2620
        %v2645 = vmul.f32 %v2636, %v2621
        %v2646 = vadd.f32 %v2582, %v2638
        %v2647 = vadd.f32 %v2583, %v2639
        %v2648 = vadd.f32 %v2584, %v2640
        %v2649 = vadd.f32 %v2585, %v2641
        %v2650 = vadd.f32 %v2586, %v2642
        %v2651 = vadd.f32 %v2587, %v2643
        %v2652 = vadd.f32 %v2588, %v2644
        %v2653 = vadd.f32 %v2589, %v2645
        %2654 = vset.pattern.permute.xlu0 6
        %2655 = vperm.xlu0 %2654, %v2237
        %v2656 = vpop.permute.xlu0 %2655
        %2658 = vset.pattern.permute.xlu0 6
        %2659 = vperm.xlu0 %2658, %v2238
        %v2660 = vpop.permute.xlu0 %2659
        %2662 = vset.pattern.permute.xlu0 6
        %2663 = vperm.xlu0 %2662, %v2239
        %v2664 = vpop.permute.xlu0 %2663
        %2666 = vset.pattern.permute.xlu0 6
        %2667 = vperm.xlu0 %2666, %v2240
        %v2668 = vpop.permute.xlu0 %2667
        %v2670 = vadd.f32 %v2646, %v2656
        %v2671 = vadd.f32 %v2647, %v2656
        %v2672 = vadd.f32 %v2648, %v2660
        %v2673 = vadd.f32 %v2649, %v2660
        %v2674 = vadd.f32 %v2650, %v2664
        %v2675 = vadd.f32 %v2651, %v2664
        %v2676 = vadd.f32 %v2652, %v2668
        %v2677 = vadd.f32 %v2653, %v2668
        %vm2678 = vcmp.ge.f32.partialorder %v2670, 0.0
        %vm2679 = vcmp.ge.f32.partialorder %v2671, 0.0
        %vm2680 = vcmp.ge.f32.partialorder %v2672, 0.0
        %vm2681 = vcmp.ge.f32.partialorder %v2673, 0.0
        %vm2682 = vcmp.ge.f32.partialorder %v2674, 0.0
        %vm2683 = vcmp.ge.f32.partialorder %v2675, 0.0
        %vm2684 = vcmp.ge.f32.partialorder %v2676, 0.0
        %vm2685 = vcmp.ge.f32.partialorder %v2677, 0.0
        %s2686 = sld [smem:[#allocation7 + $0x2]]
        %v2687 = vstv %s2686
        %v2688 = vmul.f32 %v2687, %v2670
        %v2689 = vmul.f32 %v2687, %v2671
        %v2690 = vmul.f32 %v2687, %v2672
        %v2691 = vmul.f32 %v2687, %v2673
        %v2692 = vmul.f32 %v2687, %v2674
        %v2693 = vmul.f32 %v2687, %v2675
        %v2694 = vmul.f32 %v2687, %v2676
        %v2695 = vmul.f32 %v2687, %v2677
        %v2696 = vsel %vm2678, %v2670, %v2688
        %v2697 = vsel %vm2679, %v2671, %v2689
        %v2698 = vsel %vm2680, %v2672, %v2690
        %v2699 = vsel %vm2681, %v2673, %v2691
        %v2700 = vsel %vm2682, %v2674, %v2692
        %v2701 = vsel %vm2683, %v2675, %v2693
        %v2702 = vsel %vm2684, %v2676, %v2694
        %v2703 = vsel %vm2685, %v2677, %v2695
        %v2704 = vadd.f32 %v2696, %v2697
        %v2705 = vadd.f32 %v2704, %v2698
        %v2706 = vadd.f32 %v2705, %v2699
        %v2707 = vadd.f32 %v2706, %v2700
        %v2708 = vadd.f32 %v2707, %v2701
        %v2709 = vadd.f32 %v2708, %v2702
        %v2710 = vadd.f32 %v2709, %v2703
        %2711 = vadd.xlane.f32.xlu0 %v2710
        %v2712 = vpop.xlane.xlu0 %2711
        %v2713 = vrot.slane %v2712, 4
        %v2714 = vadd.f32 %v2712, %v2713
        %v2715 = vrot.slane %v2714, 2
        %v2716 = vadd.f32 %v2714, %v2715
        %v2717 = vrot.slane %v2716, 1
        %v2718 = vadd.f32 %v2716, %v2717
        %s2719 = vtos %v2718
        %v2720 = vstv %s2719
        %v2721 = vmul.f32 %v2696, %v2696
        %v2722 = vmul.f32 %v2697, %v2697
        %v2723 = vmul.f32 %v2698, %v2698
        %v2724 = vmul.f32 %v2699, %v2699
        %v2725 = vmul.f32 %v2700, %v2700
        %v2726 = vmul.f32 %v2701, %v2701
        %v2727 = vmul.f32 %v2702, %v2702
        %v2728 = vmul.f32 %v2703, %v2703
        %v2729 = vadd.f32 %v2721, %v2722
        %v2730 = vadd.f32 %v2729, %v2723
        %v2731 = vadd.f32 %v2730, %v2724
        %v2732 = vadd.f32 %v2731, %v2725
        %v2733 = vadd.f32 %v2732, %v2726
        %v2734 = vadd.f32 %v2733, %v2727
        %v2735 = vadd.f32 %v2734, %v2728
        %2736 = vadd.xlane.f32.xlu0 %v2735
        %v2737 = vpop.xlane.xlu0 %2736
        %v2738 = vrot.slane %v2737, 4
        %v2739 = vadd.f32 %v2737, %v2738
        %v2740 = vrot.slane %v2739, 2
        %v2741 = vadd.f32 %v2739, %v2740
        %v2742 = vrot.slane %v2741, 1
        %v2743 = vadd.f32 %v2741, %v2742
        %s2744 = vtos %v2743
        %v2745 = vstv %s2744
        %v2746 = vmul.f32 %v2720, 0.00012207031
        %v2747 = vmul.f32 %v2745, 0.00012207031
        %v2748 = vmul.f32 %v2746, %v2746
        %v2749 = vsub.f32 %v2747, %v2748
        %v2750 = vmax.f32 %v2749, 0.0
        %v2751 = vadd.f32 %v2750, 1e-08
        %v2752 = vrsqrt.pop %v2751
        %v2753 = vmul.f32 %v2237, %v2752
        %v2754 = vmul.f32 %v2238, %v2752
        %v2755 = vmul.f32 %v2239, %v2752
        %v2756 = vmul.f32 %v2240, %v2752
        %v2757 = vmul.f32 %v2746, %v2753
        %v2758 = vmul.f32 %v2746, %v2754
        %v2759 = vmul.f32 %v2746, %v2755
        %v2760 = vmul.f32 %v2746, %v2756
        %2765 = vrot.lane.b32.xlu0 %v2757, 1
        %v2766 = vpop.permute.xlu0 %2765
        %2767 = vrot.lane.b32.xlu0 %v2758, 1
        %v2768 = vpop.permute.xlu0 %2767
        %2769 = vrot.lane.b32.xlu0 %v2759, 1
        %v2770 = vpop.permute.xlu0 %2769
        %2771 = vrot.lane.b32.xlu0 %v2760, 1
        %v2772 = vpop.permute.xlu0 %2771
        %v2777 = vsub.f32 %v2237, %v2766
        %v2778 = vsub.f32 %v2238, %v2768
        %v2779 = vsub.f32 %v2239, %v2770
        %v2780 = vsub.f32 %v2240, %v2772
        %2782 = vset.pattern.permute.xlu0 7
        %2783 = vperm.xlu0 %2782, %v2753
        %v2784 = vpop.permute.xlu0 %2783
        %2787 = vset.pattern.permute.xlu0 7
        %2788 = vperm.xlu0 %2787, %v2754
        %v2789 = vpop.permute.xlu0 %2788
        %2792 = vset.pattern.permute.xlu0 7
        %2793 = vperm.xlu0 %2792, %v2755
        %v2794 = vpop.permute.xlu0 %2793
        %2797 = vset.pattern.permute.xlu0 7
        %2798 = vperm.xlu0 %2797, %v2756
        %v2799 = vpop.permute.xlu0 %2798
        %v2801 = vmul.f32 %v2696, %v2784
        %v2802 = vmul.f32 %v2697, %v2784
        %v2803 = vmul.f32 %v2698, %v2789
        %v2804 = vmul.f32 %v2699, %v2789
        %v2805 = vmul.f32 %v2700, %v2794
        %v2806 = vmul.f32 %v2701, %v2794
        %v2807 = vmul.f32 %v2702, %v2799
        %v2808 = vmul.f32 %v2703, %v2799
        %2810 = vset.pattern.permute.xlu0 8
        %2811 = vperm.xlu0 %2810, %v2777
        %v2812 = vpop.permute.xlu0 %2811
        %2815 = vset.pattern.permute.xlu0 8
        %2816 = vperm.xlu0 %2815, %v2778
        %v2817 = vpop.permute.xlu0 %2816
        %2820 = vset.pattern.permute.xlu0 8
        %2821 = vperm.xlu0 %2820, %v2779
        %v2822 = vpop.permute.xlu0 %2821
        %2825 = vset.pattern.permute.xlu0 8
        %2826 = vperm.xlu0 %2825, %v2780
        %v2827 = vpop.permute.xlu0 %2826
        %v2829 = vadd.f32 %v2801, %v2812
        %v2830 = vadd.f32 %v2802, %v2812
        %v2831 = vadd.f32 %v2803, %v2817
        %v2832 = vadd.f32 %v2804, %v2817
        %v2833 = vadd.f32 %v2805, %v2822
        %v2834 = vadd.f32 %v2806, %v2822
        %v2835 = vadd.f32 %v2807, %v2827
        %v2836 = vadd.f32 %v2808, %v2827
        %s2837 = scalar_lea.vmem [#allocation16], 64
        %v2838 = vld [vmem:[%s2837] sm:$0xf]
        %v2839 = vld [vmem:[%s2837 + $0x4] sm:$0xf]
        %v2840 = vld [vmem:[%s2837 + $0x8] sm:$0xf]
        %v2841 = vld [vmem:[%s2837 + $0xc] sm:$0xf]
        %v2842 = vld [vmem:[%s2837 + $0x10] sm:$0xf]
        %v2843 = vld [vmem:[%s2837 + $0x14] sm:$0xf]
        %v2844 = vld [vmem:[%s2837 + $0x18] sm:$0xf]
        %v2845 = vld [vmem:[%s2837 + $0x1c] sm:$0xf]
        %v2846 = vpack.c.bf16 %v2831, %v2829
        %v2847 = vpack.c.bf16 %v2832, %v2830
        %v2848 = vpack.c.bf16 %v2835, %v2833
        %v2849 = vpack.c.bf16 %v2836, %v2834
        %2850 = vset.pattern.permute.xlu0 9
        %2851 = vperm.xlu0 %2850, %v2237
        %v2852 = vpop.permute.xlu0 %2851
        %2854 = vset.pattern.permute.xlu0 9
        %2855 = vperm.xlu0 %2854, %v2238
        %v2856 = vpop.permute.xlu0 %2855
        %2858 = vset.pattern.permute.xlu0 9
        %2859 = vperm.xlu0 %2858, %v2239
        %v2860 = vpop.permute.xlu0 %2859
        %2862 = vset.pattern.permute.xlu0 9
        %2863 = vperm.xlu0 %2862, %v2240
        %v2864 = vpop.permute.xlu0 %2863
        %2867 = vset.pattern.permute.xlu0 9
        %2868 = vperm.xlu0 %2867, %v2241
        %v2869 = vpop.permute.xlu0 %2868
        %2872 = vset.pattern.permute.xlu0 9
        %2873 = vperm.xlu0 %2872, %v2242
        %v2874 = vpop.permute.xlu0 %2873
        %2877 = vset.pattern.permute.xlu0 9
        %2878 = vperm.xlu0 %2877, %v2243
        %v2879 = vpop.permute.xlu0 %2878
        %2882 = vset.pattern.permute.xlu0 9
        %2883 = vperm.xlu0 %2882, %v2244
        %v2884 = vpop.permute.xlu0 %2883
        %v2894 = vunpack.c.l.b16 %v2838
        %v2895 = vunpack.c.l.b16 %v2839
        %v2896 = vunpack.c.l.b16 %v2840
        %v2897 = vunpack.c.l.b16 %v2841
        %v2898 = vunpack.c.l.b16 %v2842
        %v2899 = vunpack.c.l.b16 %v2843
        %v2900 = vunpack.c.l.b16 %v2844
        %v2901 = vunpack.c.l.b16 %v2845
        %v2902 = vpack.c.b16 %v2895, %v2894
        %v2903 = vpack.c.b16 %v2897, %v2896
        %v2904 = vpack.c.b16 %v2899, %v2898
        %v2905 = vpack.c.b16 %v2901, %v2900
        %v2907 = vsel %vm730, %v2902, 0
        %v2910 = vsel %vm730, %v2903, 0
        %v2913 = vsel %vm730, %v2904, 0
        %v2916 = vsel %vm730, %v2905, 0
        %2918 = vmatprep.subr.bf16.mxu0 %v2847
        %2919 = vmatpush1.bf16.msra.mxu0 %v2846
        %2920 = vmatprep.subr.bf16.mxu0 %v2849
        %2921 = vmatpush1.bf16.msra.mxu0 %v2848
        %2922 = vmatprep.subr.bf16.mxu0 0
        %2923 = vmatpush1.bf16.msra.mxu0 0
        %2924 = vmatprep.subr.bf16.mxu0 0
        %2925 = vmatpush1.bf16.msra.mxu0 0
        %2926 = vmatprep.subr.bf16.mxu0 0
        %2927 = vmatpush1.bf16.msra.mxu0 0
        %2928 = vmatprep.subr.bf16.mxu0 0
        %2929 = vmatpush1.bf16.msra.mxu0 0
        %2930 = vmatprep.subr.bf16.mxu0 0
        %2931 = vmatpush1.bf16.msra.mxu0 0
        %2932 = vmatprep.subr.bf16.mxu0 0
        %2933 = vmatpush1.bf16.msra.mxu0 0
        %2934 = vmatprep.subr.bf16.mxu0 0
        %2935 = vmatpush1.bf16.msra.mxu0 0
        %2936 = vmatprep.subr.bf16.mxu0 0
        %2937 = vmatpush1.bf16.msra.mxu0 0
        %2938 = vmatprep.subr.bf16.mxu0 0
        %2939 = vmatpush1.bf16.msra.mxu0 0
        %2940 = vmatprep.subr.bf16.mxu0 0
        %2941 = vmatpush1.bf16.msra.mxu0 0
        %2942 = vmatprep.subr.bf16.mxu0 0
        %2943 = vmatpush1.bf16.msra.mxu0 0
        %2944 = vmatprep.subr.bf16.mxu0 0
        %2945 = vmatpush1.bf16.msra.mxu0 0
        %2946 = vmatprep.subr.bf16.mxu0 0
        %2947 = vmatpush1.bf16.msra.mxu0 0
        %2948 = vmatprep.subr.bf16.mxu0 0
        %2949 = vmatpush1.bf16.msra.mxu0 0
        %2950 = vmatprep.mubr.bf16.mxu0 0
        %2951 = vmatmul.mubr.bf16.gmra.mrb[0].mxu0 %v2907
        %v2952 = vpop.f32.mrb[0].mxu0
        %v2953 = vadd.f32 %v2852, %v2952
        %v2954 = vpop.f32.mrb[0].mxu0
        %v2955 = vadd.f32 %v2852, %v2954
        %v2956 = vpop.f32.mrb[0].mxu0
        %v2957 = vadd.f32 %v2856, %v2956
        %v2958 = vpop.f32.mrb[0].mxu0
        %v2959 = vadd.f32 %v2856, %v2958
        %2960 = vmatprep.mubr.bf16.mxu0 0
        %2961 = vmatmul.mubr.bf16.gmra.mrb[0].mxu0 %v2910
        %v2962 = vpop.f32.mrb[0].mxu0
        %v2963 = vadd.f32 %v2860, %v2962
        %v2964 = vpop.f32.mrb[0].mxu0
        %v2965 = vadd.f32 %v2860, %v2964
        %v2966 = vpop.f32.mrb[0].mxu0
        %v2967 = vadd.f32 %v2864, %v2966
        %v2968 = vpop.f32.mrb[0].mxu0
        %v2969 = vadd.f32 %v2864, %v2968
        %2970 = vmatprep.mubr.bf16.mxu0 0
        %2971 = vmatmul.mubr.bf16.gmra.mrb[0].mxu0 %v2913
        %v2972 = vpop.f32.mrb[0].mxu0
        %v2973 = vadd.f32 %v2869, %v2972
        %v2974 = vpop.f32.mrb[0].mxu0
        %v2975 = vadd.f32 %v2869, %v2974
        %v2976 = vpop.f32.mrb[0].mxu0
        %v2977 = vadd.f32 %v2874, %v2976
        %v2978 = vpop.f32.mrb[0].mxu0
        %v2979 = vadd.f32 %v2874, %v2978
        %2980 = vmatprep.mubr.bf16.mxu0 0
        %2981 = vmatmul.mubr.bf16.gmra.mrb[0].mxu0 %v2916
        %v2982 = vpop.f32.mrb[0].mxu0
        %v2983 = vadd.f32 %v2879, %v2982
        %v2984 = vpop.f32.mrb[0].mxu0
        %v2985 = vadd.f32 %v2879, %v2984
        %v2986 = vpop.f32.mrb[0].mxu0
        %v2987 = vadd.f32 %v2884, %v2986
        %v2988 = vpop.f32.mrb[0].mxu0
        %v2989 = vadd.f32 %v2884, %v2988
        %2990 = vdwg.mxu0
        %v2991 = vadd.f32 %v2220, %v2953
        %v2992 = vadd.f32 %v2221, %v2955
        %v2993 = vadd.f32 %v2222, %v2957
        %v2994 = vadd.f32 %v2223, %v2959
        %v2995 = vadd.f32 %v2224, %v2963
        %v2996 = vadd.f32 %v2225, %v2965
        %v2997 = vadd.f32 %v2226, %v2967
        %v2998 = vadd.f32 %v2227, %v2969
        %v2999 = vadd.f32 %v2228, %v2973
        %v3000 = vadd.f32 %v2229, %v2975
        %v3001 = vadd.f32 %v2230, %v2977
        %v3002 = vadd.f32 %v2231, %v2979
        %v3003 = vadd.f32 %v2232, %v2983
        %v3004 = vadd.f32 %v2233, %v2985
        %v3005 = vadd.f32 %v2234, %v2987
        %v3006 = vadd.f32 %v2235, %v2989
        %s3007 = scalar_lea.vmem [#allocation13], 192
        %v3008 = vld [vmem:[%s3007] sm:$0xff]
        %v3009 = vld [vmem:[%s3007 + $0x8] sm:$0xff]
        %v3010 = vld [vmem:[%s3007 + $0x10] sm:$0xff]
        %v3011 = vld [vmem:[%s3007 + $0x18] sm:$0xff]
        %v3012 = vld [vmem:[%s3007 + $0x20] sm:$0xff]
        %v3013 = vld [vmem:[%s3007 + $0x28] sm:$0xff]
        %v3014 = vld [vmem:[%s3007 + $0x30] sm:$0xff]
        %v3015 = vld [vmem:[%s3007 + $0x38] sm:$0xff]
        %s3016 = scalar_lea.vmem [#allocation15], 48
        %v3017 = vld [vmem:[%s3016] sm:$0xf]
        %v3018 = vld [vmem:[%s3016 + $0x4] sm:$0xf]
        %v3019 = vld [vmem:[%s3016 + $0x8] sm:$0xf]
        %v3020 = vld [vmem:[%s3016 + $0xc] sm:$0xf]
        %v3021 = vpack.c.bf16 %v2993, %v2991
        %v3022 = vpack.c.bf16 %v2994, %v2992
        %v3023 = vpack.c.bf16 %v2997, %v2995
        %v3024 = vpack.c.bf16 %v2998, %v2996
        %3026 = vset.pattern.permute.xlu0 0
        %3027 = vperm.xlu0 %3026, %v3008
        %v3028 = vpop.permute.xlu0 %3027
        %3031 = vset.pattern.permute.xlu0 0
        %3032 = vperm.xlu0 %3031, %v3009
        %v3033 = vpop.permute.xlu0 %3032
        %3036 = vset.pattern.permute.xlu0 0
        %3037 = vperm.xlu0 %3036, %v3010
        %v3038 = vpop.permute.xlu0 %3037
        %3041 = vset.pattern.permute.xlu0 0
        %3042 = vperm.xlu0 %3041, %v3011
        %v3043 = vpop.permute.xlu0 %3042
        %v3049 = vunpack.c.l.b16 %v3017
        %v3050 = vunpack.c.l.b16 %v3018
        %v3051 = vunpack.c.l.b16 %v3019
        %v3052 = vunpack.c.l.b16 %v3020
        %v3053 = vpack.c.b16 %v3050, %v3049
        %v3054 = vpack.c.b16 %v3052, %v3051
        %v3056 = vsel %vm730, %v3053, 0
        %v3059 = vsel %vm730, %v3054, 0
        %3061 = vmatprep.subr.bf16.mxu0 %v3022
        %3062 = vmatpush1.bf16.msra.mxu0 %v3021
        %3063 = vmatprep.subr.bf16.mxu0 %v3024
        %3064 = vmatpush1.bf16.msra.mxu0 %v3023
        %3065 = vmatprep.subr.bf16.mxu0 0
        %3066 = vmatpush1.bf16.msra.mxu0 0
        %3067 = vmatprep.subr.bf16.mxu0 0
        %3068 = vmatpush1.bf16.msra.mxu0 0
        %3069 = vmatprep.subr.bf16.mxu0 0
        %3070 = vmatpush1.bf16.msra.mxu0 0
        %3071 = vmatprep.subr.bf16.mxu0 0
        %3072 = vmatpush1.bf16.msra.mxu0 0
        %3073 = vmatprep.subr.bf16.mxu0 0
        %3074 = vmatpush1.bf16.msra.mxu0 0
        %3075 = vmatprep.subr.bf16.mxu0 0
        %3076 = vmatpush1.bf16.msra.mxu0 0
        %3077 = vmatprep.subr.bf16.mxu0 0
        %3078 = vmatpush1.bf16.msra.mxu0 0
        %3079 = vmatprep.subr.bf16.mxu0 0
        %3080 = vmatpush1.bf16.msra.mxu0 0
        %3081 = vmatprep.subr.bf16.mxu0 0
        %3082 = vmatpush1.bf16.msra.mxu0 0
        %3083 = vmatprep.subr.bf16.mxu0 0
        %3084 = vmatpush1.bf16.msra.mxu0 0
        %3085 = vmatprep.subr.bf16.mxu0 0
        %3086 = vmatpush1.bf16.msra.mxu0 0
        %3087 = vmatprep.subr.bf16.mxu0 0
        %3088 = vmatpush1.bf16.msra.mxu0 0
        %3089 = vmatprep.subr.bf16.mxu0 0
        %3090 = vmatpush1.bf16.msra.mxu0 0
        %3091 = vmatprep.subr.bf16.mxu0 0
        %3092 = vmatpush1.bf16.msra.mxu0 0
        %3093 = vmatprep.mubr.bf16.mxu0 0
        %3094 = vmatmul.mubr.bf16.gmra.mrb[0].mxu0 %v3056
        %v3095 = vpop.f32.mrb[0].mxu0
        %v3096 = vadd.f32 %v3028, %v3095
        %v3097 = vpop.f32.mrb[0].mxu0
        %v3098 = vadd.f32 %v3028, %v3097
        %v3099 = vpop.f32.mrb[0].mxu0
        %v3100 = vadd.f32 %v3033, %v3099
        %v3101 = vpop.f32.mrb[0].mxu0
        %v3102 = vadd.f32 %v3033, %v3101
        %3103 = vmatprep.mubr.bf16.mxu0 0
        %3104 = vmatmul.mubr.bf16.gmra.mrb[0].mxu0 %v3059
        %v3105 = vpop.f32.mrb[0].mxu0
        %v3106 = vadd.f32 %v3038, %v3105
        %v3107 = vpop.f32.mrb[0].mxu0
        %v3108 = vadd.f32 %v3038, %v3107
        %v3109 = vpop.f32.mrb[0].mxu0
        %v3110 = vadd.f32 %v3043, %v3109
        %v3111 = vpop.f32.mrb[0].mxu0
        %v3112 = vadd.f32 %v3043, %v3111
        %3113 = vdwg.mxu0
        %vm3114 = vcmp.ge.f32.partialorder %v3096, 0.0
        %vm3115 = vcmp.ge.f32.partialorder %v3098, 0.0
        %vm3116 = vcmp.ge.f32.partialorder %v3100, 0.0
        %vm3117 = vcmp.ge.f32.partialorder %v3102, 0.0
        %vm3118 = vcmp.ge.f32.partialorder %v3106, 0.0
        %vm3119 = vcmp.ge.f32.partialorder %v3108, 0.0
        %vm3120 = vcmp.ge.f32.partialorder %v3110, 0.0
        %vm3121 = vcmp.ge.f32.partialorder %v3112, 0.0
        %s3122 = sld [smem:[#allocation3 + $0x3]]
        %v3123 = vstv %s3122
        %v3124 = vmul.f32 %v3123, %v3096
        %v3125 = vmul.f32 %v3123, %v3098
        %v3126 = vmul.f32 %v3123, %v3100
        %v3127 = vmul.f32 %v3123, %v3102
        %v3128 = vmul.f32 %v3123, %v3106
        %v3129 = vmul.f32 %v3123, %v3108
        %v3130 = vmul.f32 %v3123, %v3110
        %v3131 = vmul.f32 %v3123, %v3112
        %v3132 = vsel %vm3114, %v3096, %v3124
        %v3133 = vsel %vm3115, %v3098, %v3125
        %v3134 = vsel %vm3116, %v3100, %v3126
        %v3135 = vsel %vm3117, %v3102, %v3127
        %v3136 = vsel %vm3118, %v3106, %v3128
        %v3137 = vsel %vm3119, %v3108, %v3129
        %v3138 = vsel %vm3120, %v3110, %v3130
        %v3139 = vsel %vm3121, %v3112, %v3131
        %v3140 = vadd.f32 %v3132, %v3133
        %v3141 = vadd.f32 %v3140, %v3134
        %v3142 = vadd.f32 %v3141, %v3135
        %v3143 = vadd.f32 %v3142, %v3136
        %v3144 = vadd.f32 %v3143, %v3137
        %v3145 = vadd.f32 %v3144, %v3138
        %v3146 = vadd.f32 %v3145, %v3139
        %3147 = vadd.xlane.f32.xlu0 %v3146
        %v3148 = vpop.xlane.xlu0 %3147
        %v3149 = vrot.slane %v3148, 4
        %v3150 = vadd.f32 %v3148, %v3149
        %v3151 = vrot.slane %v3150, 2
        %v3152 = vadd.f32 %v3150, %v3151
        %v3153 = vrot.slane %v3152, 1
        %v3154 = vadd.f32 %v3152, %v3153
        %s3155 = vtos %v3154
        %v3156 = vstv %s3155
        %v3157 = vmul.f32 %v3132, %v3132
        %v3158 = vmul.f32 %v3133, %v3133
        %v3159 = vmul.f32 %v3134, %v3134
        %v3160 = vmul.f32 %v3135, %v3135
        %v3161 = vmul.f32 %v3136, %v3136
        %v3162 = vmul.f32 %v3137, %v3137
        %v3163 = vmul.f32 %v3138, %v3138
        %v3164 = vmul.f32 %v3139, %v3139
        %v3165 = vadd.f32 %v3157, %v3158
        %v3166 = vadd.f32 %v3165, %v3159
        %v3167 = vadd.f32 %v3166, %v3160
        %v3168 = vadd.f32 %v3167, %v3161
        %v3169 = vadd.f32 %v3168, %v3162
        %v3170 = vadd.f32 %v3169, %v3163
        %v3171 = vadd.f32 %v3170, %v3164
        %3172 = vadd.xlane.f32.xlu0 %v3171
        %v3173 = vpop.xlane.xlu0 %3172
        %v3174 = vrot.slane %v3173, 4
        %v3175 = vadd.f32 %v3173, %v3174
        %v3176 = vrot.slane %v3175, 2
        %v3177 = vadd.f32 %v3175, %v3176
        %v3178 = vrot.slane %v3177, 1
        %v3179 = vadd.f32 %v3177, %v3178
        %s3180 = vtos %v3179
        %v3181 = vstv %s3180
        %v3182 = vmul.f32 %v3156, 0.00012207031
        %v3183 = vmul.f32 %v3181, 0.00012207031
        %v3184 = vmul.f32 %v3182, %v3182
        %v3185 = vsub.f32 %v3183, %v3184
        %v3186 = vmax.f32 %v3185, 0.0
        %v3187 = vadd.f32 %v3186, 1e-08
        %v3188 = vrsqrt.pop %v3187
        %v3189 = vmul.f32 %v3008, %v3188
        %v3190 = vmul.f32 %v3009, %v3188
        %v3191 = vmul.f32 %v3010, %v3188
        %v3192 = vmul.f32 %v3011, %v3188
        %v3193 = vmul.f32 %v3182, %v3189
        %v3194 = vmul.f32 %v3182, %v3190
        %v3195 = vmul.f32 %v3182, %v3191
        %v3196 = vmul.f32 %v3182, %v3192
        %3201 = vrot.lane.b32.xlu0 %v3193, 1
        %v3202 = vpop.permute.xlu0 %3201
        %3203 = vrot.lane.b32.xlu0 %v3194, 1
        %v3204 = vpop.permute.xlu0 %3203
        %3205 = vrot.lane.b32.xlu0 %v3195, 1
        %v3206 = vpop.permute.xlu0 %3205
        %3207 = vrot.lane.b32.xlu0 %v3196, 1
        %v3208 = vpop.permute.xlu0 %3207
        %v3213 = vsub.f32 %v3008, %v3202
        %v3214 = vsub.f32 %v3009, %v3204
        %v3215 = vsub.f32 %v3010, %v3206
        %v3216 = vsub.f32 %v3011, %v3208
        %3218 = vset.pattern.permute.xlu0 1
        %3219 = vperm.xlu0 %3218, %v3189
        %v3220 = vpop.permute.xlu0 %3219
        %3223 = vset.pattern.permute.xlu0 1
        %3224 = vperm.xlu0 %3223, %v3190
        %v3225 = vpop.permute.xlu0 %3224
        %3228 = vset.pattern.permute.xlu0 1
        %3229 = vperm.xlu0 %3228, %v3191
        %v3230 = vpop.permute.xlu0 %3229
        %3233 = vset.pattern.permute.xlu0 1
        %3234 = vperm.xlu0 %3233, %v3192
        %v3235 = vpop.permute.xlu0 %3234
        %v3237 = vmul.f32 %v3132, %v3220
        %v3238 = vmul.f32 %v3133, %v3220
        %v3239 = vmul.f32 %v3134, %v3225
        %v3240 = vmul.f32 %v3135, %v3225
        %v3241 = vmul.f32 %v3136, %v3230
        %v3242 = vmul.f32 %v3137, %v3230
        %v3243 = vmul.f32 %v3138, %v3235
        %v3244 = vmul.f32 %v3139, %v3235
        %3246 = vset.pattern.permute.xlu0 2
        %3247 = vperm.xlu0 %3246, %v3213
        %v3248 = vpop.permute.xlu0 %3247
        %3251 = vset.pattern.permute.xlu0 2
        %3252 = vperm.xlu0 %3251, %v3214
        %v3253 = vpop.permute.xlu0 %3252
        %3256 = vset.pattern.permute.xlu0 2
        %3257 = vperm.xlu0 %3256, %v3215
        %v3258 = vpop.permute.xlu0 %3257
        %3261 = vset.pattern.permute.xlu0 2
        %3262 = vperm.xlu0 %3261, %v3216
        %v3263 = vpop.permute.xlu0 %3262
        %v3265 = vadd.f32 %v3237, %v3248
        %v3266 = vadd.f32 %v3238, %v3248
        %v3267 = vadd.f32 %v3239, %v3253
        %v3268 = vadd.f32 %v3240, %v3253
        %v3269 = vadd.f32 %v3241, %v3258
        %v3270 = vadd.f32 %v3242, %v3258
        %v3271 = vadd.f32 %v3243, %v3263
        %v3272 = vadd.f32 %v3244, %v3263
        %3273 = vrot.lane.b32.xlu0 %v3265, 2
        %v3274 = vpop.permute.xlu0 %3273
        %3275 = vrot.lane.b32.xlu0 %v3267, 2
        %v3276 = vpop.permute.xlu0 %3275
        %3277 = vrot.lane.b32.xlu0 %v3269, 2
        %v3278 = vpop.permute.xlu0 %3277
        %3279 = vrot.lane.b32.xlu0 %v3271, 2
        %v3280 = vpop.permute.xlu0 %3279
        %3281 = vrot.lane.b32.xlu0 %v3266, 2
        %v3282 = vpop.permute.xlu0 %3281
        %3283 = vrot.lane.b32.xlu0 %v3268, 2
        %v3284 = vpop.permute.xlu0 %3283
        %3285 = vrot.lane.b32.xlu0 %v3270, 2
        %v3286 = vpop.permute.xlu0 %3285
        %3287 = vrot.lane.b32.xlu0 %v3272, 2
        %v3288 = vpop.permute.xlu0 %3287
        %v3289 = vsel %vm1737, %v3274, %v3282
        %v3290 = vsel %vm1737, %v3276, %v3284
        %v3291 = vsel %vm1737, %v3278, %v3286
        %v3292 = vsel %vm1737, %v3280, %v3288
        %v3293 = vsel %vm1737, %v3282, %v3274
        %v3294 = vsel %vm1737, %v3284, %v3276
        %v3295 = vsel %vm1737, %v3286, %v3278
        %v3296 = vsel %vm1737, %v3288, %v3280
        %v3297 = vsel %vm1748, %v3293, 0.0
        %v3298 = vsel %vm1749, %v3289, 0.0
        %v3299 = vsel %vm1748, %v3294, 0.0
        %v3300 = vsel %vm1749, %v3290, 0.0
        %v3301 = vsel %vm1748, %v3295, 0.0
        %v3302 = vsel %vm1749, %v3291, 0.0
        %v3303 = vsel %vm1748, %v3296, 0.0
        %v3304 = vsel %vm1749, %v3292, 0.0
        %3305 = vset.pattern.permute.xlu0 3
        %3306 = vperm.xlu0 %3305, %v3008
        %v3307 = vpop.permute.xlu0 %3306
        %3309 = vset.pattern.permute.xlu0 3
        %3310 = vperm.xlu0 %3309, %v3009
        %v3311 = vpop.permute.xlu0 %3310
        %3313 = vset.pattern.permute.xlu0 3
        %3314 = vperm.xlu0 %3313, %v3010
        %v3315 = vpop.permute.xlu0 %3314
        %3317 = vset.pattern.permute.xlu0 3
        %3318 = vperm.xlu0 %3317, %v3011
        %v3319 = vpop.permute.xlu0 %3318
        %v3321 = vmul.f32 %v3307, %v3297
        %v3322 = vmul.f32 %v3307, %v3298
        %v3323 = vmul.f32 %v3311, %v3299
        %v3324 = vmul.f32 %v3311, %v3300
        %v3325 = vmul.f32 %v3315, %v3301
        %v3326 = vmul.f32 %v3315, %v3302
        %v3327 = vmul.f32 %v3319, %v3303
        %v3328 = vmul.f32 %v3319, %v3304
        %3329 = vset.pattern.permute.xlu0 4
        %3330 = vperm.xlu0 %3329, %v3008
        %v3331 = vpop.permute.xlu0 %3330
        %3333 = vset.pattern.permute.xlu0 4
        %3334 = vperm.xlu0 %3333, %v3009
        %v3335 = vpop.permute.xlu0 %3334
        %3337 = vset.pattern.permute.xlu0 4
        %3338 = vperm.xlu0 %3337, %v3010
        %v3339 = vpop.permute.xlu0 %3338
        %3341 = vset.pattern.permute.xlu0 4
        %3342 = vperm.xlu0 %3341, %v3011
        %v3343 = vpop.permute.xlu0 %3342
        %v3345 = vmul.f32 %v3331, %v3265
        %v3346 = vmul.f32 %v3331, %v3266
        %v3347 = vmul.f32 %v3335, %v3267
        %v3348 = vmul.f32 %v3335, %v3268
        %v3349 = vmul.f32 %v3339, %v3269
        %v3350 = vmul.f32 %v3339, %v3270
        %v3351 = vmul.f32 %v3343, %v3271
        %v3352 = vmul.f32 %v3343, %v3272
        %v3353 = vadd.f32 %v3321, %v3345
        %v3354 = vadd.f32 %v3322, %v3346
        %v3355 = vadd.f32 %v3323, %v3347
        %v3356 = vadd.f32 %v3324, %v3348
        %v3357 = vadd.f32 %v3325, %v3349
        %v3358 = vadd.f32 %v3326, %v3350
        %v3359 = vadd.f32 %v3327, %v3351
        %v3360 = vadd.f32 %v3328, %v3352
        %3361 = vrot.lane.b32.xlu0 %v3265, 126
        %v3362 = vpop.permute.xlu0 %3361
        %3363 = vrot.lane.b32.xlu0 %v3267, 126
        %v3364 = vpop.permute.xlu0 %3363
        %3365 = vrot.lane.b32.xlu0 %v3269, 126
        %v3366 = vpop.permute.xlu0 %3365
        %3367 = vrot.lane.b32.xlu0 %v3271, 126
        %v3368 = vpop.permute.xlu0 %3367
        %3369 = vrot.lane.b32.xlu0 %v3266, 126
        %v3370 = vpop.permute.xlu0 %3369
        %3371 = vrot.lane.b32.xlu0 %v3268, 126
        %v3372 = vpop.permute.xlu0 %3371
        %3373 = vrot.lane.b32.xlu0 %v3270, 126
        %v3374 = vpop.permute.xlu0 %3373
        %3375 = vrot.lane.b32.xlu0 %v3272, 126
        %v3376 = vpop.permute.xlu0 %3375
        %v3377 = vsel %vm1830, %v3362, %v3370
        %v3378 = vsel %vm1830, %v3364, %v3372
        %v3379 = vsel %vm1830, %v3366, %v3374
        %v3380 = vsel %vm1830, %v3368, %v3376
        %v3381 = vsel %vm1830, %v3370, %v3362
        %v3382 = vsel %vm1830, %v3372, %v3364
        %v3383 = vsel %vm1830, %v3374, %v3366
        %v3384 = vsel %vm1830, %v3376, %v3368
        %v3385 = vsel %vm1841, %v3377, 0.0
        %v3386 = vsel %vm1842, %v3381, 0.0
        %v3387 = vsel %vm1841, %v3378, 0.0
        %v3388 = vsel %vm1842, %v3382, 0.0
        %v3389 = vsel %vm1841, %v3379, 0.0
        %v3390 = vsel %vm1842, %v3383, 0.0
        %v3391 = vsel %vm1841, %v3380, 0.0
        %v3392 = vsel %vm1842, %v3384, 0.0
        %3393 = vset.pattern.permute.xlu0 5
        %3394 = vperm.xlu0 %3393, %v3008
        %v3395 = vpop.permute.xlu0 %3394
        %3397 = vset.pattern.permute.xlu0 5
        %3398 = vperm.xlu0 %3397, %v3009
        %v3399 = vpop.permute.xlu0 %3398
        %3401 = vset.pattern.permute.xlu0 5
        %3402 = vperm.xlu0 %3401, %v3010
        %v3403 = vpop.permute.xlu0 %3402
        %3405 = vset.pattern.permute.xlu0 5
        %3406 = vperm.xlu0 %3405, %v3011
        %v3407 = vpop.permute.xlu0 %3406
        %v3409 = vmul.f32 %v3395, %v3385
        %v3410 = vmul.f32 %v3395, %v3386
        %v3411 = vmul.f32 %v3399, %v3387
        %v3412 = vmul.f32 %v3399, %v3388
        %v3413 = vmul.f32 %v3403, %v3389
        %v3414 = vmul.f32 %v3403, %v3390
        %v3415 = vmul.f32 %v3407, %v3391
        %v3416 = vmul.f32 %v3407, %v3392
        %v3417 = vadd.f32 %v3353, %v3409
        %v3418 = vadd.f32 %v3354, %v3410
        %v3419 = vadd.f32 %v3355, %v3411
        %v3420 = vadd.f32 %v3356, %v3412
        %v3421 = vadd.f32 %v3357, %v3413
        %v3422 = vadd.f32 %v3358, %v3414
        %v3423 = vadd.f32 %v3359, %v3415
        %v3424 = vadd.f32 %v3360, %v3416
        %3425 = vset.pattern.permute.xlu0 6
        %3426 = vperm.xlu0 %3425, %v3008
        %v3427 = vpop.permute.xlu0 %3426
        %3429 = vset.pattern.permute.xlu0 6
        %3430 = vperm.xlu0 %3429, %v3009
        %v3431 = vpop.permute.xlu0 %3430
        %3433 = vset.pattern.permute.xlu0 6
        %3434 = vperm.xlu0 %3433, %v3010
        %v3435 = vpop.permute.xlu0 %3434
        %3437 = vset.pattern.permute.xlu0 6
        %3438 = vperm.xlu0 %3437, %v3011
        %v3439 = vpop.permute.xlu0 %3438
        %v3441 = vadd.f32 %v3417, %v3427
        %v3442 = vadd.f32 %v3418, %v3427
        %v3443 = vadd.f32 %v3419, %v3431
        %v3444 = vadd.f32 %v3420, %v3431
        %v3445 = vadd.f32 %v3421, %v3435
        %v3446 = vadd.f32 %v3422, %v3435
        %v3447 = vadd.f32 %v3423, %v3439
        %v3448 = vadd.f32 %v3424, %v3439
        %vm3449 = vcmp.ge.f32.partialorder %v3441, 0.0
        %vm3450 = vcmp.ge.f32.partialorder %v3442, 0.0
        %vm3451 = vcmp.ge.f32.partialorder %v3443, 0.0
        %vm3452 = vcmp.ge.f32.partialorder %v3444, 0.0
        %vm3453 = vcmp.ge.f32.partialorder %v3445, 0.0
        %vm3454 = vcmp.ge.f32.partialorder %v3446, 0.0
        %vm3455 = vcmp.ge.f32.partialorder %v3447, 0.0
        %vm3456 = vcmp.ge.f32.partialorder %v3448, 0.0
        %s3457 = sld [smem:[#allocation7 + $0x3]]
        %v3458 = vstv %s3457
        %v3459 = vmul.f32 %v3458, %v3441
        %v3460 = vmul.f32 %v3458, %v3442
        %v3461 = vmul.f32 %v3458, %v3443
        %v3462 = vmul.f32 %v3458, %v3444
        %v3463 = vmul.f32 %v3458, %v3445
        %v3464 = vmul.f32 %v3458, %v3446
        %v3465 = vmul.f32 %v3458, %v3447
        %v3466 = vmul.f32 %v3458, %v3448
        %v3467 = vsel %vm3449, %v3441, %v3459
        %v3468 = vsel %vm3450, %v3442, %v3460
        %v3469 = vsel %vm3451, %v3443, %v3461
        %v3470 = vsel %vm3452, %v3444, %v3462
        %v3471 = vsel %vm3453, %v3445, %v3463
        %v3472 = vsel %vm3454, %v3446, %v3464
        %v3473 = vsel %vm3455, %v3447, %v3465
        %v3474 = vsel %vm3456, %v3448, %v3466
        %v3475 = vadd.f32 %v3467, %v3468
        %v3476 = vadd.f32 %v3475, %v3469
        %v3477 = vadd.f32 %v3476, %v3470
        %v3478 = vadd.f32 %v3477, %v3471
        %v3479 = vadd.f32 %v3478, %v3472
        %v3480 = vadd.f32 %v3479, %v3473
        %v3481 = vadd.f32 %v3480, %v3474
        %3482 = vadd.xlane.f32.xlu0 %v3481
        %v3483 = vpop.xlane.xlu0 %3482
        %v3484 = vrot.slane %v3483, 4
        %v3485 = vadd.f32 %v3483, %v3484
        %v3486 = vrot.slane %v3485, 2
        %v3487 = vadd.f32 %v3485, %v3486
        %v3488 = vrot.slane %v3487, 1
        %v3489 = vadd.f32 %v3487, %v3488
        %s3490 = vtos %v3489
        %v3491 = vstv %s3490
        %v3492 = vmul.f32 %v3467, %v3467
        %v3493 = vmul.f32 %v3468, %v3468
        %v3494 = vmul.f32 %v3469, %v3469
        %v3495 = vmul.f32 %v3470, %v3470
        %v3496 = vmul.f32 %v3471, %v3471
        %v3497 = vmul.f32 %v3472, %v3472
        %v3498 = vmul.f32 %v3473, %v3473
        %v3499 = vmul.f32 %v3474, %v3474
        %v3500 = vadd.f32 %v3492, %v3493
        %v3501 = vadd.f32 %v3500, %v3494
        %v3502 = vadd.f32 %v3501, %v3495
        %v3503 = vadd.f32 %v3502, %v3496
        %v3504 = vadd.f32 %v3503, %v3497
        %v3505 = vadd.f32 %v3504, %v3498
        %v3506 = vadd.f32 %v3505, %v3499
        %3507 = vadd.xlane.f32.xlu0 %v3506
        %v3508 = vpop.xlane.xlu0 %3507
        %v3509 = vrot.slane %v3508, 4
        %v3510 = vadd.f32 %v3508, %v3509
        %v3511 = vrot.slane %v3510, 2
        %v3512 = vadd.f32 %v3510, %v3511
        %v3513 = vrot.slane %v3512, 1
        %v3514 = vadd.f32 %v3512, %v3513
        %s3515 = vtos %v3514
        %v3516 = vstv %s3515
        %v3517 = vmul.f32 %v3491, 0.00012207031
        %v3518 = vmul.f32 %v3516, 0.00012207031
        %v3519 = vmul.f32 %v3517, %v3517
        %v3520 = vsub.f32 %v3518, %v3519
        %v3521 = vmax.f32 %v3520, 0.0
        %v3522 = vadd.f32 %v3521, 1e-08
        %v3523 = vrsqrt.pop %v3522
        %v3524 = vmul.f32 %v3008, %v3523
        %v3525 = vmul.f32 %v3009, %v3523
        %v3526 = vmul.f32 %v3010, %v3523
        %v3527 = vmul.f32 %v3011, %v3523
        %v3528 = vmul.f32 %v3517, %v3524
        %v3529 = vmul.f32 %v3517, %v3525
        %v3530 = vmul.f32 %v3517, %v3526
        %v3531 = vmul.f32 %v3517, %v3527
        %3536 = vrot.lane.b32.xlu0 %v3528, 1
        %v3537 = vpop.permute.xlu0 %3536
        %3538 = vrot.lane.b32.xlu0 %v3529, 1
        %v3539 = vpop.permute.xlu0 %3538
        %3540 = vrot.lane.b32.xlu0 %v3530, 1
        %v3541 = vpop.permute.xlu0 %3540
        %3542 = vrot.lane.b32.xlu0 %v3531, 1
        %v3543 = vpop.permute.xlu0 %3542
        %v3548 = vsub.f32 %v3008, %v3537
        %v3549 = vsub.f32 %v3009, %v3539
        %v3550 = vsub.f32 %v3010, %v3541
        %v3551 = vsub.f32 %v3011, %v3543
        %3553 = vset.pattern.permute.xlu0 7
        %3554 = vperm.xlu0 %3553, %v3524
        %v3555 = vpop.permute.xlu0 %3554
        %3558 = vset.pattern.permute.xlu0 7
        %3559 = vperm.xlu0 %3558, %v3525
        %v3560 = vpop.permute.xlu0 %3559
        %3563 = vset.pattern.permute.xlu0 7
        %3564 = vperm.xlu0 %3563, %v3526
        %v3565 = vpop.permute.xlu0 %3564
        %3568 = vset.pattern.permute.xlu0 7
        %3569 = vperm.xlu0 %3568, %v3527
        %v3570 = vpop.permute.xlu0 %3569
        %v3572 = vmul.f32 %v3467, %v3555
        %v3573 = vmul.f32 %v3468, %v3555
        %v3574 = vmul.f32 %v3469, %v3560
        %v3575 = vmul.f32 %v3470, %v3560
        %v3576 = vmul.f32 %v3471, %v3565
        %v3577 = vmul.f32 %v3472, %v3565
        %v3578 = vmul.f32 %v3473, %v3570
        %v3579 = vmul.f32 %v3474, %v3570
        %3581 = vset.pattern.permute.xlu0 8
        %3582 = vperm.xlu0 %3581, %v3548
        %v3583 = vpop.permute.xlu0 %3582
        %3586 = vset.pattern.permute.xlu0 8
        %3587 = vperm.xlu0 %3586, %v3549
        %v3588 = vpop.permute.xlu0 %3587
        %3591 = vset.pattern.permute.xlu0 8
        %3592 = vperm.xlu0 %3591, %v3550
        %v3593 = vpop.permute.xlu0 %3592
        %3596 = vset.pattern.permute.xlu0 8
        %3597 = vperm.xlu0 %3596, %v3551
        %v3598 = vpop.permute.xlu0 %3597
        %v3600 = vadd.f32 %v3572, %v3583
        %v3601 = vadd.f32 %v3573, %v3583
        %v3602 = vadd.f32 %v3574, %v3588
        %v3603 = vadd.f32 %v3575, %v3588
        %v3604 = vadd.f32 %v3576, %v3593
        %v3605 = vadd.f32 %v3577, %v3593
        %v3606 = vadd.f32 %v3578, %v3598
        %v3607 = vadd.f32 %v3579, %v3598
        %s3608 = scalar_lea.vmem [#allocation16], 96
        %v3609 = vld [vmem:[%s3608] sm:$0xf]
        %v3610 = vld [vmem:[%s3608 + $0x4] sm:$0xf]
        %v3611 = vld [vmem:[%s3608 + $0x8] sm:$0xf]
        %v3612 = vld [vmem:[%s3608 + $0xc] sm:$0xf]
        %v3613 = vld [vmem:[%s3608 + $0x10] sm:$0xf]
        %v3614 = vld [vmem:[%s3608 + $0x14] sm:$0xf]
        %v3615 = vld [vmem:[%s3608 + $0x18] sm:$0xf]
        %v3616 = vld [vmem:[%s3608 + $0x1c] sm:$0xf]
        %v3617 = vpack.c.bf16 %v3602, %v3600
        %v3618 = vpack.c.bf16 %v3603, %v3601
        %v3619 = vpack.c.bf16 %v3606, %v3604
        %v3620 = vpack.c.bf16 %v3607, %v3605
        %3621 = vset.pattern.permute.xlu0 9
        %3622 = vperm.xlu0 %3621, %v3008
        %v3623 = vpop.permute.xlu0 %3622
        %3624 = vset.pattern.permute.xlu0 9
        %3625 = vperm.xlu0 %3624, %v3009
        %v3626 = vpop.permute.xlu0 %3625
        %3627 = vset.pattern.permute.xlu0 9
        %3628 = vperm.xlu0 %3627, %v3010
        %v3629 = vpop.permute.xlu0 %3628
        %3630 = vset.pattern.permute.xlu0 9
        %3631 = vperm.xlu0 %3630, %v3011
        %v3632 = vpop.permute.xlu0 %3631
        %3634 = vset.pattern.permute.xlu0 9
        %3635 = vperm.xlu0 %3634, %v3012
        %v3636 = vpop.permute.xlu0 %3635
        %3639 = vset.pattern.permute.xlu0 9
        %3640 = vperm.xlu0 %3639, %v3013
        %v3641 = vpop.permute.xlu0 %3640
        %3644 = vset.pattern.permute.xlu0 9
        %3645 = vperm.xlu0 %3644, %v3014
        %v3646 = vpop.permute.xlu0 %3645
        %3649 = vset.pattern.permute.xlu0 9
        %3650 = vperm.xlu0 %3649, %v3015
        %v3651 = vpop.permute.xlu0 %3650
        %v3661 = vunpack.c.l.b16 %v3609
        %v3662 = vunpack.c.l.b16 %v3610
        %v3663 = vunpack.c.l.b16 %v3611
        %v3664 = vunpack.c.l.b16 %v3612
        %v3665 = vunpack.c.l.b16 %v3613
        %v3666 = vunpack.c.l.b16 %v3614
        %v3667 = vunpack.c.l.b16 %v3615
        %v3668 = vunpack.c.l.b16 %v3616
        %v3669 = vpack.c.b16 %v3662, %v3661
        %v3670 = vpack.c.b16 %v3664, %v3663
        %v3671 = vpack.c.b16 %v3666, %v3665
        %v3672 = vpack.c.b16 %v3668, %v3667
        %v3674 = vsel %vm730, %v3669, 0
        %v3677 = vsel %vm730, %v3670, 0
        %v3680 = vsel %vm730, %v3671, 0
        %v3683 = vsel %vm730, %v3672, 0
        %3685 = vmatprep.subr.bf16.mxu0 %v3618
        %3686 = vmatpush1.bf16.msra.mxu0 %v3617
        %3687 = vmatprep.subr.bf16.mxu0 %v3620
        %3688 = vmatpush1.bf16.msra.mxu0 %v3619
        %3689 = vmatprep.subr.bf16.mxu0 0
        %3690 = vmatpush1.bf16.msra.mxu0 0
        %3691 = vmatprep.subr.bf16.mxu0 0
        %3692 = vmatpush1.bf16.msra.mxu0 0
        %3693 = vmatprep.subr.bf16.mxu0 0
        %3694 = vmatpush1.bf16.msra.mxu0 0
        %3695 = vmatprep.subr.bf16.mxu0 0
        %3696 = vmatpush1.bf16.msra.mxu0 0
        %3697 = vmatprep.subr.bf16.mxu0 0
        %3698 = vmatpush1.bf16.msra.mxu0 0
        %3699 = vmatprep.subr.bf16.mxu0 0
        %3700 = vmatpush1.bf16.msra.mxu0 0
        %3701 = vmatprep.subr.bf16.mxu0 0
        %3702 = vmatpush1.bf16.msra.mxu0 0
        %3703 = vmatprep.subr.bf16.mxu0 0
        %3704 = vmatpush1.bf16.msra.mxu0 0
        %3705 = vmatprep.subr.bf16.mxu0 0
        %3706 = vmatpush1.bf16.msra.mxu0 0
        %3707 = vmatprep.subr.bf16.mxu0 0
        %3708 = vmatpush1.bf16.msra.mxu0 0
        %3709 = vmatprep.subr.bf16.mxu0 0
        %3710 = vmatpush1.bf16.msra.mxu0 0
        %3711 = vmatprep.subr.bf16.mxu0 0
        %3712 = vmatpush1.bf16.msra.mxu0 0
        %3713 = vmatprep.subr.bf16.mxu0 0
        %3714 = vmatpush1.bf16.msra.mxu0 0
        %3715 = vmatprep.subr.bf16.mxu0 0
        %3716 = vmatpush1.bf16.msra.mxu0 0
        %3717 = vmatprep.mubr.bf16.mxu0 0
        %3718 = vmatmul.mubr.bf16.gmra.mrb[0].mxu0 %v3674
        %v3719 = vpop.f32.mrb[0].mxu0
        %v3720 = vpop.f32.mrb[0].mxu0
        %v3721 = vpop.f32.mrb[0].mxu0
        %v3722 = vpop.f32.mrb[0].mxu0
        %3723 = vmatprep.mubr.bf16.mxu0 0
        %3724 = vmatmul.mubr.bf16.gmra.mrb[0].mxu0 %v3677
        %v3725 = vpop.f32.mrb[0].mxu0
        %v3726 = vpop.f32.mrb[0].mxu0
        %v3727 = vpop.f32.mrb[0].mxu0
        %v3728 = vpop.f32.mrb[0].mxu0
        %3729 = vmatprep.mubr.bf16.mxu0 0
        %3730 = vmatmul.mubr.bf16.gmra.mrb[0].mxu0 %v3680
        %v3731 = vpop.f32.mrb[0].mxu0
        %v3732 = vadd.f32 %v3636, %v3731
        %v3733 = vpop.f32.mrb[0].mxu0
        %v3734 = vadd.f32 %v3636, %v3733
        %v3735 = vpop.f32.mrb[0].mxu0
        %v3736 = vadd.f32 %v3641, %v3735
        %v3737 = vpop.f32.mrb[0].mxu0
        %v3738 = vadd.f32 %v3641, %v3737
        %3739 = vmatprep.mubr.bf16.mxu0 0
        %3740 = vmatmul.mubr.bf16.gmra.mrb[0].mxu0 %v3683
        %v3741 = vpop.f32.mrb[0].mxu0
        %v3742 = vadd.f32 %v3646, %v3741
        %v3743 = vpop.f32.mrb[0].mxu0
        %v3744 = vadd.f32 %v3646, %v3743
        %v3745 = vpop.f32.mrb[0].mxu0
        %v3746 = vadd.f32 %v3651, %v3745
        %v3747 = vpop.f32.mrb[0].mxu0
        %v3748 = vadd.f32 %v3651, %v3747
        %3749 = vdwg.mxu0
        %v3750 = vadd.f32 %v2999, %v3732
        %v3751 = vadd.f32 %v3000, %v3734
        %v3752 = vadd.f32 %v3001, %v3736
        %v3753 = vadd.f32 %v3002, %v3738
        %v3754 = vadd.f32 %v3003, %v3742
        %v3755 = vadd.f32 %v3004, %v3744
        %v3756 = vadd.f32 %v3005, %v3746
        %v3757 = vadd.f32 %v3006, %v3748
        %vm3758 = vcmp.ge.f32.partialorder %v3750, 0.0
        %vm3759 = vcmp.ge.f32.partialorder %v3751, 0.0
        %vm3760 = vcmp.ge.f32.partialorder %v3752, 0.0
        %vm3761 = vcmp.ge.f32.partialorder %v3753, 0.0
        %vm3762 = vcmp.ge.f32.partialorder %v3754, 0.0
        %vm3763 = vcmp.ge.f32.partialorder %v3755, 0.0
        %vm3764 = vcmp.ge.f32.partialorder %v3756, 0.0
        %vm3765 = vcmp.ge.f32.partialorder %v3757, 0.0
        %s3766 = sld [smem:[#allocation2]]
        %v3767 = vstv %s3766
        %v3768 = vmul.f32 %v3767, %v3750
        %v3769 = vmul.f32 %v3767, %v3751
        %v3770 = vmul.f32 %v3767, %v3752
        %v3771 = vmul.f32 %v3767, %v3753
        %v3772 = vmul.f32 %v3767, %v3754
        %v3773 = vmul.f32 %v3767, %v3755
        %v3774 = vmul.f32 %v3767, %v3756
        %v3775 = vmul.f32 %v3767, %v3757
        %v3776 = vsel %vm3758, %v3750, %v3768
        %v3777 = vsel %vm3759, %v3751, %v3769
        %v3778 = vsel %vm3760, %v3752, %v3770
        %v3779 = vsel %vm3761, %v3753, %v3771
        %v3780 = vsel %vm3762, %v3754, %v3772
        %v3781 = vsel %vm3763, %v3755, %v3773
        %v3782 = vsel %vm3764, %v3756, %v3774
        %v3783 = vsel %vm3765, %v3757, %v3775
        %v3784 = vld [vmem:[#allocation18] sm:$0xf]
        %v3785 = vld [vmem:[#allocation18 + $0x4] sm:$0xf]
        %v3786 = vpack.c.bf16 %v3778, %v3776
        %v3787 = vpack.c.bf16 %v3779, %v3777
        %v3788 = vpack.c.bf16 %v3782, %v3780
        %v3789 = vpack.c.bf16 %v3783, %v3781
        %3790 = vset.pattern.permute.xlu0 3
        %3791 = vperm.xlu0 %3790, %v501
        %v3792 = vpop.permute.xlu0 %3791
        %3794 = vset.pattern.permute.xlu0 3
        %3795 = vperm.xlu0 %3794, %v502
        %v3796 = vpop.permute.xlu0 %3795
        %v3800 = vunpack.c.l.b16 %v3784
        %v3801 = vunpack.c.l.b16 %v3785
        %v3802 = vpack.c.b16 %v3801, %v3800
        %v3804 = vsel %vm730, %v3802, 0
        %3806 = vmatprep.subr.bf16.mxu0 %v3787
        %3807 = vmatpush1.bf16.msra.mxu0 %v3786
        %3808 = vmatprep.subr.bf16.mxu0 %v3789
        %3809 = vmatpush1.bf16.msra.mxu0 %v3788
        %3810 = vmatprep.subr.bf16.mxu0 0
        %3811 = vmatpush1.bf16.msra.mxu0 0
        %3812 = vmatprep.subr.bf16.mxu0 0
        %3813 = vmatpush1.bf16.msra.mxu0 0
        %3814 = vmatprep.subr.bf16.mxu0 0
        %3815 = vmatpush1.bf16.msra.mxu0 0
        %3816 = vmatprep.subr.bf16.mxu0 0
        %3817 = vmatpush1.bf16.msra.mxu0 0
        %3818 = vmatprep.subr.bf16.mxu0 0
        %3819 = vmatpush1.bf16.msra.mxu0 0
        %3820 = vmatprep.subr.bf16.mxu0 0
        %3821 = vmatpush1.bf16.msra.mxu0 0
        %3822 = vmatprep.subr.bf16.mxu0 0
        %3823 = vmatpush1.bf16.msra.mxu0 0
        %3824 = vmatprep.subr.bf16.mxu0 0
        %3825 = vmatpush1.bf16.msra.mxu0 0
        %3826 = vmatprep.subr.bf16.mxu0 0
        %3827 = vmatpush1.bf16.msra.mxu0 0
        %3828 = vmatprep.subr.bf16.mxu0 0
        %3829 = vmatpush1.bf16.msra.mxu0 0
        %3830 = vmatprep.subr.bf16.mxu0 0
        %3831 = vmatpush1.bf16.msra.mxu0 0
        %3832 = vmatprep.subr.bf16.mxu0 0
        %3833 = vmatpush1.bf16.msra.mxu0 0
        %3834 = vmatprep.subr.bf16.mxu0 0
        %3835 = vmatpush1.bf16.msra.mxu0 0
        %3836 = vmatprep.subr.bf16.mxu0 0
        %3837 = vmatpush1.bf16.msra.mxu0 0
        %3838 = vmatprep.mubr.bf16.mxu0 0
        %3839 = vmatmul.mubr.bf16.gmra.mrb[0].mxu0 %v3804
        %v3840 = vpop.f32.mrb[0].mxu0
        %v3841 = vadd.f32 %v3792, %v3840
        %v3842 = vpop.f32.mrb[0].mxu0
        %v3843 = vadd.f32 %v3792, %v3842
        %v3844 = vpop.f32.mrb[0].mxu0
        %v3845 = vadd.f32 %v3796, %v3844
        %v3846 = vpop.f32.mrb[0].mxu0
        %v3847 = vadd.f32 %v3796, %v3846
        %3848 = vdwg.mxu0
        %3849 = vst [vmem:[%s488] sm:$0xff] %v3841
        %3850 = vst [vmem:[%s488 + $0x8] sm:$0xff] %v3843
        %3851 = vst [vmem:[%s488 + $0x10] sm:$0xff] %v3845
        %3852 = vst [vmem:[%s488 + $0x18] sm:$0xff] %v3847
        %s3853 = sand.u32 %s256, 1
        %s3854 = scalar_lea.sflag [#allocation5], %s3853
        %s3855 = sand.u32 %s256, 1
        %s3856 = smul.addr %s3855, 32
        %s3857 = scalar_lea.vmem [#allocation19], %s3856
        // Predicated region
        $region97: #{tpu_custom_call.1} parent=59 // pred_check
          %p3858 = pneg %p266
        $region98: #{tpu_custom_call.1} parent=59 // pred_check_branch
          %3860 = sbr.rel (%p3858) target = $region100
        $region99: #{tpu_custom_call.1} parent=59 // pred_region
          %s3862 = ssub.s32 512, 512
          %3863 = vsyncadd %s3854, %s3862
          %s3864 = smul.addr %s33, 4
          %s3865 = smul.addr %s3864, 128
          %s3866 = scalar_lea.hbm %s10, %s3865
          %s3867 = sshll.u32 %s3857, 4
          %s3868 = int_to_ptr.vmem [resolvable:$true] %s3867
          %3873 = dma.vmem_to_hbm [thread:$0]  %s3868, 512, %s3866, %s3854, 256, 256, 16
        $region100: #{tpu_custom_call.1} parent=59 // pred_fallthru
          _
      $region60: #{tpu_custom_call.1} parent=5 // pred_fallthru
        _
      %p3874 = scmp.le.s32.totalorder 2, %s28
      // Predicated region
      $region101: #{tpu_custom_call.1} parent=5 // pred_check
        %p3875 = pneg %p3874
      $region102: #{tpu_custom_call.1} parent=5 // pred_check_branch
        %3877 = sbr.rel (%p3875) target = $region104
      $region103: #{tpu_custom_call.1} parent=5 // pred_region
        %s3878 = ssub.s32 %s28, 2
        // Predicated region
        $region105: #{tpu_custom_call.1} parent=103 // pred_check
          %p3879 = pneg %p272
        $region106: #{tpu_custom_call.1} parent=103 // pred_check_branch
          %3881 = sbr.rel (%p3879) target = $region108
        $region107: #{tpu_custom_call.1} parent=103 // pred_region
          %s3882 = sand.u32 %s257, 1
          %s3883 = scalar_lea.sflag [#allocation5], %s3882
          %s3884 = sand.u32 %s257, 1
          %s3885 = smul.addr %s3884, 32
          %s3886 = scalar_lea.vmem [#allocation19], %s3885
          %3887 = dma.done %s3883, 512
        $region108: #{tpu_custom_call.1} parent=103 // pred_fallthru
          _
      $region104: #{tpu_custom_call.1} parent=5 // pred_fallthru
        _
    $region6: #{tpu_custom_call.1} parent=1 // loop_footer
      %s32 = sadd.s32 1, %s28
    $region7: #{tpu_custom_call.1} parent=1 // loop_footer_branch
      %27 = sbr.rel target = $region3
    $region8: #{tpu_custom_call.1} parent=1 // loop_exit
      _
    %3888 = vsyncpa [#allocation4], 1
    %s3889 = scalar_lea.sflag [#allocation4], 1
    %3890 = vsyncpa %s3889, 1
    %3891 = vsyncpa [#allocation11], 1
    %3892 = vsyncpa [#allocation14], 1
    %3893 = vsyncpa [#allocation17], 1
    %3894 = vsyncpa [#allocation5], 1
    %s3895 = scalar_lea.sflag [#allocation5], 1
    %3896 = vsyncpa %s3895, 1
    %3897 = vsyncpa [#allocation6], 1
    %s3898 = scalar_lea.sflag [#allocation6], 1
    %3899 = vsyncpa %s3898, 1
    %3900 = vsyncpa [#allocation8], 1

</llo_original>
